<compile_context>
chip_gen: v6e
topology: v6e:2x2x1
jax: 0.10.0
libtpu: 0.0.40
codegen_flags: <defaults>
</compile_context>

<pallas_src>
import math

import jax
import jax.numpy as jnp
from jax import lax
from jax.experimental import pallas as pl
from jax.experimental.pallas import tpu as pltpu

D_MODEL = 32          # fixed by the module (attn = MultiHeadedAttention(4, 32))
N_HEADS = 4
D_HEAD = D_MODEL // N_HEADS
_MM_PREC = lax.Precision.HIGHEST   # fp32 contract precision (see header comment)


def _mm(a, b):
    return jnp.dot(a, b, preferred_element_type=jnp.float32, precision=_MM_PREC)


def disgate_kernel(ans_ref, dis_ref, w_vs_ref, b_vs_ref, w_o_ref, b_o_ref,
                   w_dis_ref, b_dis_ref, w_ans_ref, b_ans_ref, out_ref):
    """One batch tile (TB rows) per grid step.

    ans_ref : (TB, L*32)  answer sequence, positions flattened into lanes
    dis_ref : (TB, 32)
    w_vs_ref: (32, 64)    [Wv^T | folded per-lane score weight]
    b_vs_ref: (1, 64)     [bv   | pad/base score]
    w_o_ref : (32, 32)    Wo^T,  b_o_ref: (1, 32)
    w_dis_ref: (32, 64)   [W_vdis^T | W_gdis^T],  b_dis_ref: (1, 64)
    w_ans_ref: (32, 64)   [W_vans^T | W_gans^T],  b_ans_ref: (1, 64)
    out_ref : (TB, 32)
    """
    x = ans_ref[...]                              # (TB, L*32)
    tb = x.shape[0]
    seq_len = x.shape[1] // D_MODEL               # static L

    w_vs = w_vs_ref[...]                          # (32, 64)
    b_vs = b_vs_ref[...]                          # (1, 64)
    v_pad = b_vs[:, :D_MODEL]                     # (1, 32): value of the zero pad row (= bv)
    s_pad = b_vs[:, D_MODEL:]                     # (1, 32): score of the zero pad row (per-lane)

    # online softmax over the L+1 keys, initialized with the pad row
    m = jnp.broadcast_to(s_pad, (tb, D_MODEL))    # running max
    num = jnp.broadcast_to(v_pad, (tb, D_MODEL))  # running sum p * v
    den = jnp.ones((tb, D_MODEL), jnp.float32)    # running sum p

    for l in range(seq_len):                      # small static unrolled loop
        xl = x[:, l * D_MODEL:(l + 1) * D_MODEL]  # (TB, 32) static lane slice
        yl = _mm(xl, w_vs) + b_vs                 # (TB, 64): [values | per-head scores]
        vl = yl[:, :D_MODEL]
        sl = yl[:, D_MODEL:]                      # head score replicated across its 8 lanes
        m_new = jnp.maximum(m, sl)
        alpha = jnp.exp(m - m_new)
        p = jnp.exp(sl - m_new)
        num = num * alpha + p * vl
        den = den * alpha + p
        m = m_new

    head_out = num / den                          # (TB, 32) == attention output, last query
    a_out = _mm(head_out, w_o_ref[...]) + b_o_ref[...]   # (TB, 32) == ans[:, -1, :]

    # --- gating -------------------------------------------------------------
    g_d = _mm(dis_ref[...], w_dis_ref[...]) + b_dis_ref[...]   # (TB, 64) = [vp | ep]
    g_a = _mm(a_out, w_ans_ref[...]) + b_ans_ref[...]          # (TB, 64) = [vn | en]
    vp, ep = g_d[:, :D_MODEL], g_d[:, D_MODEL:]
    vn, en = g_a[:, :D_MODEL], g_a[:, D_MODEL:]

    m2 = jnp.maximum(ep, en)
    wp = jnp.exp(ep - m2)
    wn = jnp.exp(en - m2)
    out_ref[...] = (vp * wp + vn * wn) / (wp + wn)


def disgate_forward(dis, ans, params, *, block_b=256):
    """dis: (B, 1, 32), ans: (B, L, 32)  ->  (B, 1, 32)"""
    B, L, D = ans.shape
    assert D == D_MODEL and dis.shape == (B, 1, D_MODEL)

    # ---- host-side exact (elementwise) weight folding ----------------------
    inv_sqrt_dk = 1.0 / math.sqrt(D_HEAD)
    bq, bk, wk = params["bq"], params["bk"], params["wk"]
    # w_score[c, d] = sum_{d' in head(d)} Wk[d', c] * bq[d'] / sqrt(d_head)
    per_head_w = (wk * bq[:, None]).reshape(N_HEADS, D_HEAD, D_MODEL).sum(axis=1)   # (4, 32)
    w_score = jnp.repeat(per_head_w, D_HEAD, axis=0).T * inv_sqrt_dk                # (32, 32)
    per_head_c = (bq * bk).reshape(N_HEADS, D_HEAD).sum(axis=1) * inv_sqrt_dk       # (4,)
    s_pad = jnp.repeat(per_head_c, D_HEAD)                                          # (32,)

    w_vs = jnp.concatenate([params["wv"].T, w_score], axis=1)                       # (32, 64)
    b_vs = jnp.concatenate([params["bv"], s_pad])[None, :]                          # (1, 64)
    w_o = params["wo"].T
    b_o = params["bo"][None, :]
    w_dis = jnp.concatenate([params["w_vdis"].T, params["w_gdis"].T], axis=1)       # (32, 64)
    b_dis = jnp.concatenate([params["b_vdis"], params["b_gdis"]])[None, :]
    w_ans = jnp.concatenate([params["w_vans"].T, params["w_gans"].T], axis=1)       # (32, 64)
    b_ans = jnp.concatenate([params["b_vans"], params["b_gans"]])[None, :]

    # ---- batch tiling -------------------------------------------------------
    if B <= block_b:
        tb, bp = B, B
    else:
        tb = max(8, (block_b // 8) * 8)           # multiple of 8 (sublane rule)
        bp = tb * (-(-B // tb))

    ans2 = ans.reshape(B, L * D)                  # contiguous -> free reshape
    dis2 = dis.reshape(B, D)
    if bp != B:
        ans2 = jnp.pad(ans2, ((0, bp - B), (0, 0)))
        dis2 = jnp.pad(dis2, ((0, bp - B), (0, 0)))

    out2 = pl.pallas_call(
        disgate_kernel,
        out_shape=jax.ShapeDtypeStruct((bp, D), jnp.float32),
        grid=(bp // tb,),
        in_specs=[
            pl.BlockSpec((tb, L * D), lambda b: (b, 0)),
            pl.BlockSpec((tb, D), lambda b: (b, 0)),
            pl.BlockSpec((D, 2 * D), lambda b: (0, 0)),
            pl.BlockSpec((1, 2 * D), lambda b: (0, 0)),
            pl.BlockSpec((D, D), lambda b: (0, 0)),
            pl.BlockSpec((1, D), lambda b: (0, 0)),
            pl.BlockSpec((D, 2 * D), lambda b: (0, 0)),
            pl.BlockSpec((1, 2 * D), lambda b: (0, 0)),
            pl.BlockSpec((D, 2 * D), lambda b: (0, 0)),
            pl.BlockSpec((1, 2 * D), lambda b: (0, 0)),
        ],
        out_specs=pl.BlockSpec((tb, D), lambda b: (b, 0)),
        compiler_params=pltpu.CompilerParams(dimension_semantics=("parallel",)),
    )(ans2, dis2, w_vs, b_vs, w_o, b_o, w_dis, b_dis, w_ans, b_ans)

    return out2[:B].reshape(B, 1, D)


# ----------------------- pure-JAX reference (for checking) -----------------------
def ref_forward(dis, ans, p):
    B, L, D = ans.shape
    ans_cat = jnp.concatenate([ans, jnp.zeros((B, 1, D), ans.dtype)], axis=1)

    def linear(x, w, b):
        return jnp.dot(x, w.T, precision=_MM_PREC) + b

    q = linear(ans_cat, p["wq"], p["bq"])
    k = linear(ans_cat, p["wk"], p["bk"])
    v = linear(ans_cat, p["wv"], p["bv"])

    def split(x):
        return x.reshape(B, -1, N_HEADS, D_HEAD).transpose(0, 2, 1, 3)

    qh, kh, vh = split(q), split(k), split(v)
    scores = jnp.einsum("bhqd,bhkd->bhqk", qh, kh,
                        precision=_MM_PREC) / math.sqrt(D_HEAD)
    attn = jax.nn.softmax(scores, axis=-1)
    xo = jnp.einsum("bhqk,bhkd->bhqd", attn, vh, precision=_MM_PREC)
    xo = xo.transpose(0, 2, 1, 3).reshape(B, -1, D)
    a_out = linear(xo, p["wo"], p["bo"])[:, -1:, :]

    vp = linear(dis, p["w_vdis"], p["b_vdis"])
    vn = linear(a_out, p["w_vans"], p["b_vans"])
    ep = linear(dis, p["w_gdis"], p["b_gdis"])
    en = linear(a_out, p["w_gans"], p["b_gans"])
    e = jax.nn.softmax(jnp.stack([ep, en]), axis=0)
    return jnp.sum(jnp.stack([vp, vn]) * e, axis=0)


def make_params(key):
    names = ["wq", "wk", "wv", "wo", "w_vdis", "w_vans", "w_gdis", "w_gans"]
    keys = jax.random.split(key, 2 * len(names))
    params = {}
    for i, n in enumerate(names):
        params[n] = 0.1 * jax.random.normal(keys[2 * i], (D_MODEL, D_MODEL), jnp.float32)
        params["b" + n[1:]] = 0.1 * jax.random.normal(keys[2 * i + 1], (D_MODEL,), jnp.float32)
    return params


if __name__ == "__main__":
    key = jax.random.PRNGKey(0)
    kp, kd, ka = jax.random.split(key, 3)
    params = make_params(kp)

    # primary small test: single batch tile
    B, L = 2, 7
    dis = jax.random.normal(kd, (B, 1, D_MODEL), jnp.float32)
    ans = jax.random.normal(ka, (B, L, D_MODEL), jnp.float32)

    out = jax.block_until_ready(disgate_forward(dis, ans, params))
    ref = ref_forward(dis, ans, params)
    assert out.shape == (B, 1, D_MODEL)
    assert jnp.allclose(out, ref, rtol=1e-4, atol=1e-4), (
        f"max abs err {jnp.max(jnp.abs(out - ref))}")

    # secondary test: multi-block grid with batch padding (B=9, TB=8 -> 2 steps)
    kd2, ka2 = jax.random.split(jax.random.PRNGKey(1))
    B2 = 9
    dis2 = jax.random.normal(kd2, (B2, 1, D_MODEL), jnp.float32)
    ans2 = jax.random.normal(ka2, (B2, L, D_MODEL), jnp.float32)
    out2 = jax.block_until_ready(disgate_forward(dis2, ans2, params, block_b=8))
    ref2 = ref_forward(dis2, ans2, params)
    assert jnp.allclose(out2, ref2, rtol=1e-4, atol=1e-4), (
        f"max abs err {jnp.max(jnp.abs(out2 - ref2))}")

    print("KERNEL_OK")
</pallas_src>

<mosaic_0001>
module attributes {stable_mosaic.version = 11 : i64} {
  func.func @disgate_kernel(%arg0: i32, %arg1: memref<2x224xf32, #tpu.memory_space<vmem>>, %arg2: memref<2x32xf32, #tpu.memory_space<vmem>>, %arg3: memref<32x64xf32, #tpu.memory_space<vmem>>, %arg4: memref<1x64xf32, #tpu.memory_space<vmem>>, %arg5: memref<32x32xf32, #tpu.memory_space<vmem>>, %arg6: memref<1x32xf32, #tpu.memory_space<vmem>>, %arg7: memref<32x64xf32, #tpu.memory_space<vmem>>, %arg8: memref<1x64xf32, #tpu.memory_space<vmem>>, %arg9: memref<32x64xf32, #tpu.memory_space<vmem>>, %arg10: memref<1x64xf32, #tpu.memory_space<vmem>>, %arg11: memref<2x32xf32, #tpu.memory_space<vmem>>) attributes {dimension_semantics = [#tpu.dimension_semantics<parallel>], iteration_bounds = array<i64: 1>, scalar_prefetch = 0 : i64, scratch_operands = 0 : i64, tpu.core_type = #tpu.core_type<tc>, window_params = [{transform_indices = @transform_0, window_bounds = array<i64: 2, 224>}, {transform_indices = @transform_1, window_bounds = array<i64: 2, 32>}, {pipeline_mode = #tpu.pipeline_mode<synchronous>, transform_indices = @transform_2, window_bounds = array<i64: 32, 64>}, {pipeline_mode = #tpu.pipeline_mode<synchronous>, transform_indices = @transform_3, window_bounds = array<i64: 1, 64>}, {pipeline_mode = #tpu.pipeline_mode<synchronous>, transform_indices = @transform_4, window_bounds = array<i64: 32, 32>}, {pipeline_mode = #tpu.pipeline_mode<synchronous>, transform_indices = @transform_5, window_bounds = array<i64: 1, 32>}, {pipeline_mode = #tpu.pipeline_mode<synchronous>, transform_indices = @transform_6, window_bounds = array<i64: 32, 64>}, {pipeline_mode = #tpu.pipeline_mode<synchronous>, transform_indices = @transform_7, window_bounds = array<i64: 1, 64>}, {pipeline_mode = #tpu.pipeline_mode<synchronous>, transform_indices = @transform_8, window_bounds = array<i64: 32, 64>}, {pipeline_mode = #tpu.pipeline_mode<synchronous>, transform_indices = @transform_9, window_bounds = array<i64: 1, 64>}, {transform_indices = @transform_10, window_bounds = array<i64: 2, 32>}]} {
    %c0 = arith.constant 0 : index
    %c0_0 = arith.constant 0 : index
    %0 = vector.load %arg1[%c0, %c0_0] : memref<2x224xf32, #tpu.memory_space<vmem>>, vector<2x224xf32>
    %c0_1 = arith.constant 0 : index
    %c0_2 = arith.constant 0 : index
    %1 = vector.load %arg3[%c0_1, %c0_2] : memref<32x64xf32, #tpu.memory_space<vmem>>, vector<32x64xf32>
    %c0_3 = arith.constant 0 : index
    %c0_4 = arith.constant 0 : index
    %2 = vector.load %arg4[%c0_3, %c0_4] : memref<1x64xf32, #tpu.memory_space<vmem>>, vector<1x64xf32>
    %3 = vector.extract_strided_slice %2 {offsets = [0, 0], sizes = [1, 32], strides = [1, 1]} : vector<1x64xf32> to vector<1x32xf32>
    %4 = vector.extract_strided_slice %2 {offsets = [0, 32], sizes = [1, 32], strides = [1, 1]} : vector<1x64xf32> to vector<1x32xf32>
    %5 = vector.shape_cast %4 : vector<1x32xf32> to vector<1x32xf32>
    %6 = vector.broadcast %5 : vector<1x32xf32> to vector<2x32xf32>
    %7 = vector.shape_cast %3 : vector<1x32xf32> to vector<1x32xf32>
    %8 = vector.broadcast %7 : vector<1x32xf32> to vector<2x32xf32>
    %cst = arith.constant 1.000000e+00 : f32
    %9 = vector.broadcast %cst : f32 to vector<2x32xf32>
    %10 = vector.extract_strided_slice %0 {offsets = [0, 0], sizes = [2, 32], strides = [1, 1]} : vector<2x224xf32> to vector<2x32xf32>
    %cst_5 = arith.constant dense<0.000000e+00> : vector<2x64xf32>
    %11 = tpu.matmul %10, %1, %cst_5 {dimension_numbers = #tpu.dot_dimension_numbers<[1], [0], [0], [1], [0, 0, 1, 1], [], []>, precision = #tpu.contract_precision<fp32>} : vector<2x32xf32>, vector<32x64xf32>, vector<2x64xf32> -> vector<2x64xf32>
    %12 = vector.broadcast %2 : vector<1x64xf32> to vector<2x64xf32>
    %13 = arith.addf %11, %12 : vector<2x64xf32>
    %14 = vector.extract_strided_slice %13 {offsets = [0, 0], sizes = [2, 32], strides = [1, 1]} : vector<2x64xf32> to vector<2x32xf32>
    %15 = vector.extract_strided_slice %13 {offsets = [0, 32], sizes = [2, 32], strides = [1, 1]} : vector<2x64xf32> to vector<2x32xf32>
    %16 = arith.maximumf %6, %15 : vector<2x32xf32>
    %17 = arith.subf %6, %16 : vector<2x32xf32>
    %18 = math.exp %17 : vector<2x32xf32>
    %19 = arith.subf %15, %16 : vector<2x32xf32>
    %20 = math.exp %19 : vector<2x32xf32>
    %21 = arith.mulf %8, %18 : vector<2x32xf32>
    %22 = arith.mulf %20, %14 : vector<2x32xf32>
    %23 = arith.addf %21, %22 : vector<2x32xf32>
    %24 = arith.mulf %9, %18 : vector<2x32xf32>
    %25 = arith.addf %24, %20 : vector<2x32xf32>
    %26 = vector.extract_strided_slice %0 {offsets = [0, 32], sizes = [2, 32], strides = [1, 1]} : vector<2x224xf32> to vector<2x32xf32>
    %cst_6 = arith.constant dense<0.000000e+00> : vector<2x64xf32>
    %27 = tpu.matmul %26, %1, %cst_6 {dimension_numbers = #tpu.dot_dimension_numbers<[1], [0], [0], [1], [0, 0, 1, 1], [], []>, precision = #tpu.contract_precision<fp32>} : vector<2x32xf32>, vector<32x64xf32>, vector<2x64xf32> -> vector<2x64xf32>
    %28 = vector.broadcast %2 : vector<1x64xf32> to vector<2x64xf32>
    %29 = arith.addf %27, %28 : vector<2x64xf32>
    %30 = vector.extract_strided_slice %29 {offsets = [0, 0], sizes = [2, 32], strides = [1, 1]} : vector<2x64xf32> to vector<2x32xf32>
    %31 = vector.extract_strided_slice %29 {offsets = [0, 32], sizes = [2, 32], strides = [1, 1]} : vector<2x64xf32> to vector<2x32xf32>
    %32 = arith.maximumf %16, %31 : vector<2x32xf32>
    %33 = arith.subf %16, %32 : vector<2x32xf32>
    %34 = math.exp %33 : vector<2x32xf32>
    %35 = arith.subf %31, %32 : vector<2x32xf32>
    %36 = math.exp %35 : vector<2x32xf32>
    %37 = arith.mulf %23, %34 : vector<2x32xf32>
    %38 = arith.mulf %36, %30 : vector<2x32xf32>
    %39 = arith.addf %37, %38 : vector<2x32xf32>
    %40 = arith.mulf %25, %34 : vector<2x32xf32>
    %41 = arith.addf %40, %36 : vector<2x32xf32>
    %42 = vector.extract_strided_slice %0 {offsets = [0, 64], sizes = [2, 32], strides = [1, 1]} : vector<2x224xf32> to vector<2x32xf32>
    %cst_7 = arith.constant dense<0.000000e+00> : vector<2x64xf32>
    %43 = tpu.matmul %42, %1, %cst_7 {dimension_numbers = #tpu.dot_dimension_numbers<[1], [0], [0], [1], [0, 0, 1, 1], [], []>, precision = #tpu.contract_precision<fp32>} : vector<2x32xf32>, vector<32x64xf32>, vector<2x64xf32> -> vector<2x64xf32>
    %44 = vector.broadcast %2 : vector<1x64xf32> to vector<2x64xf32>
    %45 = arith.addf %43, %44 : vector<2x64xf32>
    %46 = vector.extract_strided_slice %45 {offsets = [0, 0], sizes = [2, 32], strides = [1, 1]} : vector<2x64xf32> to vector<2x32xf32>
    %47 = vector.extract_strided_slice %45 {offsets = [0, 32], sizes = [2, 32], strides = [1, 1]} : vector<2x64xf32> to vector<2x32xf32>
    %48 = arith.maximumf %32, %47 : vector<2x32xf32>
    %49 = arith.subf %32, %48 : vector<2x32xf32>
    %50 = math.exp %49 : vector<2x32xf32>
    %51 = arith.subf %47, %48 : vector<2x32xf32>
    %52 = math.exp %51 : vector<2x32xf32>
    %53 = arith.mulf %39, %50 : vector<2x32xf32>
    %54 = arith.mulf %52, %46 : vector<2x32xf32>
    %55 = arith.addf %53, %54 : vector<2x32xf32>
    %56 = arith.mulf %41, %50 : vector<2x32xf32>
    %57 = arith.addf %56, %52 : vector<2x32xf32>
    %58 = vector.extract_strided_slice %0 {offsets = [0, 96], sizes = [2, 32], strides = [1, 1]} : vector<2x224xf32> to vector<2x32xf32>
    %cst_8 = arith.constant dense<0.000000e+00> : vector<2x64xf32>
    %59 = tpu.matmul %58, %1, %cst_8 {dimension_numbers = #tpu.dot_dimension_numbers<[1], [0], [0], [1], [0, 0, 1, 1], [], []>, precision = #tpu.contract_precision<fp32>} : vector<2x32xf32>, vector<32x64xf32>, vector<2x64xf32> -> vector<2x64xf32>
    %60 = vector.broadcast %2 : vector<1x64xf32> to vector<2x64xf32>
    %61 = arith.addf %59, %60 : vector<2x64xf32>
    %62 = vector.extract_strided_slice %61 {offsets = [0, 0], sizes = [2, 32], strides = [1, 1]} : vector<2x64xf32> to vector<2x32xf32>
    %63 = vector.extract_strided_slice %61 {offsets = [0, 32], sizes = [2, 32], strides = [1, 1]} : vector<2x64xf32> to vector<2x32xf32>
    %64 = arith.maximumf %48, %63 : vector<2x32xf32>
    %65 = arith.subf %48, %64 : vector<2x32xf32>
    %66 = math.exp %65 : vector<2x32xf32>
    %67 = arith.subf %63, %64 : vector<2x32xf32>
    %68 = math.exp %67 : vector<2x32xf32>
    %69 = arith.mulf %55, %66 : vector<2x32xf32>
    %70 = arith.mulf %68, %62 : vector<2x32xf32>
    %71 = arith.addf %69, %70 : vector<2x32xf32>
    %72 = arith.mulf %57, %66 : vector<2x32xf32>
    %73 = arith.addf %72, %68 : vector<2x32xf32>
    %74 = vector.extract_strided_slice %0 {offsets = [0, 128], sizes = [2, 32], strides = [1, 1]} : vector<2x224xf32> to vector<2x32xf32>
    %cst_9 = arith.constant dense<0.000000e+00> : vector<2x64xf32>
    %75 = tpu.matmul %74, %1, %cst_9 {dimension_numbers = #tpu.dot_dimension_numbers<[1], [0], [0], [1], [0, 0, 1, 1], [], []>, precision = #tpu.contract_precision<fp32>} : vector<2x32xf32>, vector<32x64xf32>, vector<2x64xf32> -> vector<2x64xf32>
    %76 = vector.broadcast %2 : vector<1x64xf32> to vector<2x64xf32>
    %77 = arith.addf %75, %76 : vector<2x64xf32>
    %78 = vector.extract_strided_slice %77 {offsets = [0, 0], sizes = [2, 32], strides = [1, 1]} : vector<2x64xf32> to vector<2x32xf32>
    %79 = vector.extract_strided_slice %77 {offsets = [0, 32], sizes = [2, 32], strides = [1, 1]} : vector<2x64xf32> to vector<2x32xf32>
    %80 = arith.maximumf %64, %79 : vector<2x32xf32>
    %81 = arith.subf %64, %80 : vector<2x32xf32>
    %82 = math.exp %81 : vector<2x32xf32>
    %83 = arith.subf %79, %80 : vector<2x32xf32>
    %84 = math.exp %83 : vector<2x32xf32>
    %85 = arith.mulf %71, %82 : vector<2x32xf32>
    %86 = arith.mulf %84, %78 : vector<2x32xf32>
    %87 = arith.addf %85, %86 : vector<2x32xf32>
    %88 = arith.mulf %73, %82 : vector<2x32xf32>
    %89 = arith.addf %88, %84 : vector<2x32xf32>
    %90 = vector.extract_strided_slice %0 {offsets = [0, 160], sizes = [2, 32], strides = [1, 1]} : vector<2x224xf32> to vector<2x32xf32>
    %cst_10 = arith.constant dense<0.000000e+00> : vector<2x64xf32>
    %91 = tpu.matmul %90, %1, %cst_10 {dimension_numbers = #tpu.dot_dimension_numbers<[1], [0], [0], [1], [0, 0, 1, 1], [], []>, precision = #tpu.contract_precision<fp32>} : vector<2x32xf32>, vector<32x64xf32>, vector<2x64xf32> -> vector<2x64xf32>
    %92 = vector.broadcast %2 : vector<1x64xf32> to vector<2x64xf32>
    %93 = arith.addf %91, %92 : vector<2x64xf32>
    %94 = vector.extract_strided_slice %93 {offsets = [0, 0], sizes = [2, 32], strides = [1, 1]} : vector<2x64xf32> to vector<2x32xf32>
    %95 = vector.extract_strided_slice %93 {offsets = [0, 32], sizes = [2, 32], strides = [1, 1]} : vector<2x64xf32> to vector<2x32xf32>
    %96 = arith.maximumf %80, %95 : vector<2x32xf32>
    %97 = arith.subf %80, %96 : vector<2x32xf32>
    %98 = math.exp %97 : vector<2x32xf32>
    %99 = arith.subf %95, %96 : vector<2x32xf32>
    %100 = math.exp %99 : vector<2x32xf32>
    %101 = arith.mulf %87, %98 : vector<2x32xf32>
    %102 = arith.mulf %100, %94 : vector<2x32xf32>
    %103 = arith.addf %101, %102 : vector<2x32xf32>
    %104 = arith.mulf %89, %98 : vector<2x32xf32>
    %105 = arith.addf %104, %100 : vector<2x32xf32>
    %106 = vector.extract_strided_slice %0 {offsets = [0, 192], sizes = [2, 32], strides = [1, 1]} : vector<2x224xf32> to vector<2x32xf32>
    %cst_11 = arith.constant dense<0.000000e+00> : vector<2x64xf32>
    %107 = tpu.matmul %106, %1, %cst_11 {dimension_numbers = #tpu.dot_dimension_numbers<[1], [0], [0], [1], [0, 0, 1, 1], [], []>, precision = #tpu.contract_precision<fp32>} : vector<2x32xf32>, vector<32x64xf32>, vector<2x64xf32> -> vector<2x64xf32>
    %108 = vector.broadcast %2 : vector<1x64xf32> to vector<2x64xf32>
    %109 = arith.addf %107, %108 : vector<2x64xf32>
    %110 = vector.extract_strided_slice %109 {offsets = [0, 0], sizes = [2, 32], strides = [1, 1]} : vector<2x64xf32> to vector<2x32xf32>
    %111 = vector.extract_strided_slice %109 {offsets = [0, 32], sizes = [2, 32], strides = [1, 1]} : vector<2x64xf32> to vector<2x32xf32>
    %112 = arith.maximumf %96, %111 : vector<2x32xf32>
    %113 = arith.subf %96, %112 : vector<2x32xf32>
    %114 = math.exp %113 : vector<2x32xf32>
    %115 = arith.subf %111, %112 : vector<2x32xf32>
    %116 = math.exp %115 : vector<2x32xf32>
    %117 = arith.mulf %103, %114 : vector<2x32xf32>
    %118 = arith.mulf %116, %110 : vector<2x32xf32>
    %119 = arith.addf %117, %118 : vector<2x32xf32>
    %120 = arith.mulf %105, %114 : vector<2x32xf32>
    %121 = arith.addf %120, %116 : vector<2x32xf32>
    %122 = arith.divf %119, %121 : vector<2x32xf32>
    %c0_12 = arith.constant 0 : index
    %c0_13 = arith.constant 0 : index
    %123 = vector.load %arg5[%c0_12, %c0_13] : memref<32x32xf32, #tpu.memory_space<vmem>>, vector<32x32xf32>
    %cst_14 = arith.constant dense<0.000000e+00> : vector<2x32xf32>
    %124 = tpu.matmul %122, %123, %cst_14 {dimension_numbers = #tpu.dot_dimension_numbers<[1], [0], [0], [1], [0, 0, 1, 1], [], []>, precision = #tpu.contract_precision<fp32>} : vector<2x32xf32>, vector<32x32xf32>, vector<2x32xf32> -> vector<2x32xf32>
    %c0_15 = arith.constant 0 : index
    %c0_16 = arith.constant 0 : index
    %125 = vector.load %arg6[%c0_15, %c0_16] : memref<1x32xf32, #tpu.memory_space<vmem>>, vector<1x32xf32>
    %126 = vector.broadcast %125 : vector<1x32xf32> to vector<2x32xf32>
    %127 = arith.addf %124, %126 : vector<2x32xf32>
    %c0_17 = arith.constant 0 : index
    %c0_18 = arith.constant 0 : index
    %128 = vector.load %arg2[%c0_17, %c0_18] : memref<2x32xf32, #tpu.memory_space<vmem>>, vector<2x32xf32>
    %c0_19 = arith.constant 0 : index
    %c0_20 = arith.constant 0 : index
    %129 = vector.load %arg7[%c0_19, %c0_20] : memref<32x64xf32, #tpu.memory_space<vmem>>, vector<32x64xf32>
    %cst_21 = arith.constant dense<0.000000e+00> : vector<2x64xf32>
    %130 = tpu.matmul %128, %129, %cst_21 {dimension_numbers = #tpu.dot_dimension_numbers<[1], [0], [0], [1], [0, 0, 1, 1], [], []>, precision = #tpu.contract_precision<fp32>} : vector<2x32xf32>, vector<32x64xf32>, vector<2x64xf32> -> vector<2x64xf32>
    %c0_22 = arith.constant 0 : index
    %c0_23 = arith.constant 0 : index
    %131 = vector.load %arg8[%c0_22, %c0_23] : memref<1x64xf32, #tpu.memory_space<vmem>>, vector<1x64xf32>
    %132 = vector.broadcast %131 : vector<1x64xf32> to vector<2x64xf32>
    %133 = arith.addf %130, %132 : vector<2x64xf32>
    %c0_24 = arith.constant 0 : index
    %c0_25 = arith.constant 0 : index
    %134 = vector.load %arg9[%c0_24, %c0_25] : memref<32x64xf32, #tpu.memory_space<vmem>>, vector<32x64xf32>
    %cst_26 = arith.constant dense<0.000000e+00> : vector<2x64xf32>
    %135 = tpu.matmul %127, %134, %cst_26 {dimension_numbers = #tpu.dot_dimension_numbers<[1], [0], [0], [1], [0, 0, 1, 1], [], []>, precision = #tpu.contract_precision<fp32>} : vector<2x32xf32>, vector<32x64xf32>, vector<2x64xf32> -> vector<2x64xf32>
    %c0_27 = arith.constant 0 : index
    %c0_28 = arith.constant 0 : index
    %136 = vector.load %arg10[%c0_27, %c0_28] : memref<1x64xf32, #tpu.memory_space<vmem>>, vector<1x64xf32>
    %137 = vector.broadcast %136 : vector<1x64xf32> to vector<2x64xf32>
    %138 = arith.addf %135, %137 : vector<2x64xf32>
    %139 = vector.extract_strided_slice %133 {offsets = [0, 0], sizes = [2, 32], strides = [1, 1]} : vector<2x64xf32> to vector<2x32xf32>
    %140 = vector.extract_strided_slice %133 {offsets = [0, 32], sizes = [2, 32], strides = [1, 1]} : vector<2x64xf32> to vector<2x32xf32>
    %141 = vector.extract_strided_slice %138 {offsets = [0, 0], sizes = [2, 32], strides = [1, 1]} : vector<2x64xf32> to vector<2x32xf32>
    %142 = vector.extract_strided_slice %138 {offsets = [0, 32], sizes = [2, 32], strides = [1, 1]} : vector<2x64xf32> to vector<2x32xf32>
    %143 = arith.maximumf %140, %142 : vector<2x32xf32>
    %144 = arith.subf %140, %143 : vector<2x32xf32>
    %145 = math.exp %144 : vector<2x32xf32>
    %146 = arith.subf %142, %143 : vector<2x32xf32>
    %147 = math.exp %146 : vector<2x32xf32>
    %148 = arith.mulf %139, %145 : vector<2x32xf32>
    %149 = arith.mulf %141, %147 : vector<2x32xf32>
    %150 = arith.addf %148, %149 : vector<2x32xf32>
    %151 = arith.addf %145, %147 : vector<2x32xf32>
    %152 = arith.divf %150, %151 : vector<2x32xf32>
    %c0_29 = arith.constant 0 : index
    %c0_30 = arith.constant 0 : index
    %153 = vector.load %arg11[%c0_29, %c0_30] : memref<2x32xf32, #tpu.memory_space<vmem>>, vector<2x32xf32>
    tpu.vector_store %arg11[%c0_29, %c0_30], %152 {strides = array<i32>} : memref<2x32xf32, #tpu.memory_space<vmem>>, vector<2x32xf32>,
    return
  }
  func.func @transform_0(%arg0: i32) -> (i32, i32) {
    %c0_i32 = arith.constant 0 : i32
    %c0_i32_0 = arith.constant 0 : i32
    return %arg0, %c0_i32 : i32, i32
  }
  func.func @transform_1(%arg0: i32) -> (i32, i32) {
    %c0_i32 = arith.constant 0 : i32
    %c0_i32_0 = arith.constant 0 : i32
    return %arg0, %c0_i32 : i32, i32
  }
  func.func @transform_2(%arg0: i32) -> (i32, i32) {
    %c0_i32 = arith.constant 0 : i32
    %c0_i32_0 = arith.constant 0 : i32
    %c0_i32_1 = arith.constant 0 : i32
    return %c0_i32, %c0_i32_0 : i32, i32
  }
  func.func @transform_3(%arg0: i32) -> (i32, i32) {
    %c0_i32 = arith.constant 0 : i32
    %c0_i32_0 = arith.constant 0 : i32
    %c0_i32_1 = arith.constant 0 : i32
    return %c0_i32, %c0_i32_0 : i32, i32
  }
  func.func @transform_4(%arg0: i32) -> (i32, i32) {
    %c0_i32 = arith.constant 0 : i32
    %c0_i32_0 = arith.constant 0 : i32
    %c0_i32_1 = arith.constant 0 : i32
    return %c0_i32, %c0_i32_0 : i32, i32
  }
  func.func @transform_5(%arg0: i32) -> (i32, i32) {
    %c0_i32 = arith.constant 0 : i32
    %c0_i32_0 = arith.constant 0 : i32
    %c0_i32_1 = arith.constant 0 : i32
    return %c0_i32, %c0_i32_0 : i32, i32
  }
  func.func @transform_6(%arg0: i32) -> (i32, i32) {
    %c0_i32 = arith.constant 0 : i32
    %c0_i32_0 = arith.constant 0 : i32
    %c0_i32_1 = arith.constant 0 : i32
    return %c0_i32, %c0_i32_0 : i32, i32
  }
  func.func @transform_7(%arg0: i32) -> (i32, i32) {
    %c0_i32 = arith.constant 0 : i32
    %c0_i32_0 = arith.constant 0 : i32
    %c0_i32_1 = arith.constant 0 : i32
    return %c0_i32, %c0_i32_0 : i32, i32
  }
  func.func @transform_8(%arg0: i32) -> (i32, i32) {
    %c0_i32 = arith.constant 0 : i32
    %c0_i32_0 = arith.constant 0 : i32
    %c0_i32_1 = arith.constant 0 : i32
    return %c0_i32, %c0_i32_0 : i32, i32
  }
  func.func @transform_9(%arg0: i32) -> (i32, i32) {
    %c0_i32 = arith.constant 0 : i32
    %c0_i32_0 = arith.constant 0 : i32
    %c0_i32_1 = arith.constant 0 : i32
    return %c0_i32, %c0_i32_0 : i32, i32
  }
  func.func @transform_10(%arg0: i32) -> (i32, i32) {
    %c0_i32 = arith.constant 0 : i32
    %c0_i32_0 = arith.constant 0 : i32
    return %arg0, %c0_i32 : i32, i32
  }
}

</mosaic_0001>

<llo_original>
// kernel: tpu_custom_call.1
$region0: #{tpu_custom_call.1}
  #allocation0 [shape = 'u32[]', space=smem, size = 0x4, offset = 0x4, fixed_abs, tag = 'smem constant byte address 0x4 - core index']
  #allocation1 [shape = 'u32[144,128]{1,0:T(1,128)}', space=vmem, size = 0x12000, scoped, tag = 'internal scratch']
  %s0 = inlined_call_operand.hbm [shape: f32[2,224], index: 0, kind: input, shape index: {}]
  %s1 = inlined_call_operand.hbm [shape: f32[2,32], index: 1, kind: input, shape index: {}]
  %s2 = inlined_call_operand.hbm [shape: f32[32,64], index: 2, kind: input, shape index: {}]
  %s3 = inlined_call_operand.vmem [shape: f32[1,64], index: 3, kind: input, shape index: {}]
  %s4 = inlined_call_operand.hbm [shape: f32[32,32], index: 4, kind: input, shape index: {}]
  %s5 = inlined_call_operand.vmem [shape: f32[1,32], index: 5, kind: input, shape index: {}]
  %s6 = inlined_call_operand.hbm [shape: f32[32,64], index: 6, kind: input, shape index: {}]
  %s7 = inlined_call_operand.vmem [shape: f32[1,64], index: 7, kind: input, shape index: {}]
  %s8 = inlined_call_operand.hbm [shape: f32[32,64], index: 8, kind: input, shape index: {}]
  %s9 = inlined_call_operand.vmem [shape: f32[1,64], index: 9, kind: input, shape index: {}]
  %s10 = inlined_call_operand.hbm [shape: f32[2,32], index: 10, kind: output, shape index: {}]
  %s11 = sld [smem:[#allocation0]]
  $region74: #{tpu_custom_call.1} parent=0
    _
  %s13 = ssub.s32 1, %s11
  %s14 = scalar_select 0, %s13, %s11
  $region1: #{tpu_custom_call.1} parent=0
    #allocation2 [shape = 'u8[2048]{0}', space=vmem, size = 0x800, scoped, tag = 'input window, operand 0, single buffered']
    #allocation3 [shape = 's32[1]{0}', space=sflag, size = 0x4, scoped, tag = 'scoped memory for tpu_custom_call.1']
    #allocation4 [shape = 's32[1]{0}', space=sflag, size = 0x4, scoped, tag = 'scoped memory for tpu_custom_call.1']
    #allocation5 [shape = 'u8[1024]{0}', space=vmem, size = 0x400, scoped, tag = 'input window, operand 1, single buffered']
    #allocation6 [shape = 's32[1]{0}', space=sflag, size = 0x4, scoped, tag = 'scoped memory for tpu_custom_call.1']
    #allocation7 [shape = 'u8[16384]{0}', space=vmem, size = 0x4000, scoped, tag = 'input window, operand 2, single buffered']
    #allocation8 [shape = 'u8[16384]{0}', space=vmem, size = 0x4000, scoped, tag = 'input window, operand 4, single buffered']
    #allocation9 [shape = 's32[1]{0}', space=sflag, size = 0x4, scoped, tag = 'scoped memory for tpu_custom_call.1']
    #allocation10 [shape = 'u8[16384]{0}', space=vmem, size = 0x4000, scoped, tag = 'input window, operand 6, single buffered']
    #allocation11 [shape = 'u8[16384]{0}', space=vmem, size = 0x4000, scoped, tag = 'input window, operand 8, single buffered']
    #allocation12 [shape = 's32[1]{0}', space=sflag, size = 0x4, scoped, tag = 'scoped memory for tpu_custom_call.1']
    #allocation13 [shape = 'u8[1024]{0}', space=vmem, size = 0x400, scoped, tag = 'output window, operand 0, single buffered']
    %15 = vsyncpa [#allocation3], 0
    %16 = vsyncpa [#allocation6], 0
    %17 = vsyncpa [#allocation9], 0
    %18 = vsyncpa [#allocation12], 0
    %19 = vsyncpa [#allocation4], 0
    // Predicated region
    $region2: #{tpu_custom_call.1} parent=1 // pred_check
      _
    $region3: #{tpu_custom_call.1} parent=1 // pred_check_branch
      %21 = sbr.rel (0) target = $region5
    $region4: #{tpu_custom_call.1} parent=1 // pred_region
      %s23 = ssub.s32 64, 64
      %24 = vsyncadd [#allocation3], %s23
      %s26 = sshll.u32 [#allocation2], 4
      %s27 = int_to_ptr.vmem [resolvable:$true] %s26
      %29 = dma.hbm_to_vmem [thread:$0]  %s0, 64, %s27, [#allocation3]
    $region5: #{tpu_custom_call.1} parent=1 // pred_fallthru
      _
    // Predicated region
    $region6: #{tpu_custom_call.1} parent=1 // pred_check
      _
    $region7: #{tpu_custom_call.1} parent=1 // pred_check_branch
      %31 = sbr.rel (0) target = $region9
    $region8: #{tpu_custom_call.1} parent=1 // pred_region
      %s33 = ssub.s32 32, 32
      %34 = vsyncadd [#allocation6], %s33
      %s36 = sshll.u32 [#allocation5], 4
      %s37 = int_to_ptr.vmem [resolvable:$true] %s36
      %39 = dma.hbm_to_vmem [thread:$0]  %s1, 32, %s37, [#allocation6]
    $region9: #{tpu_custom_call.1} parent=1 // pred_fallthru
      _
    // Predicated region
    $region10: #{tpu_custom_call.1} parent=1 // pred_check
      _
    $region11: #{tpu_custom_call.1} parent=1 // pred_check_branch
      %41 = sbr.rel (0) target = $region13
    $region12: #{tpu_custom_call.1} parent=1 // pred_region
      %s43 = ssub.s32 512, 512
      %44 = vsyncadd [#allocation6], %s43
      %s45 = sshll.u32 [#allocation7], 4
      %s46 = int_to_ptr.vmem [resolvable:$true] %s45
      %51 = dma.hbm_to_vmem [thread:$0]  %s2, 512, %s46, [#allocation6], 128, 128, 8
    $region13: #{tpu_custom_call.1} parent=1 // pred_fallthru
      _
    // Predicated region
    $region14: #{tpu_custom_call.1} parent=1 // pred_check
      _
    $region15: #{tpu_custom_call.1} parent=1 // pred_check_branch
      %53 = sbr.rel (0) target = $region17
    $region16: #{tpu_custom_call.1} parent=1 // pred_region
      _
    $region17: #{tpu_custom_call.1} parent=1 // pred_fallthru
      _
    // Predicated region
    $region18: #{tpu_custom_call.1} parent=1 // pred_check
      _
    $region19: #{tpu_custom_call.1} parent=1 // pred_check_branch
      %55 = sbr.rel (0) target = $region21
    $region20: #{tpu_custom_call.1} parent=1 // pred_region
      %s57 = ssub.s32 512, 512
      %58 = vsyncadd [#allocation9], %s57
      %s59 = sshll.u32 [#allocation8], 4
      %s60 = int_to_ptr.vmem [resolvable:$true] %s59
      %65 = dma.hbm_to_vmem [thread:$0]  %s4, 512, %s60, [#allocation9], 128, 128, 8
    $region21: #{tpu_custom_call.1} parent=1 // pred_fallthru
      _
    // Predicated region
    $region22: #{tpu_custom_call.1} parent=1 // pred_check
      _
    $region23: #{tpu_custom_call.1} parent=1 // pred_check_branch
      %67 = sbr.rel (0) target = $region25
    $region24: #{tpu_custom_call.1} parent=1 // pred_region
      _
    $region25: #{tpu_custom_call.1} parent=1 // pred_fallthru
      _
    // Predicated region
    $region26: #{tpu_custom_call.1} parent=1 // pred_check
      _
    $region27: #{tpu_custom_call.1} parent=1 // pred_check_branch
      %69 = sbr.rel (0) target = $region29
    $region28: #{tpu_custom_call.1} parent=1 // pred_region
      %s71 = ssub.s32 512, 512
      %72 = vsyncadd [#allocation9], %s71
      %s73 = sshll.u32 [#allocation10], 4
      %s74 = int_to_ptr.vmem [resolvable:$true] %s73
      %79 = dma.hbm_to_vmem [thread:$0]  %s6, 512, %s74, [#allocation9], 128, 128, 8
    $region29: #{tpu_custom_call.1} parent=1 // pred_fallthru
      _
    // Predicated region
    $region30: #{tpu_custom_call.1} parent=1 // pred_check
      _
    $region31: #{tpu_custom_call.1} parent=1 // pred_check_branch
      %81 = sbr.rel (0) target = $region33
    $region32: #{tpu_custom_call.1} parent=1 // pred_region
      _
    $region33: #{tpu_custom_call.1} parent=1 // pred_fallthru
      _
    // Predicated region
    $region34: #{tpu_custom_call.1} parent=1 // pred_check
      _
    $region35: #{tpu_custom_call.1} parent=1 // pred_check_branch
      %83 = sbr.rel (0) target = $region37
    $region36: #{tpu_custom_call.1} parent=1 // pred_region
      %s85 = ssub.s32 512, 512
      %86 = vsyncadd [#allocation12], %s85
      %s87 = sshll.u32 [#allocation11], 4
      %s88 = int_to_ptr.vmem [resolvable:$true] %s87
      %93 = dma.hbm_to_vmem [thread:$0]  %s8, 512, %s88, [#allocation12], 128, 128, 8
    $region37: #{tpu_custom_call.1} parent=1 // pred_fallthru
      _
    // Predicated region
    $region38: #{tpu_custom_call.1} parent=1 // pred_check
      _
    $region39: #{tpu_custom_call.1} parent=1 // pred_check_branch
      %95 = sbr.rel (0) target = $region41
    $region40: #{tpu_custom_call.1} parent=1 // pred_region
      _
    $region41: #{tpu_custom_call.1} parent=1 // pred_fallthru
      _
    // Predicated region
    $region42: #{tpu_custom_call.1} parent=1 // pred_check
      _
    $region43: #{tpu_custom_call.1} parent=1 // pred_check_branch
      %97 = sbr.rel (0) target = $region45
    $region44: #{tpu_custom_call.1} parent=1 // pred_region
      %98 = dma.done [#allocation3], 64
    $region45: #{tpu_custom_call.1} parent=1 // pred_fallthru
      _
    // Predicated region
    $region46: #{tpu_custom_call.1} parent=1 // pred_check
      _
    $region47: #{tpu_custom_call.1} parent=1 // pred_check_branch
      %100 = sbr.rel (0) target = $region49
    $region48: #{tpu_custom_call.1} parent=1 // pred_region
      %101 = dma.done [#allocation6], 32
    $region49: #{tpu_custom_call.1} parent=1 // pred_fallthru
      _
    // Predicated region
    $region50: #{tpu_custom_call.1} parent=1 // pred_check
      _
    $region51: #{tpu_custom_call.1} parent=1 // pred_check_branch
      %103 = sbr.rel (0) target = $region53
    $region52: #{tpu_custom_call.1} parent=1 // pred_region
      %104 = dma.done [#allocation6], 512
    $region53: #{tpu_custom_call.1} parent=1 // pred_fallthru
      _
    // Predicated region
    $region54: #{tpu_custom_call.1} parent=1 // pred_check
      _
    $region55: #{tpu_custom_call.1} parent=1 // pred_check_branch
      %106 = sbr.rel (0) target = $region57
    $region56: #{tpu_custom_call.1} parent=1 // pred_region
      %107 = dma.done [#allocation9], 512
    $region57: #{tpu_custom_call.1} parent=1 // pred_fallthru
      _
    // Predicated region
    $region58: #{tpu_custom_call.1} parent=1 // pred_check
      _
    $region59: #{tpu_custom_call.1} parent=1 // pred_check_branch
      %109 = sbr.rel (0) target = $region61
    $region60: #{tpu_custom_call.1} parent=1 // pred_region
      %110 = dma.done [#allocation9], 512
    $region61: #{tpu_custom_call.1} parent=1 // pred_fallthru
      _
    // Predicated region
    $region62: #{tpu_custom_call.1} parent=1 // pred_check
      _
    $region63: #{tpu_custom_call.1} parent=1 // pred_check_branch
      %112 = sbr.rel (0) target = $region65
    $region64: #{tpu_custom_call.1} parent=1 // pred_region
      %113 = dma.done [#allocation12], 512
    $region65: #{tpu_custom_call.1} parent=1 // pred_fallthru
      _
    %v114 = vld [vmem:[#allocation2] sm:$0xf]
    %v115 = vld [vmem:[#allocation7] sm:$0xff]
    %v116 = vld [vmem:[#allocation7 + $0x8] sm:$0xff]
    %v117 = vld [vmem:[#allocation7 + $0x10] sm:$0xff]
    %v118 = vld [vmem:[#allocation7 + $0x18] sm:$0xff]
    %v119 = vld [vmem:[%s3] sm:$0x1]
    %v121 = vlaneseq
    %v122 = vshrl.u32 %v121, 7
    %v123 = vsub.s32 0, %v122
    %v124 = vrot.slane %v119, %v123
    %vm126 = vcmask 261120
    %v128 = vsel %vm126, %v114, 0
    %130 = vmatprep.subr.mxu0 0.0
    %131 = vmatpush1.msra.mxu0 0.0
    %132 = vmatprep.subr.mxu0 0.0
    %133 = vmatpush1.msra.mxu0 0.0
    %134 = vmatprep.subr.mxu0 0.0
    %135 = vmatpush1.msra.mxu0 0.0
    %136 = vmatprep.subr.mxu0 0.0
    %137 = vmatpush1.msra.mxu0 0.0
    %138 = vmatprep.subr.mxu0 0.0
    %139 = vmatpush1.msra.mxu0 0.0
    %140 = vmatprep.subr.mxu0 0.0
    %141 = vmatpush1.msra.mxu0 0.0
    %142 = vmatprep.subr.mxu0 0.0
    %143 = vmatpush1.msra.mxu0 0.0
    %144 = vmatprep.subr.mxu0 0.0
    %145 = vmatpush1.msra.mxu0 0.0
    %146 = vmatprep.subr.mxu0 0.0
    %147 = vmatpush1.msra.mxu0 0.0
    %148 = vmatprep.subr.mxu0 0.0
    %149 = vmatpush1.msra.mxu0 0.0
    %150 = vmatprep.subr.mxu0 0.0
    %151 = vmatpush1.msra.mxu0 0.0
    %152 = vmatprep.subr.mxu0 0.0
    %153 = vmatpush1.msra.mxu0 0.0
    %154 = vmatprep.subr.mxu0 0.0
    %v155 = vand.u32 %v118, 4294901760
    %156 = vmatpush1.msra.mxu0 %v155
    %157 = vmatprep.subr.mxu0 0.0
    %v158 = vand.u32 %v117, 4294901760
    %159 = vmatpush1.msra.mxu0 %v158
    %160 = vmatprep.subr.mxu0 0.0
    %v161 = vand.u32 %v116, 4294901760
    %162 = vmatpush1.msra.mxu0 %v161
    %163 = vmatprep.subr.mxu0 0.0
    %v164 = vand.u32 %v115, 4294901760
    %165 = vmatpush1.msra.mxu0 %v164
    %166 = vmatprep.subr.mxu0 0.0
    %167 = vmatpush2.msra.mxu0 0.0
    %168 = vmatprep.subr.mxu0 0.0
    %169 = vmatpush2.msra.mxu0 0.0
    %170 = vmatprep.subr.mxu0 0.0
    %171 = vmatpush2.msra.mxu0 0.0
    %172 = vmatprep.subr.mxu0 0.0
    %173 = vmatpush2.msra.mxu0 0.0
    %174 = vmatprep.subr.mxu0 0.0
    %175 = vmatpush2.msra.mxu0 0.0
    %176 = vmatprep.subr.mxu0 0.0
    %177 = vmatpush2.msra.mxu0 0.0
    %178 = vmatprep.subr.mxu0 0.0
    %179 = vmatpush2.msra.mxu0 0.0
    %180 = vmatprep.subr.mxu0 0.0
    %181 = vmatpush2.msra.mxu0 0.0
    %182 = vmatprep.subr.mxu0 0.0
    %183 = vmatpush2.msra.mxu0 0.0
    %184 = vmatprep.subr.mxu0 0.0
    %185 = vmatpush2.msra.mxu0 0.0
    %186 = vmatprep.subr.mxu0 0.0
    %187 = vmatpush2.msra.mxu0 0.0
    %188 = vmatprep.subr.mxu0 0.0
    %189 = vmatpush2.msra.mxu0 0.0
    %190 = vmatprep.subr.mxu0 0.0
    %191 = vmatpush2.msra.mxu0 0.0
    %192 = vmatprep.subr.mxu0 0.0
    %193 = vmatpush2.msra.mxu0 0.0
    %194 = vmatprep.subr.mxu0 0.0
    %195 = vmatpush2.msra.mxu0 0.0
    %196 = vmatprep.subr.mxu0 0.0
    %197 = vmatpush2.msra.mxu0 0.0
    %198 = vmatprep.mubr.f32.mxu0 0.0
    %v199 = vand.u32 %v128, 4294901760
    %v200 = vsub.f32 %v128, %v199
    %v201 = vand.u32 %v200, 4294901760
    %v202 = vsub.f32 %v200, %v201
    %v203 = vand.u32 %v202, 4294901760
    %204 = vmatmul.mubr.f32.gmra.mxu0 %v203
    %v205 = vpop.f32.mrf.mxu0
    %v206 = vadd.f32 %v124, %v205
    %v207 = vpop.f32.mrf.mxu0
    %208 = vdwg.mxu0
    %209 = vmatprep.subr.mxu0 0.0
    %210 = vmatpush1.msra.mxu0 0.0
    %211 = vmatprep.subr.mxu0 0.0
    %212 = vmatpush1.msra.mxu0 0.0
    %213 = vmatprep.subr.mxu0 0.0
    %214 = vmatpush1.msra.mxu0 0.0
    %215 = vmatprep.subr.mxu0 0.0
    %216 = vmatpush1.msra.mxu0 0.0
    %217 = vmatprep.subr.mxu0 0.0
    %218 = vmatpush1.msra.mxu0 0.0
    %219 = vmatprep.subr.mxu0 0.0
    %220 = vmatpush1.msra.mxu0 0.0
    %221 = vmatprep.subr.mxu0 0.0
    %222 = vmatpush1.msra.mxu0 0.0
    %223 = vmatprep.subr.mxu0 0.0
    %224 = vmatpush1.msra.mxu0 0.0
    %225 = vmatprep.subr.mxu0 0.0
    %226 = vmatpush1.msra.mxu0 0.0
    %227 = vmatprep.subr.mxu0 0.0
    %228 = vmatpush1.msra.mxu0 0.0
    %229 = vmatprep.subr.mxu0 0.0
    %230 = vmatpush1.msra.mxu0 0.0
    %231 = vmatprep.subr.mxu0 0.0
    %232 = vmatpush1.msra.mxu0 0.0
    %233 = vmatprep.subr.mxu0 0.0
    %v234 = vand.u32 %v118, 4294901760
    %v235 = vsub.f32 %v118, %v234
    %v236 = vand.u32 %v235, 4294901760
    %v237 = vsub.f32 %v235, %v236
    %v238 = vand.u32 %v237, 4294901760
    %239 = vmatpush1.msra.mxu0 %v238
    %240 = vmatprep.subr.mxu0 0.0
    %v241 = vand.u32 %v117, 4294901760
    %v242 = vsub.f32 %v117, %v241
    %v243 = vand.u32 %v242, 4294901760
    %v244 = vsub.f32 %v242, %v243
    %v245 = vand.u32 %v244, 4294901760
    %246 = vmatpush1.msra.mxu0 %v245
    %247 = vmatprep.subr.mxu0 0.0
    %v248 = vand.u32 %v116, 4294901760
    %v249 = vsub.f32 %v116, %v248
    %v250 = vand.u32 %v249, 4294901760
    %v251 = vsub.f32 %v249, %v250
    %v252 = vand.u32 %v251, 4294901760
    %253 = vmatpush1.msra.mxu0 %v252
    %254 = vmatprep.subr.mxu0 0.0
    %v255 = vand.u32 %v115, 4294901760
    %v256 = vsub.f32 %v115, %v255
    %v257 = vand.u32 %v256, 4294901760
    %v258 = vsub.f32 %v256, %v257
    %v259 = vand.u32 %v258, 4294901760
    %260 = vmatpush1.msra.mxu0 %v259
    %261 = vmatprep.subr.mxu0 0.0
    %262 = vmatpush2.msra.mxu0 0.0
    %263 = vmatprep.subr.mxu0 0.0
    %264 = vmatpush2.msra.mxu0 0.0
    %265 = vmatprep.subr.mxu0 0.0
    %266 = vmatpush2.msra.mxu0 0.0
    %267 = vmatprep.subr.mxu0 0.0
    %268 = vmatpush2.msra.mxu0 0.0
    %269 = vmatprep.subr.mxu0 0.0
    %270 = vmatpush2.msra.mxu0 0.0
    %271 = vmatprep.subr.mxu0 0.0
    %272 = vmatpush2.msra.mxu0 0.0
    %273 = vmatprep.subr.mxu0 0.0
    %274 = vmatpush2.msra.mxu0 0.0
    %275 = vmatprep.subr.mxu0 0.0
    %276 = vmatpush2.msra.mxu0 0.0
    %277 = vmatprep.subr.mxu0 0.0
    %278 = vmatpush2.msra.mxu0 0.0
    %279 = vmatprep.subr.mxu0 0.0
    %280 = vmatpush2.msra.mxu0 0.0
    %281 = vmatprep.subr.mxu0 0.0
    %282 = vmatpush2.msra.mxu0 0.0
    %283 = vmatprep.subr.mxu0 0.0
    %284 = vmatpush2.msra.mxu0 0.0
    %285 = vmatprep.subr.mxu0 0.0
    %286 = vmatpush2.msra.mxu0 0.0
    %287 = vmatprep.subr.mxu0 0.0
    %288 = vmatpush2.msra.mxu0 0.0
    %289 = vmatprep.subr.mxu0 0.0
    %290 = vmatpush2.msra.mxu0 0.0
    %291 = vmatprep.subr.mxu0 0.0
    %292 = vmatpush2.msra.mxu0 0.0
    %293 = vmatprep.mubr.f32.mxu0 0.0
    %v294 = vand.u32 %v128, 4294901760
    %295 = vmatmul.mubr.f32.gmra.mxu0 %v294
    %v296 = vpop.f32.mrf.mxu0
    %v297 = vadd.f32 %v206, %v296
    %v298 = vpop.f32.mrf.mxu0
    %299 = vdwg.mxu0
    %300 = vmatprep.subr.mxu0 0.0
    %301 = vmatpush1.msra.mxu0 0.0
    %302 = vmatprep.subr.mxu0 0.0
    %303 = vmatpush1.msra.mxu0 0.0
    %304 = vmatprep.subr.mxu0 0.0
    %305 = vmatpush1.msra.mxu0 0.0
    %306 = vmatprep.subr.mxu0 0.0
    %307 = vmatpush1.msra.mxu0 0.0
    %308 = vmatprep.subr.mxu0 0.0
    %309 = vmatpush1.msra.mxu0 0.0
    %310 = vmatprep.subr.mxu0 0.0
    %311 = vmatpush1.msra.mxu0 0.0
    %312 = vmatprep.subr.mxu0 0.0
    %313 = vmatpush1.msra.mxu0 0.0
    %314 = vmatprep.subr.mxu0 0.0
    %315 = vmatpush1.msra.mxu0 0.0
    %316 = vmatprep.subr.mxu0 0.0
    %317 = vmatpush1.msra.mxu0 0.0
    %318 = vmatprep.subr.mxu0 0.0
    %319 = vmatpush1.msra.mxu0 0.0
    %320 = vmatprep.subr.mxu0 0.0
    %321 = vmatpush1.msra.mxu0 0.0
    %322 = vmatprep.subr.mxu0 0.0
    %323 = vmatpush1.msra.mxu0 0.0
    %324 = vmatprep.subr.mxu0 0.0
    %v325 = vand.u32 %v118, 4294901760
    %v326 = vsub.f32 %v118, %v325
    %327 = vmatpush1.msra.mxu0 %v326
    %328 = vmatprep.subr.mxu0 0.0
    %v329 = vand.u32 %v117, 4294901760
    %v330 = vsub.f32 %v117, %v329
    %331 = vmatpush1.msra.mxu0 %v330
    %332 = vmatprep.subr.mxu0 0.0
    %v333 = vand.u32 %v116, 4294901760
    %v334 = vsub.f32 %v116, %v333
    %335 = vmatpush1.msra.mxu0 %v334
    %336 = vmatprep.subr.mxu0 0.0
    %v337 = vand.u32 %v115, 4294901760
    %v338 = vsub.f32 %v115, %v337
    %339 = vmatpush1.msra.mxu0 %v338
    %340 = vmatprep.subr.mxu0 0.0
    %341 = vmatpush2.msra.mxu0 0.0
    %342 = vmatprep.subr.mxu0 0.0
    %343 = vmatpush2.msra.mxu0 0.0
    %344 = vmatprep.subr.mxu0 0.0
    %345 = vmatpush2.msra.mxu0 0.0
    %346 = vmatprep.subr.mxu0 0.0
    %347 = vmatpush2.msra.mxu0 0.0
    %348 = vmatprep.subr.mxu0 0.0
    %349 = vmatpush2.msra.mxu0 0.0
    %350 = vmatprep.subr.mxu0 0.0
    %351 = vmatpush2.msra.mxu0 0.0
    %352 = vmatprep.subr.mxu0 0.0
    %353 = vmatpush2.msra.mxu0 0.0
    %354 = vmatprep.subr.mxu0 0.0
    %355 = vmatpush2.msra.mxu0 0.0
    %356 = vmatprep.subr.mxu0 0.0
    %357 = vmatpush2.msra.mxu0 0.0
    %358 = vmatprep.subr.mxu0 0.0
    %359 = vmatpush2.msra.mxu0 0.0
    %360 = vmatprep.subr.mxu0 0.0
    %361 = vmatpush2.msra.mxu0 0.0
    %362 = vmatprep.subr.mxu0 0.0
    %363 = vmatpush2.msra.mxu0 0.0
    %364 = vmatprep.subr.mxu0 0.0
    %365 = vmatpush2.msra.mxu0 0.0
    %366 = vmatprep.subr.mxu0 0.0
    %367 = vmatpush2.msra.mxu0 0.0
    %368 = vmatprep.subr.mxu0 0.0
    %369 = vmatpush2.msra.mxu0 0.0
    %370 = vmatprep.subr.mxu0 0.0
    %371 = vmatpush2.msra.mxu0 0.0
    %372 = vmatprep.mubr.f32.mxu0 0.0
    %v373 = vand.u32 %v128, 4294901760
    %v374 = vsub.f32 %v128, %v373
    %375 = vmatmul.mubr.f32.gmra.mxu0 %v374
    %v376 = vpop.f32.mrf.mxu0
    %v377 = vadd.f32 %v297, %v376
    %v378 = vpop.f32.mrf.mxu0
    %379 = vdwg.mxu0
    %380 = vmatprep.subr.mxu0 0.0
    %381 = vmatpush1.msra.mxu0 0.0
    %382 = vmatprep.subr.mxu0 0.0
    %383 = vmatpush1.msra.mxu0 0.0
    %384 = vmatprep.subr.mxu0 0.0
    %385 = vmatpush1.msra.mxu0 0.0
    %386 = vmatprep.subr.mxu0 0.0
    %387 = vmatpush1.msra.mxu0 0.0
    %388 = vmatprep.subr.mxu0 0.0
    %389 = vmatpush1.msra.mxu0 0.0
    %390 = vmatprep.subr.mxu0 0.0
    %391 = vmatpush1.msra.mxu0 0.0
    %392 = vmatprep.subr.mxu0 0.0
    %393 = vmatpush1.msra.mxu0 0.0
    %394 = vmatprep.subr.mxu0 0.0
    %395 = vmatpush1.msra.mxu0 0.0
    %396 = vmatprep.subr.mxu0 0.0
    %397 = vmatpush1.msra.mxu0 0.0
    %398 = vmatprep.subr.mxu0 0.0
    %399 = vmatpush1.msra.mxu0 0.0
    %400 = vmatprep.subr.mxu0 0.0
    %401 = vmatpush1.msra.mxu0 0.0
    %402 = vmatprep.subr.mxu0 0.0
    %403 = vmatpush1.msra.mxu0 0.0
    %404 = vmatprep.subr.mxu0 0.0
    %v405 = vand.u32 %v118, 4294901760
    %406 = vmatpush1.msra.mxu0 %v405
    %407 = vmatprep.subr.mxu0 0.0
    %v408 = vand.u32 %v117, 4294901760
    %409 = vmatpush1.msra.mxu0 %v408
    %410 = vmatprep.subr.mxu0 0.0
    %v411 = vand.u32 %v116, 4294901760
    %412 = vmatpush1.msra.mxu0 %v411
    %413 = vmatprep.subr.mxu0 0.0
    %v414 = vand.u32 %v115, 4294901760
    %415 = vmatpush1.msra.mxu0 %v414
    %416 = vmatprep.subr.mxu0 0.0
    %417 = vmatpush2.msra.mxu0 0.0
    %418 = vmatprep.subr.mxu0 0.0
    %419 = vmatpush2.msra.mxu0 0.0
    %420 = vmatprep.subr.mxu0 0.0
    %421 = vmatpush2.msra.mxu0 0.0
    %422 = vmatprep.subr.mxu0 0.0
    %423 = vmatpush2.msra.mxu0 0.0
    %424 = vmatprep.subr.mxu0 0.0
    %425 = vmatpush2.msra.mxu0 0.0
    %426 = vmatprep.subr.mxu0 0.0
    %427 = vmatpush2.msra.mxu0 0.0
    %428 = vmatprep.subr.mxu0 0.0
    %429 = vmatpush2.msra.mxu0 0.0
    %430 = vmatprep.subr.mxu0 0.0
    %431 = vmatpush2.msra.mxu0 0.0
    %432 = vmatprep.subr.mxu0 0.0
    %433 = vmatpush2.msra.mxu0 0.0
    %434 = vmatprep.subr.mxu0 0.0
    %435 = vmatpush2.msra.mxu0 0.0
    %436 = vmatprep.subr.mxu0 0.0
    %437 = vmatpush2.msra.mxu0 0.0
    %438 = vmatprep.subr.mxu0 0.0
    %439 = vmatpush2.msra.mxu0 0.0
    %440 = vmatprep.subr.mxu0 0.0
    %441 = vmatpush2.msra.mxu0 0.0
    %442 = vmatprep.subr.mxu0 0.0
    %443 = vmatpush2.msra.mxu0 0.0
    %444 = vmatprep.subr.mxu0 0.0
    %445 = vmatpush2.msra.mxu0 0.0
    %446 = vmatprep.subr.mxu0 0.0
    %447 = vmatpush2.msra.mxu0 0.0
    %448 = vmatprep.mubr.f32.mxu0 0.0
    %v449 = vand.u32 %v128, 4294901760
    %v450 = vsub.f32 %v128, %v449
    %v451 = vand.u32 %v450, 4294901760
    %452 = vmatmul.mubr.f32.gmra.mxu0 %v451
    %v453 = vpop.f32.mrf.mxu0
    %v454 = vadd.f32 %v377, %v453
    %v455 = vpop.f32.mrf.mxu0
    %456 = vdwg.mxu0
    %457 = vmatprep.subr.mxu0 0.0
    %458 = vmatpush1.msra.mxu0 0.0
    %459 = vmatprep.subr.mxu0 0.0
    %460 = vmatpush1.msra.mxu0 0.0
    %461 = vmatprep.subr.mxu0 0.0
    %462 = vmatpush1.msra.mxu0 0.0
    %463 = vmatprep.subr.mxu0 0.0
    %464 = vmatpush1.msra.mxu0 0.0
    %465 = vmatprep.subr.mxu0 0.0
    %466 = vmatpush1.msra.mxu0 0.0
    %467 = vmatprep.subr.mxu0 0.0
    %468 = vmatpush1.msra.mxu0 0.0
    %469 = vmatprep.subr.mxu0 0.0
    %470 = vmatpush1.msra.mxu0 0.0
    %471 = vmatprep.subr.mxu0 0.0
    %472 = vmatpush1.msra.mxu0 0.0
    %473 = vmatprep.subr.mxu0 0.0
    %474 = vmatpush1.msra.mxu0 0.0
    %475 = vmatprep.subr.mxu0 0.0
    %476 = vmatpush1.msra.mxu0 0.0
    %477 = vmatprep.subr.mxu0 0.0
    %478 = vmatpush1.msra.mxu0 0.0
    %479 = vmatprep.subr.mxu0 0.0
    %480 = vmatpush1.msra.mxu0 0.0
    %481 = vmatprep.subr.mxu0 0.0
    %v482 = vand.u32 %v118, 4294901760
    %v483 = vsub.f32 %v118, %v482
    %v484 = vand.u32 %v483, 4294901760
    %485 = vmatpush1.msra.mxu0 %v484
    %486 = vmatprep.subr.mxu0 0.0
    %v487 = vand.u32 %v117, 4294901760
    %v488 = vsub.f32 %v117, %v487
    %v489 = vand.u32 %v488, 4294901760
    %490 = vmatpush1.msra.mxu0 %v489
    %491 = vmatprep.subr.mxu0 0.0
    %v492 = vand.u32 %v116, 4294901760
    %v493 = vsub.f32 %v116, %v492
    %v494 = vand.u32 %v493, 4294901760
    %495 = vmatpush1.msra.mxu0 %v494
    %496 = vmatprep.subr.mxu0 0.0
    %v497 = vand.u32 %v115, 4294901760
    %v498 = vsub.f32 %v115, %v497
    %v499 = vand.u32 %v498, 4294901760
    %500 = vmatpush1.msra.mxu0 %v499
    %501 = vmatprep.subr.mxu0 0.0
    %502 = vmatpush2.msra.mxu0 0.0
    %503 = vmatprep.subr.mxu0 0.0
    %504 = vmatpush2.msra.mxu0 0.0
    %505 = vmatprep.subr.mxu0 0.0
    %506 = vmatpush2.msra.mxu0 0.0
    %507 = vmatprep.subr.mxu0 0.0
    %508 = vmatpush2.msra.mxu0 0.0
    %509 = vmatprep.subr.mxu0 0.0
    %510 = vmatpush2.msra.mxu0 0.0
    %511 = vmatprep.subr.mxu0 0.0
    %512 = vmatpush2.msra.mxu0 0.0
    %513 = vmatprep.subr.mxu0 0.0
    %514 = vmatpush2.msra.mxu0 0.0
    %515 = vmatprep.subr.mxu0 0.0
    %516 = vmatpush2.msra.mxu0 0.0
    %517 = vmatprep.subr.mxu0 0.0
    %518 = vmatpush2.msra.mxu0 0.0
    %519 = vmatprep.subr.mxu0 0.0
    %520 = vmatpush2.msra.mxu0 0.0
    %521 = vmatprep.subr.mxu0 0.0
    %522 = vmatpush2.msra.mxu0 0.0
    %523 = vmatprep.subr.mxu0 0.0
    %524 = vmatpush2.msra.mxu0 0.0
    %525 = vmatprep.subr.mxu0 0.0
    %526 = vmatpush2.msra.mxu0 0.0
    %527 = vmatprep.subr.mxu0 0.0
    %528 = vmatpush2.msra.mxu0 0.0
    %529 = vmatprep.subr.mxu0 0.0
    %530 = vmatpush2.msra.mxu0 0.0
    %531 = vmatprep.subr.mxu0 0.0
    %532 = vmatpush2.msra.mxu0 0.0
    %533 = vmatprep.mubr.f32.mxu0 0.0
    %v534 = vand.u32 %v128, 4294901760
    %535 = vmatmul.mubr.f32.gmra.mxu0 %v534
    %v536 = vpop.f32.mrf.mxu0
    %v537 = vadd.f32 %v454, %v536
    %v538 = vpop.f32.mrf.mxu0
    %539 = vdwg.mxu0
    %540 = vmatprep.subr.mxu0 0.0
    %541 = vmatpush1.msra.mxu0 0.0
    %542 = vmatprep.subr.mxu0 0.0
    %543 = vmatpush1.msra.mxu0 0.0
    %544 = vmatprep.subr.mxu0 0.0
    %545 = vmatpush1.msra.mxu0 0.0
    %546 = vmatprep.subr.mxu0 0.0
    %547 = vmatpush1.msra.mxu0 0.0
    %548 = vmatprep.subr.mxu0 0.0
    %549 = vmatpush1.msra.mxu0 0.0
    %550 = vmatprep.subr.mxu0 0.0
    %551 = vmatpush1.msra.mxu0 0.0
    %552 = vmatprep.subr.mxu0 0.0
    %553 = vmatpush1.msra.mxu0 0.0
    %554 = vmatprep.subr.mxu0 0.0
    %555 = vmatpush1.msra.mxu0 0.0
    %556 = vmatprep.subr.mxu0 0.0
    %557 = vmatpush1.msra.mxu0 0.0
    %558 = vmatprep.subr.mxu0 0.0
    %559 = vmatpush1.msra.mxu0 0.0
    %560 = vmatprep.subr.mxu0 0.0
    %561 = vmatpush1.msra.mxu0 0.0
    %562 = vmatprep.subr.mxu0 0.0
    %563 = vmatpush1.msra.mxu0 0.0
    %564 = vmatprep.subr.mxu0 0.0
    %v565 = vand.u32 %v118, 4294901760
    %566 = vmatpush1.msra.mxu0 %v565
    %567 = vmatprep.subr.mxu0 0.0
    %v568 = vand.u32 %v117, 4294901760
    %569 = vmatpush1.msra.mxu0 %v568
    %570 = vmatprep.subr.mxu0 0.0
    %v571 = vand.u32 %v116, 4294901760
    %572 = vmatpush1.msra.mxu0 %v571
    %573 = vmatprep.subr.mxu0 0.0
    %v574 = vand.u32 %v115, 4294901760
    %575 = vmatpush1.msra.mxu0 %v574
    %576 = vmatprep.subr.mxu0 0.0
    %577 = vmatpush2.msra.mxu0 0.0
    %578 = vmatprep.subr.mxu0 0.0
    %579 = vmatpush2.msra.mxu0 0.0
    %580 = vmatprep.subr.mxu0 0.0
    %581 = vmatpush2.msra.mxu0 0.0
    %582 = vmatprep.subr.mxu0 0.0
    %583 = vmatpush2.msra.mxu0 0.0
    %584 = vmatprep.subr.mxu0 0.0
    %585 = vmatpush2.msra.mxu0 0.0
    %586 = vmatprep.subr.mxu0 0.0
    %587 = vmatpush2.msra.mxu0 0.0
    %588 = vmatprep.subr.mxu0 0.0
    %589 = vmatpush2.msra.mxu0 0.0
    %590 = vmatprep.subr.mxu0 0.0
    %591 = vmatpush2.msra.mxu0 0.0
    %592 = vmatprep.subr.mxu0 0.0
    %593 = vmatpush2.msra.mxu0 0.0
    %594 = vmatprep.subr.mxu0 0.0
    %595 = vmatpush2.msra.mxu0 0.0
    %596 = vmatprep.subr.mxu0 0.0
    %597 = vmatpush2.msra.mxu0 0.0
    %598 = vmatprep.subr.mxu0 0.0
    %599 = vmatpush2.msra.mxu0 0.0
    %600 = vmatprep.subr.mxu0 0.0
    %601 = vmatpush2.msra.mxu0 0.0
    %602 = vmatprep.subr.mxu0 0.0
    %603 = vmatpush2.msra.mxu0 0.0
    %604 = vmatprep.subr.mxu0 0.0
    %605 = vmatpush2.msra.mxu0 0.0
    %606 = vmatprep.subr.mxu0 0.0
    %607 = vmatpush2.msra.mxu0 0.0
    %608 = vmatprep.mubr.f32.mxu0 0.0
    %v609 = vand.u32 %v128, 4294901760
    %610 = vmatmul.mubr.f32.gmra.mxu0 %v609
    %v611 = vpop.f32.mrf.mxu0
    %v612 = vadd.f32 %v537, %v611
    %v613 = vpop.f32.mrf.mxu0
    %614 = vdwg.mxu0
    %v615 = vmax.f32 %v124, %v612
    %v616 = vsub.f32 %v124, %v615
    %v617 = vmul.f32 %v616, 1.442695
    %v618 = vpow.pop %v617
    %v619 = vsub.f32 %v612, %v615
    %v620 = vmul.f32 %v619, 1.442695
    %v621 = vpow.pop %v620
    %623 = vrot.lane.b32.xlu0 %v618, 96
    %v624 = vpop.permute.xlu0 %623
    %v626 = vmul.f32 %v124, %v624
    %628 = vrot.lane.b32.xlu0 %v612, 32
    %v629 = vpop.permute.xlu0 %628
    %v631 = vmul.f32 %v621, %v629
    %633 = vrot.lane.b32.xlu0 %v631, 96
    %v634 = vpop.permute.xlu0 %633
    %v636 = vadd.f32 %v626, %v634
    %v637 = vadd.f32 %v618, %v621
    %v639 = vunpack.c.l.s4 1983009808
    %v640 = vunpack.c.0.s8 %v639
    %v641 = vlaneseq
    %v642 = vshrl.u32 %v641, 7
    %v643 = vsub.s32 %v640, %v642
    %v644 = vrot.slane %v114, %v643
    %645 = vrot.lane.b32.xlu0 %v644, 96
    %v646 = vpop.permute.xlu0 %645
    %v647 = vsel %vm126, %v646, 0
    %649 = vmatprep.subr.mxu0 0.0
    %650 = vmatpush1.msra.mxu0 0.0
    %651 = vmatprep.subr.mxu0 0.0
    %652 = vmatpush1.msra.mxu0 0.0
    %653 = vmatprep.subr.mxu0 0.0
    %654 = vmatpush1.msra.mxu0 0.0
    %655 = vmatprep.subr.mxu0 0.0
    %656 = vmatpush1.msra.mxu0 0.0
    %657 = vmatprep.subr.mxu0 0.0
    %658 = vmatpush1.msra.mxu0 0.0
    %659 = vmatprep.subr.mxu0 0.0
    %660 = vmatpush1.msra.mxu0 0.0
    %661 = vmatprep.subr.mxu0 0.0
    %662 = vmatpush1.msra.mxu0 0.0
    %663 = vmatprep.subr.mxu0 0.0
    %664 = vmatpush1.msra.mxu0 0.0
    %665 = vmatprep.subr.mxu0 0.0
    %666 = vmatpush1.msra.mxu0 0.0
    %667 = vmatprep.subr.mxu0 0.0
    %668 = vmatpush1.msra.mxu0 0.0
    %669 = vmatprep.subr.mxu0 0.0
    %670 = vmatpush1.msra.mxu0 0.0
    %671 = vmatprep.subr.mxu0 0.0
    %672 = vmatpush1.msra.mxu0 0.0
    %673 = vmatprep.subr.mxu0 0.0
    %v674 = vand.u32 %v118, 4294901760
    %675 = vmatpush1.msra.mxu0 %v674
    %676 = vmatprep.subr.mxu0 0.0
    %v677 = vand.u32 %v117, 4294901760
    %678 = vmatpush1.msra.mxu0 %v677
    %679 = vmatprep.subr.mxu0 0.0
    %v680 = vand.u32 %v116, 4294901760
    %681 = vmatpush1.msra.mxu0 %v680
    %682 = vmatprep.subr.mxu0 0.0
    %v683 = vand.u32 %v115, 4294901760
    %684 = vmatpush1.msra.mxu0 %v683
    %685 = vmatprep.subr.mxu0 0.0
    %686 = vmatpush2.msra.mxu0 0.0
    %687 = vmatprep.subr.mxu0 0.0
    %688 = vmatpush2.msra.mxu0 0.0
    %689 = vmatprep.subr.mxu0 0.0
    %690 = vmatpush2.msra.mxu0 0.0
    %691 = vmatprep.subr.mxu0 0.0
    %692 = vmatpush2.msra.mxu0 0.0
    %693 = vmatprep.subr.mxu0 0.0
    %694 = vmatpush2.msra.mxu0 0.0
    %695 = vmatprep.subr.mxu0 0.0
    %696 = vmatpush2.msra.mxu0 0.0
    %697 = vmatprep.subr.mxu0 0.0
    %698 = vmatpush2.msra.mxu0 0.0
    %699 = vmatprep.subr.mxu0 0.0
    %700 = vmatpush2.msra.mxu0 0.0
    %701 = vmatprep.subr.mxu0 0.0
    %702 = vmatpush2.msra.mxu0 0.0
    %703 = vmatprep.subr.mxu0 0.0
    %704 = vmatpush2.msra.mxu0 0.0
    %705 = vmatprep.subr.mxu0 0.0
    %706 = vmatpush2.msra.mxu0 0.0
    %707 = vmatprep.subr.mxu0 0.0
    %708 = vmatpush2.msra.mxu0 0.0
    %709 = vmatprep.subr.mxu0 0.0
    %710 = vmatpush2.msra.mxu0 0.0
    %711 = vmatprep.subr.mxu0 0.0
    %712 = vmatpush2.msra.mxu0 0.0
    %713 = vmatprep.subr.mxu0 0.0
    %714 = vmatpush2.msra.mxu0 0.0
    %715 = vmatprep.subr.mxu0 0.0
    %716 = vmatpush2.msra.mxu0 0.0
    %717 = vmatprep.mubr.f32.mxu0 0.0
    %v718 = vand.u32 %v647, 4294901760
    %v719 = vsub.f32 %v647, %v718
    %v720 = vand.u32 %v719, 4294901760
    %v721 = vsub.f32 %v719, %v720
    %v722 = vand.u32 %v721, 4294901760
    %723 = vmatmul.mubr.f32.gmra.mxu0 %v722
    %v724 = vpop.f32.mrf.mxu0
    %v725 = vadd.f32 %v124, %v724
    %v726 = vpop.f32.mrf.mxu0
    %727 = vdwg.mxu0
    %728 = vmatprep.subr.mxu0 0.0
    %729 = vmatpush1.msra.mxu0 0.0
    %730 = vmatprep.subr.mxu0 0.0
    %731 = vmatpush1.msra.mxu0 0.0
    %732 = vmatprep.subr.mxu0 0.0
    %733 = vmatpush1.msra.mxu0 0.0
    %734 = vmatprep.subr.mxu0 0.0
    %735 = vmatpush1.msra.mxu0 0.0
    %736 = vmatprep.subr.mxu0 0.0
    %737 = vmatpush1.msra.mxu0 0.0
    %738 = vmatprep.subr.mxu0 0.0
    %739 = vmatpush1.msra.mxu0 0.0
    %740 = vmatprep.subr.mxu0 0.0
    %741 = vmatpush1.msra.mxu0 0.0
    %742 = vmatprep.subr.mxu0 0.0
    %743 = vmatpush1.msra.mxu0 0.0
    %744 = vmatprep.subr.mxu0 0.0
    %745 = vmatpush1.msra.mxu0 0.0
    %746 = vmatprep.subr.mxu0 0.0
    %747 = vmatpush1.msra.mxu0 0.0
    %748 = vmatprep.subr.mxu0 0.0
    %749 = vmatpush1.msra.mxu0 0.0
    %750 = vmatprep.subr.mxu0 0.0
    %751 = vmatpush1.msra.mxu0 0.0
    %752 = vmatprep.subr.mxu0 0.0
    %v753 = vand.u32 %v118, 4294901760
    %v754 = vsub.f32 %v118, %v753
    %v755 = vand.u32 %v754, 4294901760
    %v756 = vsub.f32 %v754, %v755
    %v757 = vand.u32 %v756, 4294901760
    %758 = vmatpush1.msra.mxu0 %v757
    %759 = vmatprep.subr.mxu0 0.0
    %v760 = vand.u32 %v117, 4294901760
    %v761 = vsub.f32 %v117, %v760
    %v762 = vand.u32 %v761, 4294901760
    %v763 = vsub.f32 %v761, %v762
    %v764 = vand.u32 %v763, 4294901760
    %765 = vmatpush1.msra.mxu0 %v764
    %766 = vmatprep.subr.mxu0 0.0
    %v767 = vand.u32 %v116, 4294901760
    %v768 = vsub.f32 %v116, %v767
    %v769 = vand.u32 %v768, 4294901760
    %v770 = vsub.f32 %v768, %v769
    %v771 = vand.u32 %v770, 4294901760
    %772 = vmatpush1.msra.mxu0 %v771
    %773 = vmatprep.subr.mxu0 0.0
    %v774 = vand.u32 %v115, 4294901760
    %v775 = vsub.f32 %v115, %v774
    %v776 = vand.u32 %v775, 4294901760
    %v777 = vsub.f32 %v775, %v776
    %v778 = vand.u32 %v777, 4294901760
    %779 = vmatpush1.msra.mxu0 %v778
    %780 = vmatprep.subr.mxu0 0.0
    %781 = vmatpush2.msra.mxu0 0.0
    %782 = vmatprep.subr.mxu0 0.0
    %783 = vmatpush2.msra.mxu0 0.0
    %784 = vmatprep.subr.mxu0 0.0
    %785 = vmatpush2.msra.mxu0 0.0
    %786 = vmatprep.subr.mxu0 0.0
    %787 = vmatpush2.msra.mxu0 0.0
    %788 = vmatprep.subr.mxu0 0.0
    %789 = vmatpush2.msra.mxu0 0.0
    %790 = vmatprep.subr.mxu0 0.0
    %791 = vmatpush2.msra.mxu0 0.0
    %792 = vmatprep.subr.mxu0 0.0
    %793 = vmatpush2.msra.mxu0 0.0
    %794 = vmatprep.subr.mxu0 0.0
    %795 = vmatpush2.msra.mxu0 0.0
    %796 = vmatprep.subr.mxu0 0.0
    %797 = vmatpush2.msra.mxu0 0.0
    %798 = vmatprep.subr.mxu0 0.0
    %799 = vmatpush2.msra.mxu0 0.0
    %800 = vmatprep.subr.mxu0 0.0
    %801 = vmatpush2.msra.mxu0 0.0
    %802 = vmatprep.subr.mxu0 0.0
    %803 = vmatpush2.msra.mxu0 0.0
    %804 = vmatprep.subr.mxu0 0.0
    %805 = vmatpush2.msra.mxu0 0.0
    %806 = vmatprep.subr.mxu0 0.0
    %807 = vmatpush2.msra.mxu0 0.0
    %808 = vmatprep.subr.mxu0 0.0
    %809 = vmatpush2.msra.mxu0 0.0
    %810 = vmatprep.subr.mxu0 0.0
    %811 = vmatpush2.msra.mxu0 0.0
    %812 = vmatprep.mubr.f32.mxu0 0.0
    %v813 = vand.u32 %v647, 4294901760
    %814 = vmatmul.mubr.f32.gmra.mxu0 %v813
    %v815 = vpop.f32.mrf.mxu0
    %v816 = vadd.f32 %v725, %v815
    %v817 = vpop.f32.mrf.mxu0
    %818 = vdwg.mxu0
    %819 = vmatprep.subr.mxu0 0.0
    %820 = vmatpush1.msra.mxu0 0.0
    %821 = vmatprep.subr.mxu0 0.0
    %822 = vmatpush1.msra.mxu0 0.0
    %823 = vmatprep.subr.mxu0 0.0
    %824 = vmatpush1.msra.mxu0 0.0
    %825 = vmatprep.subr.mxu0 0.0
    %826 = vmatpush1.msra.mxu0 0.0
    %827 = vmatprep.subr.mxu0 0.0
    %828 = vmatpush1.msra.mxu0 0.0
    %829 = vmatprep.subr.mxu0 0.0
    %830 = vmatpush1.msra.mxu0 0.0
    %831 = vmatprep.subr.mxu0 0.0
    %832 = vmatpush1.msra.mxu0 0.0
    %833 = vmatprep.subr.mxu0 0.0
    %834 = vmatpush1.msra.mxu0 0.0
    %835 = vmatprep.subr.mxu0 0.0
    %836 = vmatpush1.msra.mxu0 0.0
    %837 = vmatprep.subr.mxu0 0.0
    %838 = vmatpush1.msra.mxu0 0.0
    %839 = vmatprep.subr.mxu0 0.0
    %840 = vmatpush1.msra.mxu0 0.0
    %841 = vmatprep.subr.mxu0 0.0
    %842 = vmatpush1.msra.mxu0 0.0
    %843 = vmatprep.subr.mxu0 0.0
    %v844 = vand.u32 %v118, 4294901760
    %v845 = vsub.f32 %v118, %v844
    %846 = vmatpush1.msra.mxu0 %v845
    %847 = vmatprep.subr.mxu0 0.0
    %v848 = vand.u32 %v117, 4294901760
    %v849 = vsub.f32 %v117, %v848
    %850 = vmatpush1.msra.mxu0 %v849
    %851 = vmatprep.subr.mxu0 0.0
    %v852 = vand.u32 %v116, 4294901760
    %v853 = vsub.f32 %v116, %v852
    %854 = vmatpush1.msra.mxu0 %v853
    %855 = vmatprep.subr.mxu0 0.0
    %v856 = vand.u32 %v115, 4294901760
    %v857 = vsub.f32 %v115, %v856
    %858 = vmatpush1.msra.mxu0 %v857
    %859 = vmatprep.subr.mxu0 0.0
    %860 = vmatpush2.msra.mxu0 0.0
    %861 = vmatprep.subr.mxu0 0.0
    %862 = vmatpush2.msra.mxu0 0.0
    %863 = vmatprep.subr.mxu0 0.0
    %864 = vmatpush2.msra.mxu0 0.0
    %865 = vmatprep.subr.mxu0 0.0
    %866 = vmatpush2.msra.mxu0 0.0
    %867 = vmatprep.subr.mxu0 0.0
    %868 = vmatpush2.msra.mxu0 0.0
    %869 = vmatprep.subr.mxu0 0.0
    %870 = vmatpush2.msra.mxu0 0.0
    %871 = vmatprep.subr.mxu0 0.0
    %872 = vmatpush2.msra.mxu0 0.0
    %873 = vmatprep.subr.mxu0 0.0
    %874 = vmatpush2.msra.mxu0 0.0
    %875 = vmatprep.subr.mxu0 0.0
    %876 = vmatpush2.msra.mxu0 0.0
    %877 = vmatprep.subr.mxu0 0.0
    %878 = vmatpush2.msra.mxu0 0.0
    %879 = vmatprep.subr.mxu0 0.0
    %880 = vmatpush2.msra.mxu0 0.0
    %881 = vmatprep.subr.mxu0 0.0
    %882 = vmatpush2.msra.mxu0 0.0
    %883 = vmatprep.subr.mxu0 0.0
    %884 = vmatpush2.msra.mxu0 0.0
    %885 = vmatprep.subr.mxu0 0.0
    %886 = vmatpush2.msra.mxu0 0.0
    %887 = vmatprep.subr.mxu0 0.0
    %888 = vmatpush2.msra.mxu0 0.0
    %889 = vmatprep.subr.mxu0 0.0
    %890 = vmatpush2.msra.mxu0 0.0
    %891 = vmatprep.mubr.f32.mxu0 0.0
    %v892 = vand.u32 %v647, 4294901760
    %v893 = vsub.f32 %v647, %v892
    %894 = vmatmul.mubr.f32.gmra.mxu0 %v893
    %v895 = vpop.f32.mrf.mxu0
    %v896 = vadd.f32 %v816, %v895
    %v897 = vpop.f32.mrf.mxu0
    %898 = vdwg.mxu0
    %899 = vmatprep.subr.mxu0 0.0
    %900 = vmatpush1.msra.mxu0 0.0
    %901 = vmatprep.subr.mxu0 0.0
    %902 = vmatpush1.msra.mxu0 0.0
    %903 = vmatprep.subr.mxu0 0.0
    %904 = vmatpush1.msra.mxu0 0.0
    %905 = vmatprep.subr.mxu0 0.0
    %906 = vmatpush1.msra.mxu0 0.0
    %907 = vmatprep.subr.mxu0 0.0
    %908 = vmatpush1.msra.mxu0 0.0
    %909 = vmatprep.subr.mxu0 0.0
    %910 = vmatpush1.msra.mxu0 0.0
    %911 = vmatprep.subr.mxu0 0.0
    %912 = vmatpush1.msra.mxu0 0.0
    %913 = vmatprep.subr.mxu0 0.0
    %914 = vmatpush1.msra.mxu0 0.0
    %915 = vmatprep.subr.mxu0 0.0
    %916 = vmatpush1.msra.mxu0 0.0
    %917 = vmatprep.subr.mxu0 0.0
    %918 = vmatpush1.msra.mxu0 0.0
    %919 = vmatprep.subr.mxu0 0.0
    %920 = vmatpush1.msra.mxu0 0.0
    %921 = vmatprep.subr.mxu0 0.0
    %922 = vmatpush1.msra.mxu0 0.0
    %923 = vmatprep.subr.mxu0 0.0
    %v924 = vand.u32 %v118, 4294901760
    %925 = vmatpush1.msra.mxu0 %v924
    %926 = vmatprep.subr.mxu0 0.0
    %v927 = vand.u32 %v117, 4294901760
    %928 = vmatpush1.msra.mxu0 %v927
    %929 = vmatprep.subr.mxu0 0.0
    %v930 = vand.u32 %v116, 4294901760
    %931 = vmatpush1.msra.mxu0 %v930
    %932 = vmatprep.subr.mxu0 0.0
    %v933 = vand.u32 %v115, 4294901760
    %934 = vmatpush1.msra.mxu0 %v933
    %935 = vmatprep.subr.mxu0 0.0
    %936 = vmatpush2.msra.mxu0 0.0
    %937 = vmatprep.subr.mxu0 0.0
    %938 = vmatpush2.msra.mxu0 0.0
    %939 = vmatprep.subr.mxu0 0.0
    %940 = vmatpush2.msra.mxu0 0.0
    %941 = vmatprep.subr.mxu0 0.0
    %942 = vmatpush2.msra.mxu0 0.0
    %943 = vmatprep.subr.mxu0 0.0
    %944 = vmatpush2.msra.mxu0 0.0
    %945 = vmatprep.subr.mxu0 0.0
    %946 = vmatpush2.msra.mxu0 0.0
    %947 = vmatprep.subr.mxu0 0.0
    %948 = vmatpush2.msra.mxu0 0.0
    %949 = vmatprep.subr.mxu0 0.0
    %950 = vmatpush2.msra.mxu0 0.0
    %951 = vmatprep.subr.mxu0 0.0
    %952 = vmatpush2.msra.mxu0 0.0
    %953 = vmatprep.subr.mxu0 0.0
    %954 = vmatpush2.msra.mxu0 0.0
    %955 = vmatprep.subr.mxu0 0.0
    %956 = vmatpush2.msra.mxu0 0.0
    %957 = vmatprep.subr.mxu0 0.0
    %958 = vmatpush2.msra.mxu0 0.0
    %959 = vmatprep.subr.mxu0 0.0
    %960 = vmatpush2.msra.mxu0 0.0
    %961 = vmatprep.subr.mxu0 0.0
    %962 = vmatpush2.msra.mxu0 0.0
    %963 = vmatprep.subr.mxu0 0.0
    %964 = vmatpush2.msra.mxu0 0.0
    %965 = vmatprep.subr.mxu0 0.0
    %966 = vmatpush2.msra.mxu0 0.0
    %967 = vmatprep.mubr.f32.mxu0 0.0
    %v968 = vand.u32 %v647, 4294901760
    %v969 = vsub.f32 %v647, %v968
    %v970 = vand.u32 %v969, 4294901760
    %971 = vmatmul.mubr.f32.gmra.mxu0 %v970
    %v972 = vpop.f32.mrf.mxu0
    %v973 = vadd.f32 %v896, %v972
    %v974 = vpop.f32.mrf.mxu0
    %975 = vdwg.mxu0
    %976 = vmatprep.subr.mxu0 0.0
    %977 = vmatpush1.msra.mxu0 0.0
    %978 = vmatprep.subr.mxu0 0.0
    %979 = vmatpush1.msra.mxu0 0.0
    %980 = vmatprep.subr.mxu0 0.0
    %981 = vmatpush1.msra.mxu0 0.0
    %982 = vmatprep.subr.mxu0 0.0
    %983 = vmatpush1.msra.mxu0 0.0
    %984 = vmatprep.subr.mxu0 0.0
    %985 = vmatpush1.msra.mxu0 0.0
    %986 = vmatprep.subr.mxu0 0.0
    %987 = vmatpush1.msra.mxu0 0.0
    %988 = vmatprep.subr.mxu0 0.0
    %989 = vmatpush1.msra.mxu0 0.0
    %990 = vmatprep.subr.mxu0 0.0
    %991 = vmatpush1.msra.mxu0 0.0
    %992 = vmatprep.subr.mxu0 0.0
    %993 = vmatpush1.msra.mxu0 0.0
    %994 = vmatprep.subr.mxu0 0.0
    %995 = vmatpush1.msra.mxu0 0.0
    %996 = vmatprep.subr.mxu0 0.0
    %997 = vmatpush1.msra.mxu0 0.0
    %998 = vmatprep.subr.mxu0 0.0
    %999 = vmatpush1.msra.mxu0 0.0
    %1000 = vmatprep.subr.mxu0 0.0
    %v1001 = vand.u32 %v118, 4294901760
    %v1002 = vsub.f32 %v118, %v1001
    %v1003 = vand.u32 %v1002, 4294901760
    %1004 = vmatpush1.msra.mxu0 %v1003
    %1005 = vmatprep.subr.mxu0 0.0
    %v1006 = vand.u32 %v117, 4294901760
    %v1007 = vsub.f32 %v117, %v1006
    %v1008 = vand.u32 %v1007, 4294901760
    %1009 = vmatpush1.msra.mxu0 %v1008
    %1010 = vmatprep.subr.mxu0 0.0
    %v1011 = vand.u32 %v116, 4294901760
    %v1012 = vsub.f32 %v116, %v1011
    %v1013 = vand.u32 %v1012, 4294901760
    %1014 = vmatpush1.msra.mxu0 %v1013
    %1015 = vmatprep.subr.mxu0 0.0
    %v1016 = vand.u32 %v115, 4294901760
    %v1017 = vsub.f32 %v115, %v1016
    %v1018 = vand.u32 %v1017, 4294901760
    %1019 = vmatpush1.msra.mxu0 %v1018
    %1020 = vmatprep.subr.mxu0 0.0
    %1021 = vmatpush2.msra.mxu0 0.0
    %1022 = vmatprep.subr.mxu0 0.0
    %1023 = vmatpush2.msra.mxu0 0.0
    %1024 = vmatprep.subr.mxu0 0.0
    %1025 = vmatpush2.msra.mxu0 0.0
    %1026 = vmatprep.subr.mxu0 0.0
    %1027 = vmatpush2.msra.mxu0 0.0
    %1028 = vmatprep.subr.mxu0 0.0
    %1029 = vmatpush2.msra.mxu0 0.0
    %1030 = vmatprep.subr.mxu0 0.0
    %1031 = vmatpush2.msra.mxu0 0.0
    %1032 = vmatprep.subr.mxu0 0.0
    %1033 = vmatpush2.msra.mxu0 0.0
    %1034 = vmatprep.subr.mxu0 0.0
    %1035 = vmatpush2.msra.mxu0 0.0
    %1036 = vmatprep.subr.mxu0 0.0
    %1037 = vmatpush2.msra.mxu0 0.0
    %1038 = vmatprep.subr.mxu0 0.0
    %1039 = vmatpush2.msra.mxu0 0.0
    %1040 = vmatprep.subr.mxu0 0.0
    %1041 = vmatpush2.msra.mxu0 0.0
    %1042 = vmatprep.subr.mxu0 0.0
    %1043 = vmatpush2.msra.mxu0 0.0
    %1044 = vmatprep.subr.mxu0 0.0
    %1045 = vmatpush2.msra.mxu0 0.0
    %1046 = vmatprep.subr.mxu0 0.0
    %1047 = vmatpush2.msra.mxu0 0.0
    %1048 = vmatprep.subr.mxu0 0.0
    %1049 = vmatpush2.msra.mxu0 0.0
    %1050 = vmatprep.subr.mxu0 0.0
    %1051 = vmatpush2.msra.mxu0 0.0
    %1052 = vmatprep.mubr.f32.mxu0 0.0
    %v1053 = vand.u32 %v647, 4294901760
    %1054 = vmatmul.mubr.f32.gmra.mxu0 %v1053
    %v1055 = vpop.f32.mrf.mxu0
    %v1056 = vadd.f32 %v973, %v1055
    %v1057 = vpop.f32.mrf.mxu0
    %1058 = vdwg.mxu0
    %1059 = vmatprep.subr.mxu0 0.0
    %1060 = vmatpush1.msra.mxu0 0.0
    %1061 = vmatprep.subr.mxu0 0.0
    %1062 = vmatpush1.msra.mxu0 0.0
    %1063 = vmatprep.subr.mxu0 0.0
    %1064 = vmatpush1.msra.mxu0 0.0
    %1065 = vmatprep.subr.mxu0 0.0
    %1066 = vmatpush1.msra.mxu0 0.0
    %1067 = vmatprep.subr.mxu0 0.0
    %1068 = vmatpush1.msra.mxu0 0.0
    %1069 = vmatprep.subr.mxu0 0.0
    %1070 = vmatpush1.msra.mxu0 0.0
    %1071 = vmatprep.subr.mxu0 0.0
    %1072 = vmatpush1.msra.mxu0 0.0
    %1073 = vmatprep.subr.mxu0 0.0
    %1074 = vmatpush1.msra.mxu0 0.0
    %1075 = vmatprep.subr.mxu0 0.0
    %1076 = vmatpush1.msra.mxu0 0.0
    %1077 = vmatprep.subr.mxu0 0.0
    %1078 = vmatpush1.msra.mxu0 0.0
    %1079 = vmatprep.subr.mxu0 0.0
    %1080 = vmatpush1.msra.mxu0 0.0
    %1081 = vmatprep.subr.mxu0 0.0
    %1082 = vmatpush1.msra.mxu0 0.0
    %1083 = vmatprep.subr.mxu0 0.0
    %v1084 = vand.u32 %v118, 4294901760
    %1085 = vmatpush1.msra.mxu0 %v1084
    %1086 = vmatprep.subr.mxu0 0.0
    %v1087 = vand.u32 %v117, 4294901760
    %1088 = vmatpush1.msra.mxu0 %v1087
    %1089 = vmatprep.subr.mxu0 0.0
    %v1090 = vand.u32 %v116, 4294901760
    %1091 = vmatpush1.msra.mxu0 %v1090
    %1092 = vmatprep.subr.mxu0 0.0
    %v1093 = vand.u32 %v115, 4294901760
    %1094 = vmatpush1.msra.mxu0 %v1093
    %1095 = vmatprep.subr.mxu0 0.0
    %1096 = vmatpush2.msra.mxu0 0.0
    %1097 = vmatprep.subr.mxu0 0.0
    %1098 = vmatpush2.msra.mxu0 0.0
    %1099 = vmatprep.subr.mxu0 0.0
    %1100 = vmatpush2.msra.mxu0 0.0
    %1101 = vmatprep.subr.mxu0 0.0
    %1102 = vmatpush2.msra.mxu0 0.0
    %1103 = vmatprep.subr.mxu0 0.0
    %1104 = vmatpush2.msra.mxu0 0.0
    %1105 = vmatprep.subr.mxu0 0.0
    %1106 = vmatpush2.msra.mxu0 0.0
    %1107 = vmatprep.subr.mxu0 0.0
    %1108 = vmatpush2.msra.mxu0 0.0
    %1109 = vmatprep.subr.mxu0 0.0
    %1110 = vmatpush2.msra.mxu0 0.0
    %1111 = vmatprep.subr.mxu0 0.0
    %1112 = vmatpush2.msra.mxu0 0.0
    %1113 = vmatprep.subr.mxu0 0.0
    %1114 = vmatpush2.msra.mxu0 0.0
    %1115 = vmatprep.subr.mxu0 0.0
    %1116 = vmatpush2.msra.mxu0 0.0
    %1117 = vmatprep.subr.mxu0 0.0
    %1118 = vmatpush2.msra.mxu0 0.0
    %1119 = vmatprep.subr.mxu0 0.0
    %1120 = vmatpush2.msra.mxu0 0.0
    %1121 = vmatprep.subr.mxu0 0.0
    %1122 = vmatpush2.msra.mxu0 0.0
    %1123 = vmatprep.subr.mxu0 0.0
    %1124 = vmatpush2.msra.mxu0 0.0
    %1125 = vmatprep.subr.mxu0 0.0
    %1126 = vmatpush2.msra.mxu0 0.0
    %1127 = vmatprep.mubr.f32.mxu0 0.0
    %v1128 = vand.u32 %v647, 4294901760
    %1129 = vmatmul.mubr.f32.gmra.mxu0 %v1128
    %v1130 = vpop.f32.mrf.mxu0
    %v1131 = vadd.f32 %v1056, %v1130
    %v1132 = vpop.f32.mrf.mxu0
    %1133 = vdwg.mxu0
    %v1134 = vmax.f32 %v615, %v1131
    %v1135 = vsub.f32 %v615, %v1134
    %v1136 = vmul.f32 %v1135, 1.442695
    %v1137 = vpow.pop %v1136
    %v1138 = vsub.f32 %v1131, %v1134
    %v1139 = vmul.f32 %v1138, 1.442695
    %v1140 = vpow.pop %v1139
    %1142 = vrot.lane.b32.xlu0 %v1137, 96
    %v1143 = vpop.permute.xlu0 %1142
    %v1145 = vmul.f32 %v636, %v1143
    %1147 = vrot.lane.b32.xlu0 %v1131, 32
    %v1148 = vpop.permute.xlu0 %1147
    %v1150 = vmul.f32 %v1140, %v1148
    %1152 = vrot.lane.b32.xlu0 %v1150, 96
    %v1153 = vpop.permute.xlu0 %1152
    %v1155 = vadd.f32 %v1145, %v1153
    %v1156 = vmul.f32 %v637, %v1137
    %v1157 = vadd.f32 %v1156, %v1140
    %1158 = vrot.lane.b32.xlu0 %v644, 64
    %v1159 = vpop.permute.xlu0 %1158
    %v1160 = vsel %vm126, %v1159, 0
    %1162 = vmatprep.subr.mxu0 0.0
    %1163 = vmatpush1.msra.mxu0 0.0
    %1164 = vmatprep.subr.mxu0 0.0
    %1165 = vmatpush1.msra.mxu0 0.0
    %1166 = vmatprep.subr.mxu0 0.0
    %1167 = vmatpush1.msra.mxu0 0.0
    %1168 = vmatprep.subr.mxu0 0.0
    %1169 = vmatpush1.msra.mxu0 0.0
    %1170 = vmatprep.subr.mxu0 0.0
    %1171 = vmatpush1.msra.mxu0 0.0
    %1172 = vmatprep.subr.mxu0 0.0
    %1173 = vmatpush1.msra.mxu0 0.0
    %1174 = vmatprep.subr.mxu0 0.0
    %1175 = vmatpush1.msra.mxu0 0.0
    %1176 = vmatprep.subr.mxu0 0.0
    %1177 = vmatpush1.msra.mxu0 0.0
    %1178 = vmatprep.subr.mxu0 0.0
    %1179 = vmatpush1.msra.mxu0 0.0
    %1180 = vmatprep.subr.mxu0 0.0
    %1181 = vmatpush1.msra.mxu0 0.0
    %1182 = vmatprep.subr.mxu0 0.0
    %1183 = vmatpush1.msra.mxu0 0.0
    %1184 = vmatprep.subr.mxu0 0.0
    %1185 = vmatpush1.msra.mxu0 0.0
    %1186 = vmatprep.subr.mxu0 0.0
    %v1187 = vand.u32 %v118, 4294901760
    %1188 = vmatpush1.msra.mxu0 %v1187
    %1189 = vmatprep.subr.mxu0 0.0
    %v1190 = vand.u32 %v117, 4294901760
    %1191 = vmatpush1.msra.mxu0 %v1190
    %1192 = vmatprep.subr.mxu0 0.0
    %v1193 = vand.u32 %v116, 4294901760
    %1194 = vmatpush1.msra.mxu0 %v1193
    %1195 = vmatprep.subr.mxu0 0.0
    %v1196 = vand.u32 %v115, 4294901760
    %1197 = vmatpush1.msra.mxu0 %v1196
    %1198 = vmatprep.subr.mxu0 0.0
    %1199 = vmatpush2.msra.mxu0 0.0
    %1200 = vmatprep.subr.mxu0 0.0
    %1201 = vmatpush2.msra.mxu0 0.0
    %1202 = vmatprep.subr.mxu0 0.0
    %1203 = vmatpush2.msra.mxu0 0.0
    %1204 = vmatprep.subr.mxu0 0.0
    %1205 = vmatpush2.msra.mxu0 0.0
    %1206 = vmatprep.subr.mxu0 0.0
    %1207 = vmatpush2.msra.mxu0 0.0
    %1208 = vmatprep.subr.mxu0 0.0
    %1209 = vmatpush2.msra.mxu0 0.0
    %1210 = vmatprep.subr.mxu0 0.0
    %1211 = vmatpush2.msra.mxu0 0.0
    %1212 = vmatprep.subr.mxu0 0.0
    %1213 = vmatpush2.msra.mxu0 0.0
    %1214 = vmatprep.subr.mxu0 0.0
    %1215 = vmatpush2.msra.mxu0 0.0
    %1216 = vmatprep.subr.mxu0 0.0
    %1217 = vmatpush2.msra.mxu0 0.0
    %1218 = vmatprep.subr.mxu0 0.0
    %1219 = vmatpush2.msra.mxu0 0.0
    %1220 = vmatprep.subr.mxu0 0.0
    %1221 = vmatpush2.msra.mxu0 0.0
    %1222 = vmatprep.subr.mxu0 0.0
    %1223 = vmatpush2.msra.mxu0 0.0
    %1224 = vmatprep.subr.mxu0 0.0
    %1225 = vmatpush2.msra.mxu0 0.0
    %1226 = vmatprep.subr.mxu0 0.0
    %1227 = vmatpush2.msra.mxu0 0.0
    %1228 = vmatprep.subr.mxu0 0.0
    %1229 = vmatpush2.msra.mxu0 0.0
    %1230 = vmatprep.mubr.f32.mxu0 0.0
    %v1231 = vand.u32 %v1160, 4294901760
    %v1232 = vsub.f32 %v1160, %v1231
    %v1233 = vand.u32 %v1232, 4294901760
    %v1234 = vsub.f32 %v1232, %v1233
    %v1235 = vand.u32 %v1234, 4294901760
    %1236 = vmatmul.mubr.f32.gmra.mxu0 %v1235
    %v1237 = vpop.f32.mrf.mxu0
    %v1238 = vadd.f32 %v124, %v1237
    %v1239 = vpop.f32.mrf.mxu0
    %1240 = vdwg.mxu0
    %1241 = vmatprep.subr.mxu0 0.0
    %1242 = vmatpush1.msra.mxu0 0.0
    %1243 = vmatprep.subr.mxu0 0.0
    %1244 = vmatpush1.msra.mxu0 0.0
    %1245 = vmatprep.subr.mxu0 0.0
    %1246 = vmatpush1.msra.mxu0 0.0
    %1247 = vmatprep.subr.mxu0 0.0
    %1248 = vmatpush1.msra.mxu0 0.0
    %1249 = vmatprep.subr.mxu0 0.0
    %1250 = vmatpush1.msra.mxu0 0.0
    %1251 = vmatprep.subr.mxu0 0.0
    %1252 = vmatpush1.msra.mxu0 0.0
    %1253 = vmatprep.subr.mxu0 0.0
    %1254 = vmatpush1.msra.mxu0 0.0
    %1255 = vmatprep.subr.mxu0 0.0
    %1256 = vmatpush1.msra.mxu0 0.0
    %1257 = vmatprep.subr.mxu0 0.0
    %1258 = vmatpush1.msra.mxu0 0.0
    %1259 = vmatprep.subr.mxu0 0.0
    %1260 = vmatpush1.msra.mxu0 0.0
    %1261 = vmatprep.subr.mxu0 0.0
    %1262 = vmatpush1.msra.mxu0 0.0
    %1263 = vmatprep.subr.mxu0 0.0
    %1264 = vmatpush1.msra.mxu0 0.0
    %1265 = vmatprep.subr.mxu0 0.0
    %v1266 = vand.u32 %v118, 4294901760
    %v1267 = vsub.f32 %v118, %v1266
    %v1268 = vand.u32 %v1267, 4294901760
    %v1269 = vsub.f32 %v1267, %v1268
    %v1270 = vand.u32 %v1269, 4294901760
    %1271 = vmatpush1.msra.mxu0 %v1270
    %1272 = vmatprep.subr.mxu0 0.0
    %v1273 = vand.u32 %v117, 4294901760
    %v1274 = vsub.f32 %v117, %v1273
    %v1275 = vand.u32 %v1274, 4294901760
    %v1276 = vsub.f32 %v1274, %v1275
    %v1277 = vand.u32 %v1276, 4294901760
    %1278 = vmatpush1.msra.mxu0 %v1277
    %1279 = vmatprep.subr.mxu0 0.0
    %v1280 = vand.u32 %v116, 4294901760
    %v1281 = vsub.f32 %v116, %v1280
    %v1282 = vand.u32 %v1281, 4294901760
    %v1283 = vsub.f32 %v1281, %v1282
    %v1284 = vand.u32 %v1283, 4294901760
    %1285 = vmatpush1.msra.mxu0 %v1284
    %1286 = vmatprep.subr.mxu0 0.0
    %v1287 = vand.u32 %v115, 4294901760
    %v1288 = vsub.f32 %v115, %v1287
    %v1289 = vand.u32 %v1288, 4294901760
    %v1290 = vsub.f32 %v1288, %v1289
    %v1291 = vand.u32 %v1290, 4294901760
    %1292 = vmatpush1.msra.mxu0 %v1291
    %1293 = vmatprep.subr.mxu0 0.0
    %1294 = vmatpush2.msra.mxu0 0.0
    %1295 = vmatprep.subr.mxu0 0.0
    %1296 = vmatpush2.msra.mxu0 0.0
    %1297 = vmatprep.subr.mxu0 0.0
    %1298 = vmatpush2.msra.mxu0 0.0
    %1299 = vmatprep.subr.mxu0 0.0
    %1300 = vmatpush2.msra.mxu0 0.0
    %1301 = vmatprep.subr.mxu0 0.0
    %1302 = vmatpush2.msra.mxu0 0.0
    %1303 = vmatprep.subr.mxu0 0.0
    %1304 = vmatpush2.msra.mxu0 0.0
    %1305 = vmatprep.subr.mxu0 0.0
    %1306 = vmatpush2.msra.mxu0 0.0
    %1307 = vmatprep.subr.mxu0 0.0
    %1308 = vmatpush2.msra.mxu0 0.0
    %1309 = vmatprep.subr.mxu0 0.0
    %1310 = vmatpush2.msra.mxu0 0.0
    %1311 = vmatprep.subr.mxu0 0.0
    %1312 = vmatpush2.msra.mxu0 0.0
    %1313 = vmatprep.subr.mxu0 0.0
    %1314 = vmatpush2.msra.mxu0 0.0
    %1315 = vmatprep.subr.mxu0 0.0
    %1316 = vmatpush2.msra.mxu0 0.0
    %1317 = vmatprep.subr.mxu0 0.0
    %1318 = vmatpush2.msra.mxu0 0.0
    %1319 = vmatprep.subr.mxu0 0.0
    %1320 = vmatpush2.msra.mxu0 0.0
    %1321 = vmatprep.subr.mxu0 0.0
    %1322 = vmatpush2.msra.mxu0 0.0
    %1323 = vmatprep.subr.mxu0 0.0
    %1324 = vmatpush2.msra.mxu0 0.0
    %1325 = vmatprep.mubr.f32.mxu0 0.0
    %v1326 = vand.u32 %v1160, 4294901760
    %1327 = vmatmul.mubr.f32.gmra.mxu0 %v1326
    %v1328 = vpop.f32.mrf.mxu0
    %v1329 = vadd.f32 %v1238, %v1328
    %v1330 = vpop.f32.mrf.mxu0
    %1331 = vdwg.mxu0
    %1332 = vmatprep.subr.mxu0 0.0
    %1333 = vmatpush1.msra.mxu0 0.0
    %1334 = vmatprep.subr.mxu0 0.0
    %1335 = vmatpush1.msra.mxu0 0.0
    %1336 = vmatprep.subr.mxu0 0.0
    %1337 = vmatpush1.msra.mxu0 0.0
    %1338 = vmatprep.subr.mxu0 0.0
    %1339 = vmatpush1.msra.mxu0 0.0
    %1340 = vmatprep.subr.mxu0 0.0
    %1341 = vmatpush1.msra.mxu0 0.0
    %1342 = vmatprep.subr.mxu0 0.0
    %1343 = vmatpush1.msra.mxu0 0.0
    %1344 = vmatprep.subr.mxu0 0.0
    %1345 = vmatpush1.msra.mxu0 0.0
    %1346 = vmatprep.subr.mxu0 0.0
    %1347 = vmatpush1.msra.mxu0 0.0
    %1348 = vmatprep.subr.mxu0 0.0
    %1349 = vmatpush1.msra.mxu0 0.0
    %1350 = vmatprep.subr.mxu0 0.0
    %1351 = vmatpush1.msra.mxu0 0.0
    %1352 = vmatprep.subr.mxu0 0.0
    %1353 = vmatpush1.msra.mxu0 0.0
    %1354 = vmatprep.subr.mxu0 0.0
    %1355 = vmatpush1.msra.mxu0 0.0
    %1356 = vmatprep.subr.mxu0 0.0
    %v1357 = vand.u32 %v118, 4294901760
    %v1358 = vsub.f32 %v118, %v1357
    %1359 = vmatpush1.msra.mxu0 %v1358
    %1360 = vmatprep.subr.mxu0 0.0
    %v1361 = vand.u32 %v117, 4294901760
    %v1362 = vsub.f32 %v117, %v1361
    %1363 = vmatpush1.msra.mxu0 %v1362
    %1364 = vmatprep.subr.mxu0 0.0
    %v1365 = vand.u32 %v116, 4294901760
    %v1366 = vsub.f32 %v116, %v1365
    %1367 = vmatpush1.msra.mxu0 %v1366
    %1368 = vmatprep.subr.mxu0 0.0
    %v1369 = vand.u32 %v115, 4294901760
    %v1370 = vsub.f32 %v115, %v1369
    %1371 = vmatpush1.msra.mxu0 %v1370
    %1372 = vmatprep.subr.mxu0 0.0
    %1373 = vmatpush2.msra.mxu0 0.0
    %1374 = vmatprep.subr.mxu0 0.0
    %1375 = vmatpush2.msra.mxu0 0.0
    %1376 = vmatprep.subr.mxu0 0.0
    %1377 = vmatpush2.msra.mxu0 0.0
    %1378 = vmatprep.subr.mxu0 0.0
    %1379 = vmatpush2.msra.mxu0 0.0
    %1380 = vmatprep.subr.mxu0 0.0
    %1381 = vmatpush2.msra.mxu0 0.0
    %1382 = vmatprep.subr.mxu0 0.0
    %1383 = vmatpush2.msra.mxu0 0.0
    %1384 = vmatprep.subr.mxu0 0.0
    %1385 = vmatpush2.msra.mxu0 0.0
    %1386 = vmatprep.subr.mxu0 0.0
    %1387 = vmatpush2.msra.mxu0 0.0
    %1388 = vmatprep.subr.mxu0 0.0
    %1389 = vmatpush2.msra.mxu0 0.0
    %1390 = vmatprep.subr.mxu0 0.0
    %1391 = vmatpush2.msra.mxu0 0.0
    %1392 = vmatprep.subr.mxu0 0.0
    %1393 = vmatpush2.msra.mxu0 0.0
    %1394 = vmatprep.subr.mxu0 0.0
    %1395 = vmatpush2.msra.mxu0 0.0
    %1396 = vmatprep.subr.mxu0 0.0
    %1397 = vmatpush2.msra.mxu0 0.0
    %1398 = vmatprep.subr.mxu0 0.0
    %1399 = vmatpush2.msra.mxu0 0.0
    %1400 = vmatprep.subr.mxu0 0.0
    %1401 = vmatpush2.msra.mxu0 0.0
    %1402 = vmatprep.subr.mxu0 0.0
    %1403 = vmatpush2.msra.mxu0 0.0
    %1404 = vmatprep.mubr.f32.mxu0 0.0
    %v1405 = vand.u32 %v1160, 4294901760
    %v1406 = vsub.f32 %v1160, %v1405
    %1407 = vmatmul.mubr.f32.gmra.mxu0 %v1406
    %v1408 = vpop.f32.mrf.mxu0
    %v1409 = vadd.f32 %v1329, %v1408
    %v1410 = vpop.f32.mrf.mxu0
    %1411 = vdwg.mxu0
    %1412 = vmatprep.subr.mxu0 0.0
    %1413 = vmatpush1.msra.mxu0 0.0
    %1414 = vmatprep.subr.mxu0 0.0
    %1415 = vmatpush1.msra.mxu0 0.0
    %1416 = vmatprep.subr.mxu0 0.0
    %1417 = vmatpush1.msra.mxu0 0.0
    %1418 = vmatprep.subr.mxu0 0.0
    %1419 = vmatpush1.msra.mxu0 0.0
    %1420 = vmatprep.subr.mxu0 0.0
    %1421 = vmatpush1.msra.mxu0 0.0
    %1422 = vmatprep.subr.mxu0 0.0
    %1423 = vmatpush1.msra.mxu0 0.0
    %1424 = vmatprep.subr.mxu0 0.0
    %1425 = vmatpush1.msra.mxu0 0.0
    %1426 = vmatprep.subr.mxu0 0.0
    %1427 = vmatpush1.msra.mxu0 0.0
    %1428 = vmatprep.subr.mxu0 0.0
    %1429 = vmatpush1.msra.mxu0 0.0
    %1430 = vmatprep.subr.mxu0 0.0
    %1431 = vmatpush1.msra.mxu0 0.0
    %1432 = vmatprep.subr.mxu0 0.0
    %1433 = vmatpush1.msra.mxu0 0.0
    %1434 = vmatprep.subr.mxu0 0.0
    %1435 = vmatpush1.msra.mxu0 0.0
    %1436 = vmatprep.subr.mxu0 0.0
    %v1437 = vand.u32 %v118, 4294901760
    %1438 = vmatpush1.msra.mxu0 %v1437
    %1439 = vmatprep.subr.mxu0 0.0
    %v1440 = vand.u32 %v117, 4294901760
    %1441 = vmatpush1.msra.mxu0 %v1440
    %1442 = vmatprep.subr.mxu0 0.0
    %v1443 = vand.u32 %v116, 4294901760
    %1444 = vmatpush1.msra.mxu0 %v1443
    %1445 = vmatprep.subr.mxu0 0.0
    %v1446 = vand.u32 %v115, 4294901760
    %1447 = vmatpush1.msra.mxu0 %v1446
    %1448 = vmatprep.subr.mxu0 0.0
    %1449 = vmatpush2.msra.mxu0 0.0
    %1450 = vmatprep.subr.mxu0 0.0
    %1451 = vmatpush2.msra.mxu0 0.0
    %1452 = vmatprep.subr.mxu0 0.0
    %1453 = vmatpush2.msra.mxu0 0.0
    %1454 = vmatprep.subr.mxu0 0.0
    %1455 = vmatpush2.msra.mxu0 0.0
    %1456 = vmatprep.subr.mxu0 0.0
    %1457 = vmatpush2.msra.mxu0 0.0
    %1458 = vmatprep.subr.mxu0 0.0
    %1459 = vmatpush2.msra.mxu0 0.0
    %1460 = vmatprep.subr.mxu0 0.0
    %1461 = vmatpush2.msra.mxu0 0.0
    %1462 = vmatprep.subr.mxu0 0.0
    %1463 = vmatpush2.msra.mxu0 0.0
    %1464 = vmatprep.subr.mxu0 0.0
    %1465 = vmatpush2.msra.mxu0 0.0
    %1466 = vmatprep.subr.mxu0 0.0
    %1467 = vmatpush2.msra.mxu0 0.0
    %1468 = vmatprep.subr.mxu0 0.0
    %1469 = vmatpush2.msra.mxu0 0.0
    %1470 = vmatprep.subr.mxu0 0.0
    %1471 = vmatpush2.msra.mxu0 0.0
    %1472 = vmatprep.subr.mxu0 0.0
    %1473 = vmatpush2.msra.mxu0 0.0
    %1474 = vmatprep.subr.mxu0 0.0
    %1475 = vmatpush2.msra.mxu0 0.0
    %1476 = vmatprep.subr.mxu0 0.0
    %1477 = vmatpush2.msra.mxu0 0.0
    %1478 = vmatprep.subr.mxu0 0.0
    %1479 = vmatpush2.msra.mxu0 0.0
    %1480 = vmatprep.mubr.f32.mxu0 0.0
    %v1481 = vand.u32 %v1160, 4294901760
    %v1482 = vsub.f32 %v1160, %v1481
    %v1483 = vand.u32 %v1482, 4294901760
    %1484 = vmatmul.mubr.f32.gmra.mxu0 %v1483
    %v1485 = vpop.f32.mrf.mxu0
    %v1486 = vadd.f32 %v1409, %v1485
    %v1487 = vpop.f32.mrf.mxu0
    %1488 = vdwg.mxu0
    %1489 = vmatprep.subr.mxu0 0.0
    %1490 = vmatpush1.msra.mxu0 0.0
    %1491 = vmatprep.subr.mxu0 0.0
    %1492 = vmatpush1.msra.mxu0 0.0
    %1493 = vmatprep.subr.mxu0 0.0
    %1494 = vmatpush1.msra.mxu0 0.0
    %1495 = vmatprep.subr.mxu0 0.0
    %1496 = vmatpush1.msra.mxu0 0.0
    %1497 = vmatprep.subr.mxu0 0.0
    %1498 = vmatpush1.msra.mxu0 0.0
    %1499 = vmatprep.subr.mxu0 0.0
    %1500 = vmatpush1.msra.mxu0 0.0
    %1501 = vmatprep.subr.mxu0 0.0
    %1502 = vmatpush1.msra.mxu0 0.0
    %1503 = vmatprep.subr.mxu0 0.0
    %1504 = vmatpush1.msra.mxu0 0.0
    %1505 = vmatprep.subr.mxu0 0.0
    %1506 = vmatpush1.msra.mxu0 0.0
    %1507 = vmatprep.subr.mxu0 0.0
    %1508 = vmatpush1.msra.mxu0 0.0
    %1509 = vmatprep.subr.mxu0 0.0
    %1510 = vmatpush1.msra.mxu0 0.0
    %1511 = vmatprep.subr.mxu0 0.0
    %1512 = vmatpush1.msra.mxu0 0.0
    %1513 = vmatprep.subr.mxu0 0.0
    %v1514 = vand.u32 %v118, 4294901760
    %v1515 = vsub.f32 %v118, %v1514
    %v1516 = vand.u32 %v1515, 4294901760
    %1517 = vmatpush1.msra.mxu0 %v1516
    %1518 = vmatprep.subr.mxu0 0.0
    %v1519 = vand.u32 %v117, 4294901760
    %v1520 = vsub.f32 %v117, %v1519
    %v1521 = vand.u32 %v1520, 4294901760
    %1522 = vmatpush1.msra.mxu0 %v1521
    %1523 = vmatprep.subr.mxu0 0.0
    %v1524 = vand.u32 %v116, 4294901760
    %v1525 = vsub.f32 %v116, %v1524
    %v1526 = vand.u32 %v1525, 4294901760
    %1527 = vmatpush1.msra.mxu0 %v1526
    %1528 = vmatprep.subr.mxu0 0.0
    %v1529 = vand.u32 %v115, 4294901760
    %v1530 = vsub.f32 %v115, %v1529
    %v1531 = vand.u32 %v1530, 4294901760
    %1532 = vmatpush1.msra.mxu0 %v1531
    %1533 = vmatprep.subr.mxu0 0.0
    %1534 = vmatpush2.msra.mxu0 0.0
    %1535 = vmatprep.subr.mxu0 0.0
    %1536 = vmatpush2.msra.mxu0 0.0
    %1537 = vmatprep.subr.mxu0 0.0
    %1538 = vmatpush2.msra.mxu0 0.0
    %1539 = vmatprep.subr.mxu0 0.0
    %1540 = vmatpush2.msra.mxu0 0.0
    %1541 = vmatprep.subr.mxu0 0.0
    %1542 = vmatpush2.msra.mxu0 0.0
    %1543 = vmatprep.subr.mxu0 0.0
    %1544 = vmatpush2.msra.mxu0 0.0
    %1545 = vmatprep.subr.mxu0 0.0
    %1546 = vmatpush2.msra.mxu0 0.0
    %1547 = vmatprep.subr.mxu0 0.0
    %1548 = vmatpush2.msra.mxu0 0.0
    %1549 = vmatprep.subr.mxu0 0.0
    %1550 = vmatpush2.msra.mxu0 0.0
    %1551 = vmatprep.subr.mxu0 0.0
    %1552 = vmatpush2.msra.mxu0 0.0
    %1553 = vmatprep.subr.mxu0 0.0
    %1554 = vmatpush2.msra.mxu0 0.0
    %1555 = vmatprep.subr.mxu0 0.0
    %1556 = vmatpush2.msra.mxu0 0.0
    %1557 = vmatprep.subr.mxu0 0.0
    %1558 = vmatpush2.msra.mxu0 0.0
    %1559 = vmatprep.subr.mxu0 0.0
    %1560 = vmatpush2.msra.mxu0 0.0
    %1561 = vmatprep.subr.mxu0 0.0
    %1562 = vmatpush2.msra.mxu0 0.0
    %1563 = vmatprep.subr.mxu0 0.0
    %1564 = vmatpush2.msra.mxu0 0.0
    %1565 = vmatprep.mubr.f32.mxu0 0.0
    %v1566 = vand.u32 %v1160, 4294901760
    %1567 = vmatmul.mubr.f32.gmra.mxu0 %v1566
    %v1568 = vpop.f32.mrf.mxu0
    %v1569 = vadd.f32 %v1486, %v1568
    %v1570 = vpop.f32.mrf.mxu0
    %1571 = vdwg.mxu0
    %1572 = vmatprep.subr.mxu0 0.0
    %1573 = vmatpush1.msra.mxu0 0.0
    %1574 = vmatprep.subr.mxu0 0.0
    %1575 = vmatpush1.msra.mxu0 0.0
    %1576 = vmatprep.subr.mxu0 0.0
    %1577 = vmatpush1.msra.mxu0 0.0
    %1578 = vmatprep.subr.mxu0 0.0
    %1579 = vmatpush1.msra.mxu0 0.0
    %1580 = vmatprep.subr.mxu0 0.0
    %1581 = vmatpush1.msra.mxu0 0.0
    %1582 = vmatprep.subr.mxu0 0.0
    %1583 = vmatpush1.msra.mxu0 0.0
    %1584 = vmatprep.subr.mxu0 0.0
    %1585 = vmatpush1.msra.mxu0 0.0
    %1586 = vmatprep.subr.mxu0 0.0
    %1587 = vmatpush1.msra.mxu0 0.0
    %1588 = vmatprep.subr.mxu0 0.0
    %1589 = vmatpush1.msra.mxu0 0.0
    %1590 = vmatprep.subr.mxu0 0.0
    %1591 = vmatpush1.msra.mxu0 0.0
    %1592 = vmatprep.subr.mxu0 0.0
    %1593 = vmatpush1.msra.mxu0 0.0
    %1594 = vmatprep.subr.mxu0 0.0
    %1595 = vmatpush1.msra.mxu0 0.0
    %1596 = vmatprep.subr.mxu0 0.0
    %v1597 = vand.u32 %v118, 4294901760
    %1598 = vmatpush1.msra.mxu0 %v1597
    %1599 = vmatprep.subr.mxu0 0.0
    %v1600 = vand.u32 %v117, 4294901760
    %1601 = vmatpush1.msra.mxu0 %v1600
    %1602 = vmatprep.subr.mxu0 0.0
    %v1603 = vand.u32 %v116, 4294901760
    %1604 = vmatpush1.msra.mxu0 %v1603
    %1605 = vmatprep.subr.mxu0 0.0
    %v1606 = vand.u32 %v115, 4294901760
    %1607 = vmatpush1.msra.mxu0 %v1606
    %1608 = vmatprep.subr.mxu0 0.0
    %1609 = vmatpush2.msra.mxu0 0.0
    %1610 = vmatprep.subr.mxu0 0.0
    %1611 = vmatpush2.msra.mxu0 0.0
    %1612 = vmatprep.subr.mxu0 0.0
    %1613 = vmatpush2.msra.mxu0 0.0
    %1614 = vmatprep.subr.mxu0 0.0
    %1615 = vmatpush2.msra.mxu0 0.0
    %1616 = vmatprep.subr.mxu0 0.0
    %1617 = vmatpush2.msra.mxu0 0.0
    %1618 = vmatprep.subr.mxu0 0.0
    %1619 = vmatpush2.msra.mxu0 0.0
    %1620 = vmatprep.subr.mxu0 0.0
    %1621 = vmatpush2.msra.mxu0 0.0
    %1622 = vmatprep.subr.mxu0 0.0
    %1623 = vmatpush2.msra.mxu0 0.0
    %1624 = vmatprep.subr.mxu0 0.0
    %1625 = vmatpush2.msra.mxu0 0.0
    %1626 = vmatprep.subr.mxu0 0.0
    %1627 = vmatpush2.msra.mxu0 0.0
    %1628 = vmatprep.subr.mxu0 0.0
    %1629 = vmatpush2.msra.mxu0 0.0
    %1630 = vmatprep.subr.mxu0 0.0
    %1631 = vmatpush2.msra.mxu0 0.0
    %1632 = vmatprep.subr.mxu0 0.0
    %1633 = vmatpush2.msra.mxu0 0.0
    %1634 = vmatprep.subr.mxu0 0.0
    %1635 = vmatpush2.msra.mxu0 0.0
    %1636 = vmatprep.subr.mxu0 0.0
    %1637 = vmatpush2.msra.mxu0 0.0
    %1638 = vmatprep.subr.mxu0 0.0
    %1639 = vmatpush2.msra.mxu0 0.0
    %1640 = vmatprep.mubr.f32.mxu0 0.0
    %v1641 = vand.u32 %v1160, 4294901760
    %1642 = vmatmul.mubr.f32.gmra.mxu0 %v1641
    %v1643 = vpop.f32.mrf.mxu0
    %v1644 = vadd.f32 %v1569, %v1643
    %v1645 = vpop.f32.mrf.mxu0
    %1646 = vdwg.mxu0
    %v1647 = vmax.f32 %v1134, %v1644
    %v1648 = vsub.f32 %v1134, %v1647
    %v1649 = vmul.f32 %v1648, 1.442695
    %v1650 = vpow.pop %v1649
    %v1651 = vsub.f32 %v1644, %v1647
    %v1652 = vmul.f32 %v1651, 1.442695
    %v1653 = vpow.pop %v1652
    %1655 = vrot.lane.b32.xlu0 %v1650, 96
    %v1656 = vpop.permute.xlu0 %1655
    %v1658 = vmul.f32 %v1155, %v1656
    %1660 = vrot.lane.b32.xlu0 %v1644, 32
    %v1661 = vpop.permute.xlu0 %1660
    %v1663 = vmul.f32 %v1653, %v1661
    %1665 = vrot.lane.b32.xlu0 %v1663, 96
    %v1666 = vpop.permute.xlu0 %1665
    %v1668 = vadd.f32 %v1658, %v1666
    %v1669 = vmul.f32 %v1157, %v1650
    %v1670 = vadd.f32 %v1669, %v1653
    %1671 = vrot.lane.b32.xlu0 %v644, 32
    %v1672 = vpop.permute.xlu0 %1671
    %v1673 = vsel %vm126, %v1672, 0
    %1675 = vmatprep.subr.mxu0 0.0
    %1676 = vmatpush1.msra.mxu0 0.0
    %1677 = vmatprep.subr.mxu0 0.0
    %1678 = vmatpush1.msra.mxu0 0.0
    %1679 = vmatprep.subr.mxu0 0.0
    %1680 = vmatpush1.msra.mxu0 0.0
    %1681 = vmatprep.subr.mxu0 0.0
    %1682 = vmatpush1.msra.mxu0 0.0
    %1683 = vmatprep.subr.mxu0 0.0
    %1684 = vmatpush1.msra.mxu0 0.0
    %1685 = vmatprep.subr.mxu0 0.0
    %1686 = vmatpush1.msra.mxu0 0.0
    %1687 = vmatprep.subr.mxu0 0.0
    %1688 = vmatpush1.msra.mxu0 0.0
    %1689 = vmatprep.subr.mxu0 0.0
    %1690 = vmatpush1.msra.mxu0 0.0
    %1691 = vmatprep.subr.mxu0 0.0
    %1692 = vmatpush1.msra.mxu0 0.0
    %1693 = vmatprep.subr.mxu0 0.0
    %1694 = vmatpush1.msra.mxu0 0.0
    %1695 = vmatprep.subr.mxu0 0.0
    %1696 = vmatpush1.msra.mxu0 0.0
    %1697 = vmatprep.subr.mxu0 0.0
    %1698 = vmatpush1.msra.mxu0 0.0
    %1699 = vmatprep.subr.mxu0 0.0
    %v1700 = vand.u32 %v118, 4294901760
    %1701 = vmatpush1.msra.mxu0 %v1700
    %1702 = vmatprep.subr.mxu0 0.0
    %v1703 = vand.u32 %v117, 4294901760
    %1704 = vmatpush1.msra.mxu0 %v1703
    %1705 = vmatprep.subr.mxu0 0.0
    %v1706 = vand.u32 %v116, 4294901760
    %1707 = vmatpush1.msra.mxu0 %v1706
    %1708 = vmatprep.subr.mxu0 0.0
    %v1709 = vand.u32 %v115, 4294901760
    %1710 = vmatpush1.msra.mxu0 %v1709
    %1711 = vmatprep.subr.mxu0 0.0
    %1712 = vmatpush2.msra.mxu0 0.0
    %1713 = vmatprep.subr.mxu0 0.0
    %1714 = vmatpush2.msra.mxu0 0.0
    %1715 = vmatprep.subr.mxu0 0.0
    %1716 = vmatpush2.msra.mxu0 0.0
    %1717 = vmatprep.subr.mxu0 0.0
    %1718 = vmatpush2.msra.mxu0 0.0
    %1719 = vmatprep.subr.mxu0 0.0
    %1720 = vmatpush2.msra.mxu0 0.0
    %1721 = vmatprep.subr.mxu0 0.0
    %1722 = vmatpush2.msra.mxu0 0.0
    %1723 = vmatprep.subr.mxu0 0.0
    %1724 = vmatpush2.msra.mxu0 0.0
    %1725 = vmatprep.subr.mxu0 0.0
    %1726 = vmatpush2.msra.mxu0 0.0
    %1727 = vmatprep.subr.mxu0 0.0
    %1728 = vmatpush2.msra.mxu0 0.0
    %1729 = vmatprep.subr.mxu0 0.0
    %1730 = vmatpush2.msra.mxu0 0.0
    %1731 = vmatprep.subr.mxu0 0.0
    %1732 = vmatpush2.msra.mxu0 0.0
    %1733 = vmatprep.subr.mxu0 0.0
    %1734 = vmatpush2.msra.mxu0 0.0
    %1735 = vmatprep.subr.mxu0 0.0
    %1736 = vmatpush2.msra.mxu0 0.0
    %1737 = vmatprep.subr.mxu0 0.0
    %1738 = vmatpush2.msra.mxu0 0.0
    %1739 = vmatprep.subr.mxu0 0.0
    %1740 = vmatpush2.msra.mxu0 0.0
    %1741 = vmatprep.subr.mxu0 0.0
    %1742 = vmatpush2.msra.mxu0 0.0
    %1743 = vmatprep.mubr.f32.mxu0 0.0
    %v1744 = vand.u32 %v1673, 4294901760
    %v1745 = vsub.f32 %v1673, %v1744
    %v1746 = vand.u32 %v1745, 4294901760
    %v1747 = vsub.f32 %v1745, %v1746
    %v1748 = vand.u32 %v1747, 4294901760
    %1749 = vmatmul.mubr.f32.gmra.mxu0 %v1748
    %v1750 = vpop.f32.mrf.mxu0
    %v1751 = vadd.f32 %v124, %v1750
    %v1752 = vpop.f32.mrf.mxu0
    %1753 = vdwg.mxu0
    %1754 = vmatprep.subr.mxu0 0.0
    %1755 = vmatpush1.msra.mxu0 0.0
    %1756 = vmatprep.subr.mxu0 0.0
    %1757 = vmatpush1.msra.mxu0 0.0
    %1758 = vmatprep.subr.mxu0 0.0
    %1759 = vmatpush1.msra.mxu0 0.0
    %1760 = vmatprep.subr.mxu0 0.0
    %1761 = vmatpush1.msra.mxu0 0.0
    %1762 = vmatprep.subr.mxu0 0.0
    %1763 = vmatpush1.msra.mxu0 0.0
    %1764 = vmatprep.subr.mxu0 0.0
    %1765 = vmatpush1.msra.mxu0 0.0
    %1766 = vmatprep.subr.mxu0 0.0
    %1767 = vmatpush1.msra.mxu0 0.0
    %1768 = vmatprep.subr.mxu0 0.0
    %1769 = vmatpush1.msra.mxu0 0.0
    %1770 = vmatprep.subr.mxu0 0.0
    %1771 = vmatpush1.msra.mxu0 0.0
    %1772 = vmatprep.subr.mxu0 0.0
    %1773 = vmatpush1.msra.mxu0 0.0
    %1774 = vmatprep.subr.mxu0 0.0
    %1775 = vmatpush1.msra.mxu0 0.0
    %1776 = vmatprep.subr.mxu0 0.0
    %1777 = vmatpush1.msra.mxu0 0.0
    %1778 = vmatprep.subr.mxu0 0.0
    %v1779 = vand.u32 %v118, 4294901760
    %v1780 = vsub.f32 %v118, %v1779
    %v1781 = vand.u32 %v1780, 4294901760
    %v1782 = vsub.f32 %v1780, %v1781
    %v1783 = vand.u32 %v1782, 4294901760
    %1784 = vmatpush1.msra.mxu0 %v1783
    %1785 = vmatprep.subr.mxu0 0.0
    %v1786 = vand.u32 %v117, 4294901760
    %v1787 = vsub.f32 %v117, %v1786
    %v1788 = vand.u32 %v1787, 4294901760
    %v1789 = vsub.f32 %v1787, %v1788
    %v1790 = vand.u32 %v1789, 4294901760
    %1791 = vmatpush1.msra.mxu0 %v1790
    %1792 = vmatprep.subr.mxu0 0.0
    %v1793 = vand.u32 %v116, 4294901760
    %v1794 = vsub.f32 %v116, %v1793
    %v1795 = vand.u32 %v1794, 4294901760
    %v1796 = vsub.f32 %v1794, %v1795
    %v1797 = vand.u32 %v1796, 4294901760
    %1798 = vmatpush1.msra.mxu0 %v1797
    %1799 = vmatprep.subr.mxu0 0.0
    %v1800 = vand.u32 %v115, 4294901760
    %v1801 = vsub.f32 %v115, %v1800
    %v1802 = vand.u32 %v1801, 4294901760
    %v1803 = vsub.f32 %v1801, %v1802
    %v1804 = vand.u32 %v1803, 4294901760
    %1805 = vmatpush1.msra.mxu0 %v1804
    %1806 = vmatprep.subr.mxu0 0.0
    %1807 = vmatpush2.msra.mxu0 0.0
    %1808 = vmatprep.subr.mxu0 0.0
    %1809 = vmatpush2.msra.mxu0 0.0
    %1810 = vmatprep.subr.mxu0 0.0
    %1811 = vmatpush2.msra.mxu0 0.0
    %1812 = vmatprep.subr.mxu0 0.0
    %1813 = vmatpush2.msra.mxu0 0.0
    %1814 = vmatprep.subr.mxu0 0.0
    %1815 = vmatpush2.msra.mxu0 0.0
    %1816 = vmatprep.subr.mxu0 0.0
    %1817 = vmatpush2.msra.mxu0 0.0
    %1818 = vmatprep.subr.mxu0 0.0
    %1819 = vmatpush2.msra.mxu0 0.0
    %1820 = vmatprep.subr.mxu0 0.0
    %1821 = vmatpush2.msra.mxu0 0.0
    %1822 = vmatprep.subr.mxu0 0.0
    %1823 = vmatpush2.msra.mxu0 0.0
    %1824 = vmatprep.subr.mxu0 0.0
    %1825 = vmatpush2.msra.mxu0 0.0
    %1826 = vmatprep.subr.mxu0 0.0
    %1827 = vmatpush2.msra.mxu0 0.0
    %1828 = vmatprep.subr.mxu0 0.0
    %1829 = vmatpush2.msra.mxu0 0.0
    %1830 = vmatprep.subr.mxu0 0.0
    %1831 = vmatpush2.msra.mxu0 0.0
    %1832 = vmatprep.subr.mxu0 0.0
    %1833 = vmatpush2.msra.mxu0 0.0
    %1834 = vmatprep.subr.mxu0 0.0
    %1835 = vmatpush2.msra.mxu0 0.0
    %1836 = vmatprep.subr.mxu0 0.0
    %1837 = vmatpush2.msra.mxu0 0.0
    %1838 = vmatprep.mubr.f32.mxu0 0.0
    %v1839 = vand.u32 %v1673, 4294901760
    %1840 = vmatmul.mubr.f32.gmra.mxu0 %v1839
    %v1841 = vpop.f32.mrf.mxu0
    %v1842 = vadd.f32 %v1751, %v1841
    %v1843 = vpop.f32.mrf.mxu0
    %1844 = vdwg.mxu0
    %1845 = vmatprep.subr.mxu0 0.0
    %1846 = vmatpush1.msra.mxu0 0.0
    %1847 = vmatprep.subr.mxu0 0.0
    %1848 = vmatpush1.msra.mxu0 0.0
    %1849 = vmatprep.subr.mxu0 0.0
    %1850 = vmatpush1.msra.mxu0 0.0
    %1851 = vmatprep.subr.mxu0 0.0
    %1852 = vmatpush1.msra.mxu0 0.0
    %1853 = vmatprep.subr.mxu0 0.0
    %1854 = vmatpush1.msra.mxu0 0.0
    %1855 = vmatprep.subr.mxu0 0.0
    %1856 = vmatpush1.msra.mxu0 0.0
    %1857 = vmatprep.subr.mxu0 0.0
    %1858 = vmatpush1.msra.mxu0 0.0
    %1859 = vmatprep.subr.mxu0 0.0
    %1860 = vmatpush1.msra.mxu0 0.0
    %1861 = vmatprep.subr.mxu0 0.0
    %1862 = vmatpush1.msra.mxu0 0.0
    %1863 = vmatprep.subr.mxu0 0.0
    %1864 = vmatpush1.msra.mxu0 0.0
    %1865 = vmatprep.subr.mxu0 0.0
    %1866 = vmatpush1.msra.mxu0 0.0
    %1867 = vmatprep.subr.mxu0 0.0
    %1868 = vmatpush1.msra.mxu0 0.0
    %1869 = vmatprep.subr.mxu0 0.0
    %v1870 = vand.u32 %v118, 4294901760
    %v1871 = vsub.f32 %v118, %v1870
    %1872 = vmatpush1.msra.mxu0 %v1871
    %1873 = vmatprep.subr.mxu0 0.0
    %v1874 = vand.u32 %v117, 4294901760
    %v1875 = vsub.f32 %v117, %v1874
    %1876 = vmatpush1.msra.mxu0 %v1875
    %1877 = vmatprep.subr.mxu0 0.0
    %v1878 = vand.u32 %v116, 4294901760
    %v1879 = vsub.f32 %v116, %v1878
    %1880 = vmatpush1.msra.mxu0 %v1879
    %1881 = vmatprep.subr.mxu0 0.0
    %v1882 = vand.u32 %v115, 4294901760
    %v1883 = vsub.f32 %v115, %v1882
    %1884 = vmatpush1.msra.mxu0 %v1883
    %1885 = vmatprep.subr.mxu0 0.0
    %1886 = vmatpush2.msra.mxu0 0.0
    %1887 = vmatprep.subr.mxu0 0.0
    %1888 = vmatpush2.msra.mxu0 0.0
    %1889 = vmatprep.subr.mxu0 0.0
    %1890 = vmatpush2.msra.mxu0 0.0
    %1891 = vmatprep.subr.mxu0 0.0
    %1892 = vmatpush2.msra.mxu0 0.0
    %1893 = vmatprep.subr.mxu0 0.0
    %1894 = vmatpush2.msra.mxu0 0.0
    %1895 = vmatprep.subr.mxu0 0.0
    %1896 = vmatpush2.msra.mxu0 0.0
    %1897 = vmatprep.subr.mxu0 0.0
    %1898 = vmatpush2.msra.mxu0 0.0
    %1899 = vmatprep.subr.mxu0 0.0
    %1900 = vmatpush2.msra.mxu0 0.0
    %1901 = vmatprep.subr.mxu0 0.0
    %1902 = vmatpush2.msra.mxu0 0.0
    %1903 = vmatprep.subr.mxu0 0.0
    %1904 = vmatpush2.msra.mxu0 0.0
    %1905 = vmatprep.subr.mxu0 0.0
    %1906 = vmatpush2.msra.mxu0 0.0
    %1907 = vmatprep.subr.mxu0 0.0
    %1908 = vmatpush2.msra.mxu0 0.0
    %1909 = vmatprep.subr.mxu0 0.0
    %1910 = vmatpush2.msra.mxu0 0.0
    %1911 = vmatprep.subr.mxu0 0.0
    %1912 = vmatpush2.msra.mxu0 0.0
    %1913 = vmatprep.subr.mxu0 0.0
    %1914 = vmatpush2.msra.mxu0 0.0
    %1915 = vmatprep.subr.mxu0 0.0
    %1916 = vmatpush2.msra.mxu0 0.0
    %1917 = vmatprep.mubr.f32.mxu0 0.0
    %v1918 = vand.u32 %v1673, 4294901760
    %v1919 = vsub.f32 %v1673, %v1918
    %1920 = vmatmul.mubr.f32.gmra.mxu0 %v1919
    %v1921 = vpop.f32.mrf.mxu0
    %v1922 = vadd.f32 %v1842, %v1921
    %v1923 = vpop.f32.mrf.mxu0
    %1924 = vdwg.mxu0
    %1925 = vmatprep.subr.mxu0 0.0
    %1926 = vmatpush1.msra.mxu0 0.0
    %1927 = vmatprep.subr.mxu0 0.0
    %1928 = vmatpush1.msra.mxu0 0.0
    %1929 = vmatprep.subr.mxu0 0.0
    %1930 = vmatpush1.msra.mxu0 0.0
    %1931 = vmatprep.subr.mxu0 0.0
    %1932 = vmatpush1.msra.mxu0 0.0
    %1933 = vmatprep.subr.mxu0 0.0
    %1934 = vmatpush1.msra.mxu0 0.0
    %1935 = vmatprep.subr.mxu0 0.0
    %1936 = vmatpush1.msra.mxu0 0.0
    %1937 = vmatprep.subr.mxu0 0.0
    %1938 = vmatpush1.msra.mxu0 0.0
    %1939 = vmatprep.subr.mxu0 0.0
    %1940 = vmatpush1.msra.mxu0 0.0
    %1941 = vmatprep.subr.mxu0 0.0
    %1942 = vmatpush1.msra.mxu0 0.0
    %1943 = vmatprep.subr.mxu0 0.0
    %1944 = vmatpush1.msra.mxu0 0.0
    %1945 = vmatprep.subr.mxu0 0.0
    %1946 = vmatpush1.msra.mxu0 0.0
    %1947 = vmatprep.subr.mxu0 0.0
    %1948 = vmatpush1.msra.mxu0 0.0
    %1949 = vmatprep.subr.mxu0 0.0
    %v1950 = vand.u32 %v118, 4294901760
    %1951 = vmatpush1.msra.mxu0 %v1950
    %1952 = vmatprep.subr.mxu0 0.0
    %v1953 = vand.u32 %v117, 4294901760
    %1954 = vmatpush1.msra.mxu0 %v1953
    %1955 = vmatprep.subr.mxu0 0.0
    %v1956 = vand.u32 %v116, 4294901760
    %1957 = vmatpush1.msra.mxu0 %v1956
    %1958 = vmatprep.subr.mxu0 0.0
    %v1959 = vand.u32 %v115, 4294901760
    %1960 = vmatpush1.msra.mxu0 %v1959
    %1961 = vmatprep.subr.mxu0 0.0
    %1962 = vmatpush2.msra.mxu0 0.0
    %1963 = vmatprep.subr.mxu0 0.0
    %1964 = vmatpush2.msra.mxu0 0.0
    %1965 = vmatprep.subr.mxu0 0.0
    %1966 = vmatpush2.msra.mxu0 0.0
    %1967 = vmatprep.subr.mxu0 0.0
    %1968 = vmatpush2.msra.mxu0 0.0
    %1969 = vmatprep.subr.mxu0 0.0
    %1970 = vmatpush2.msra.mxu0 0.0
    %1971 = vmatprep.subr.mxu0 0.0
    %1972 = vmatpush2.msra.mxu0 0.0
    %1973 = vmatprep.subr.mxu0 0.0
    %1974 = vmatpush2.msra.mxu0 0.0
    %1975 = vmatprep.subr.mxu0 0.0
    %1976 = vmatpush2.msra.mxu0 0.0
    %1977 = vmatprep.subr.mxu0 0.0
    %1978 = vmatpush2.msra.mxu0 0.0
    %1979 = vmatprep.subr.mxu0 0.0
    %1980 = vmatpush2.msra.mxu0 0.0
    %1981 = vmatprep.subr.mxu0 0.0
    %1982 = vmatpush2.msra.mxu0 0.0
    %1983 = vmatprep.subr.mxu0 0.0
    %1984 = vmatpush2.msra.mxu0 0.0
    %1985 = vmatprep.subr.mxu0 0.0
    %1986 = vmatpush2.msra.mxu0 0.0
    %1987 = vmatprep.subr.mxu0 0.0
    %1988 = vmatpush2.msra.mxu0 0.0
    %1989 = vmatprep.subr.mxu0 0.0
    %1990 = vmatpush2.msra.mxu0 0.0
    %1991 = vmatprep.subr.mxu0 0.0
    %1992 = vmatpush2.msra.mxu0 0.0
    %1993 = vmatprep.mubr.f32.mxu0 0.0
    %v1994 = vand.u32 %v1673, 4294901760
    %v1995 = vsub.f32 %v1673, %v1994
    %v1996 = vand.u32 %v1995, 4294901760
    %1997 = vmatmul.mubr.f32.gmra.mxu0 %v1996
    %v1998 = vpop.f32.mrf.mxu0
    %v1999 = vadd.f32 %v1922, %v1998
    %v2000 = vpop.f32.mrf.mxu0
    %2001 = vdwg.mxu0
    %2002 = vmatprep.subr.mxu0 0.0
    %2003 = vmatpush1.msra.mxu0 0.0
    %2004 = vmatprep.subr.mxu0 0.0
    %2005 = vmatpush1.msra.mxu0 0.0
    %2006 = vmatprep.subr.mxu0 0.0
    %2007 = vmatpush1.msra.mxu0 0.0
    %2008 = vmatprep.subr.mxu0 0.0
    %2009 = vmatpush1.msra.mxu0 0.0
    %2010 = vmatprep.subr.mxu0 0.0
    %2011 = vmatpush1.msra.mxu0 0.0
    %2012 = vmatprep.subr.mxu0 0.0
    %2013 = vmatpush1.msra.mxu0 0.0
    %2014 = vmatprep.subr.mxu0 0.0
    %2015 = vmatpush1.msra.mxu0 0.0
    %2016 = vmatprep.subr.mxu0 0.0
    %2017 = vmatpush1.msra.mxu0 0.0
    %2018 = vmatprep.subr.mxu0 0.0
    %2019 = vmatpush1.msra.mxu0 0.0
    %2020 = vmatprep.subr.mxu0 0.0
    %2021 = vmatpush1.msra.mxu0 0.0
    %2022 = vmatprep.subr.mxu0 0.0
    %2023 = vmatpush1.msra.mxu0 0.0
    %2024 = vmatprep.subr.mxu0 0.0
    %2025 = vmatpush1.msra.mxu0 0.0
    %2026 = vmatprep.subr.mxu0 0.0
    %v2027 = vand.u32 %v118, 4294901760
    %v2028 = vsub.f32 %v118, %v2027
    %v2029 = vand.u32 %v2028, 4294901760
    %2030 = vmatpush1.msra.mxu0 %v2029
    %2031 = vmatprep.subr.mxu0 0.0
    %v2032 = vand.u32 %v117, 4294901760
    %v2033 = vsub.f32 %v117, %v2032
    %v2034 = vand.u32 %v2033, 4294901760
    %2035 = vmatpush1.msra.mxu0 %v2034
    %2036 = vmatprep.subr.mxu0 0.0
    %v2037 = vand.u32 %v116, 4294901760
    %v2038 = vsub.f32 %v116, %v2037
    %v2039 = vand.u32 %v2038, 4294901760
    %2040 = vmatpush1.msra.mxu0 %v2039
    %2041 = vmatprep.subr.mxu0 0.0
    %v2042 = vand.u32 %v115, 4294901760
    %v2043 = vsub.f32 %v115, %v2042
    %v2044 = vand.u32 %v2043, 4294901760
    %2045 = vmatpush1.msra.mxu0 %v2044
    %2046 = vmatprep.subr.mxu0 0.0
    %2047 = vmatpush2.msra.mxu0 0.0
    %2048 = vmatprep.subr.mxu0 0.0
    %2049 = vmatpush2.msra.mxu0 0.0
    %2050 = vmatprep.subr.mxu0 0.0
    %2051 = vmatpush2.msra.mxu0 0.0
    %2052 = vmatprep.subr.mxu0 0.0
    %2053 = vmatpush2.msra.mxu0 0.0
    %2054 = vmatprep.subr.mxu0 0.0
    %2055 = vmatpush2.msra.mxu0 0.0
    %2056 = vmatprep.subr.mxu0 0.0
    %2057 = vmatpush2.msra.mxu0 0.0
    %2058 = vmatprep.subr.mxu0 0.0
    %2059 = vmatpush2.msra.mxu0 0.0
    %2060 = vmatprep.subr.mxu0 0.0
    %2061 = vmatpush2.msra.mxu0 0.0
    %2062 = vmatprep.subr.mxu0 0.0
    %2063 = vmatpush2.msra.mxu0 0.0
    %2064 = vmatprep.subr.mxu0 0.0
    %2065 = vmatpush2.msra.mxu0 0.0
    %2066 = vmatprep.subr.mxu0 0.0
    %2067 = vmatpush2.msra.mxu0 0.0
    %2068 = vmatprep.subr.mxu0 0.0
    %2069 = vmatpush2.msra.mxu0 0.0
    %2070 = vmatprep.subr.mxu0 0.0
    %2071 = vmatpush2.msra.mxu0 0.0
    %2072 = vmatprep.subr.mxu0 0.0
    %2073 = vmatpush2.msra.mxu0 0.0
    %2074 = vmatprep.subr.mxu0 0.0
    %2075 = vmatpush2.msra.mxu0 0.0
    %2076 = vmatprep.subr.mxu0 0.0
    %2077 = vmatpush2.msra.mxu0 0.0
    %2078 = vmatprep.mubr.f32.mxu0 0.0
    %v2079 = vand.u32 %v1673, 4294901760
    %2080 = vmatmul.mubr.f32.gmra.mxu0 %v2079
    %v2081 = vpop.f32.mrf.mxu0
    %v2082 = vadd.f32 %v1999, %v2081
    %v2083 = vpop.f32.mrf.mxu0
    %2084 = vdwg.mxu0
    %2085 = vmatprep.subr.mxu0 0.0
    %2086 = vmatpush1.msra.mxu0 0.0
    %2087 = vmatprep.subr.mxu0 0.0
    %2088 = vmatpush1.msra.mxu0 0.0
    %2089 = vmatprep.subr.mxu0 0.0
    %2090 = vmatpush1.msra.mxu0 0.0
    %2091 = vmatprep.subr.mxu0 0.0
    %2092 = vmatpush1.msra.mxu0 0.0
    %2093 = vmatprep.subr.mxu0 0.0
    %2094 = vmatpush1.msra.mxu0 0.0
    %2095 = vmatprep.subr.mxu0 0.0
    %2096 = vmatpush1.msra.mxu0 0.0
    %2097 = vmatprep.subr.mxu0 0.0
    %2098 = vmatpush1.msra.mxu0 0.0
    %2099 = vmatprep.subr.mxu0 0.0
    %2100 = vmatpush1.msra.mxu0 0.0
    %2101 = vmatprep.subr.mxu0 0.0
    %2102 = vmatpush1.msra.mxu0 0.0
    %2103 = vmatprep.subr.mxu0 0.0
    %2104 = vmatpush1.msra.mxu0 0.0
    %2105 = vmatprep.subr.mxu0 0.0
    %2106 = vmatpush1.msra.mxu0 0.0
    %2107 = vmatprep.subr.mxu0 0.0
    %2108 = vmatpush1.msra.mxu0 0.0
    %2109 = vmatprep.subr.mxu0 0.0
    %v2110 = vand.u32 %v118, 4294901760
    %2111 = vmatpush1.msra.mxu0 %v2110
    %2112 = vmatprep.subr.mxu0 0.0
    %v2113 = vand.u32 %v117, 4294901760
    %2114 = vmatpush1.msra.mxu0 %v2113
    %2115 = vmatprep.subr.mxu0 0.0
    %v2116 = vand.u32 %v116, 4294901760
    %2117 = vmatpush1.msra.mxu0 %v2116
    %2118 = vmatprep.subr.mxu0 0.0
    %v2119 = vand.u32 %v115, 4294901760
    %2120 = vmatpush1.msra.mxu0 %v2119
    %2121 = vmatprep.subr.mxu0 0.0
    %2122 = vmatpush2.msra.mxu0 0.0
    %2123 = vmatprep.subr.mxu0 0.0
    %2124 = vmatpush2.msra.mxu0 0.0
    %2125 = vmatprep.subr.mxu0 0.0
    %2126 = vmatpush2.msra.mxu0 0.0
    %2127 = vmatprep.subr.mxu0 0.0
    %2128 = vmatpush2.msra.mxu0 0.0
    %2129 = vmatprep.subr.mxu0 0.0
    %2130 = vmatpush2.msra.mxu0 0.0
    %2131 = vmatprep.subr.mxu0 0.0
    %2132 = vmatpush2.msra.mxu0 0.0
    %2133 = vmatprep.subr.mxu0 0.0
    %2134 = vmatpush2.msra.mxu0 0.0
    %2135 = vmatprep.subr.mxu0 0.0
    %2136 = vmatpush2.msra.mxu0 0.0
    %2137 = vmatprep.subr.mxu0 0.0
    %2138 = vmatpush2.msra.mxu0 0.0
    %2139 = vmatprep.subr.mxu0 0.0
    %2140 = vmatpush2.msra.mxu0 0.0
    %2141 = vmatprep.subr.mxu0 0.0
    %2142 = vmatpush2.msra.mxu0 0.0
    %2143 = vmatprep.subr.mxu0 0.0
    %2144 = vmatpush2.msra.mxu0 0.0
    %2145 = vmatprep.subr.mxu0 0.0
    %2146 = vmatpush2.msra.mxu0 0.0
    %2147 = vmatprep.subr.mxu0 0.0
    %2148 = vmatpush2.msra.mxu0 0.0
    %2149 = vmatprep.subr.mxu0 0.0
    %2150 = vmatpush2.msra.mxu0 0.0
    %2151 = vmatprep.subr.mxu0 0.0
    %2152 = vmatpush2.msra.mxu0 0.0
    %2153 = vmatprep.mubr.f32.mxu0 0.0
    %v2154 = vand.u32 %v1673, 4294901760
    %2155 = vmatmul.mubr.f32.gmra.mxu0 %v2154
    %v2156 = vpop.f32.mrf.mxu0
    %v2157 = vadd.f32 %v2082, %v2156
    %v2158 = vpop.f32.mrf.mxu0
    %2159 = vdwg.mxu0
    %v2160 = vmax.f32 %v1647, %v2157
    %v2161 = vsub.f32 %v1647, %v2160
    %v2162 = vmul.f32 %v2161, 1.442695
    %v2163 = vpow.pop %v2162
    %v2164 = vsub.f32 %v2157, %v2160
    %v2165 = vmul.f32 %v2164, 1.442695
    %v2166 = vpow.pop %v2165
    %2168 = vrot.lane.b32.xlu0 %v2163, 96
    %v2169 = vpop.permute.xlu0 %2168
    %v2171 = vmul.f32 %v1668, %v2169
    %2173 = vrot.lane.b32.xlu0 %v2157, 32
    %v2174 = vpop.permute.xlu0 %2173
    %v2176 = vmul.f32 %v2166, %v2174
    %2178 = vrot.lane.b32.xlu0 %v2176, 96
    %v2179 = vpop.permute.xlu0 %2178
    %v2181 = vadd.f32 %v2171, %v2179
    %v2182 = vmul.f32 %v1670, %v2163
    %v2183 = vadd.f32 %v2182, %v2166
    %v2184 = vcombine.high %v644, %v644
    %v2185 = vsel %vm126, %v2184, 0
    %2187 = vmatprep.subr.mxu0 0.0
    %2188 = vmatpush1.msra.mxu0 0.0
    %2189 = vmatprep.subr.mxu0 0.0
    %2190 = vmatpush1.msra.mxu0 0.0
    %2191 = vmatprep.subr.mxu0 0.0
    %2192 = vmatpush1.msra.mxu0 0.0
    %2193 = vmatprep.subr.mxu0 0.0
    %2194 = vmatpush1.msra.mxu0 0.0
    %2195 = vmatprep.subr.mxu0 0.0
    %2196 = vmatpush1.msra.mxu0 0.0
    %2197 = vmatprep.subr.mxu0 0.0
    %2198 = vmatpush1.msra.mxu0 0.0
    %2199 = vmatprep.subr.mxu0 0.0
    %2200 = vmatpush1.msra.mxu0 0.0
    %2201 = vmatprep.subr.mxu0 0.0
    %2202 = vmatpush1.msra.mxu0 0.0
    %2203 = vmatprep.subr.mxu0 0.0
    %2204 = vmatpush1.msra.mxu0 0.0
    %2205 = vmatprep.subr.mxu0 0.0
    %2206 = vmatpush1.msra.mxu0 0.0
    %2207 = vmatprep.subr.mxu0 0.0
    %2208 = vmatpush1.msra.mxu0 0.0
    %2209 = vmatprep.subr.mxu0 0.0
    %2210 = vmatpush1.msra.mxu0 0.0
    %2211 = vmatprep.subr.mxu0 0.0
    %v2212 = vand.u32 %v118, 4294901760
    %2213 = vmatpush1.msra.mxu0 %v2212
    %2214 = vmatprep.subr.mxu0 0.0
    %v2215 = vand.u32 %v117, 4294901760
    %2216 = vmatpush1.msra.mxu0 %v2215
    %2217 = vmatprep.subr.mxu0 0.0
    %v2218 = vand.u32 %v116, 4294901760
    %2219 = vmatpush1.msra.mxu0 %v2218
    %2220 = vmatprep.subr.mxu0 0.0
    %v2221 = vand.u32 %v115, 4294901760
    %2222 = vmatpush1.msra.mxu0 %v2221
    %2223 = vmatprep.subr.mxu0 0.0
    %2224 = vmatpush2.msra.mxu0 0.0
    %2225 = vmatprep.subr.mxu0 0.0
    %2226 = vmatpush2.msra.mxu0 0.0
    %2227 = vmatprep.subr.mxu0 0.0
    %2228 = vmatpush2.msra.mxu0 0.0
    %2229 = vmatprep.subr.mxu0 0.0
    %2230 = vmatpush2.msra.mxu0 0.0
    %2231 = vmatprep.subr.mxu0 0.0
    %2232 = vmatpush2.msra.mxu0 0.0
    %2233 = vmatprep.subr.mxu0 0.0
    %2234 = vmatpush2.msra.mxu0 0.0
    %2235 = vmatprep.subr.mxu0 0.0
    %2236 = vmatpush2.msra.mxu0 0.0
    %2237 = vmatprep.subr.mxu0 0.0
    %2238 = vmatpush2.msra.mxu0 0.0
    %2239 = vmatprep.subr.mxu0 0.0
    %2240 = vmatpush2.msra.mxu0 0.0
    %2241 = vmatprep.subr.mxu0 0.0
    %2242 = vmatpush2.msra.mxu0 0.0
    %2243 = vmatprep.subr.mxu0 0.0
    %2244 = vmatpush2.msra.mxu0 0.0
    %2245 = vmatprep.subr.mxu0 0.0
    %2246 = vmatpush2.msra.mxu0 0.0
    %2247 = vmatprep.subr.mxu0 0.0
    %2248 = vmatpush2.msra.mxu0 0.0
    %2249 = vmatprep.subr.mxu0 0.0
    %2250 = vmatpush2.msra.mxu0 0.0
    %2251 = vmatprep.subr.mxu0 0.0
    %2252 = vmatpush2.msra.mxu0 0.0
    %2253 = vmatprep.subr.mxu0 0.0
    %2254 = vmatpush2.msra.mxu0 0.0
    %2255 = vmatprep.mubr.f32.mxu0 0.0
    %v2256 = vand.u32 %v2185, 4294901760
    %v2257 = vsub.f32 %v2185, %v2256
    %v2258 = vand.u32 %v2257, 4294901760
    %v2259 = vsub.f32 %v2257, %v2258
    %v2260 = vand.u32 %v2259, 4294901760
    %2261 = vmatmul.mubr.f32.gmra.mxu0 %v2260
    %v2262 = vpop.f32.mrf.mxu0
    %v2263 = vadd.f32 %v124, %v2262
    %v2264 = vpop.f32.mrf.mxu0
    %2265 = vdwg.mxu0
    %2266 = vmatprep.subr.mxu0 0.0
    %2267 = vmatpush1.msra.mxu0 0.0
    %2268 = vmatprep.subr.mxu0 0.0
    %2269 = vmatpush1.msra.mxu0 0.0
    %2270 = vmatprep.subr.mxu0 0.0
    %2271 = vmatpush1.msra.mxu0 0.0
    %2272 = vmatprep.subr.mxu0 0.0
    %2273 = vmatpush1.msra.mxu0 0.0
    %2274 = vmatprep.subr.mxu0 0.0
    %2275 = vmatpush1.msra.mxu0 0.0
    %2276 = vmatprep.subr.mxu0 0.0
    %2277 = vmatpush1.msra.mxu0 0.0
    %2278 = vmatprep.subr.mxu0 0.0
    %2279 = vmatpush1.msra.mxu0 0.0
    %2280 = vmatprep.subr.mxu0 0.0
    %2281 = vmatpush1.msra.mxu0 0.0
    %2282 = vmatprep.subr.mxu0 0.0
    %2283 = vmatpush1.msra.mxu0 0.0
    %2284 = vmatprep.subr.mxu0 0.0
    %2285 = vmatpush1.msra.mxu0 0.0
    %2286 = vmatprep.subr.mxu0 0.0
    %2287 = vmatpush1.msra.mxu0 0.0
    %2288 = vmatprep.subr.mxu0 0.0
    %2289 = vmatpush1.msra.mxu0 0.0
    %2290 = vmatprep.subr.mxu0 0.0
    %v2291 = vand.u32 %v118, 4294901760
    %v2292 = vsub.f32 %v118, %v2291
    %v2293 = vand.u32 %v2292, 4294901760
    %v2294 = vsub.f32 %v2292, %v2293
    %v2295 = vand.u32 %v2294, 4294901760
    %2296 = vmatpush1.msra.mxu0 %v2295
    %2297 = vmatprep.subr.mxu0 0.0
    %v2298 = vand.u32 %v117, 4294901760
    %v2299 = vsub.f32 %v117, %v2298
    %v2300 = vand.u32 %v2299, 4294901760
    %v2301 = vsub.f32 %v2299, %v2300
    %v2302 = vand.u32 %v2301, 4294901760
    %2303 = vmatpush1.msra.mxu0 %v2302
    %2304 = vmatprep.subr.mxu0 0.0
    %v2305 = vand.u32 %v116, 4294901760
    %v2306 = vsub.f32 %v116, %v2305
    %v2307 = vand.u32 %v2306, 4294901760
    %v2308 = vsub.f32 %v2306, %v2307
    %v2309 = vand.u32 %v2308, 4294901760
    %2310 = vmatpush1.msra.mxu0 %v2309
    %2311 = vmatprep.subr.mxu0 0.0
    %v2312 = vand.u32 %v115, 4294901760
    %v2313 = vsub.f32 %v115, %v2312
    %v2314 = vand.u32 %v2313, 4294901760
    %v2315 = vsub.f32 %v2313, %v2314
    %v2316 = vand.u32 %v2315, 4294901760
    %2317 = vmatpush1.msra.mxu0 %v2316
    %2318 = vmatprep.subr.mxu0 0.0
    %2319 = vmatpush2.msra.mxu0 0.0
    %2320 = vmatprep.subr.mxu0 0.0
    %2321 = vmatpush2.msra.mxu0 0.0
    %2322 = vmatprep.subr.mxu0 0.0
    %2323 = vmatpush2.msra.mxu0 0.0
    %2324 = vmatprep.subr.mxu0 0.0
    %2325 = vmatpush2.msra.mxu0 0.0
    %2326 = vmatprep.subr.mxu0 0.0
    %2327 = vmatpush2.msra.mxu0 0.0
    %2328 = vmatprep.subr.mxu0 0.0
    %2329 = vmatpush2.msra.mxu0 0.0
    %2330 = vmatprep.subr.mxu0 0.0
    %2331 = vmatpush2.msra.mxu0 0.0
    %2332 = vmatprep.subr.mxu0 0.0
    %2333 = vmatpush2.msra.mxu0 0.0
    %2334 = vmatprep.subr.mxu0 0.0
    %2335 = vmatpush2.msra.mxu0 0.0
    %2336 = vmatprep.subr.mxu0 0.0
    %2337 = vmatpush2.msra.mxu0 0.0
    %2338 = vmatprep.subr.mxu0 0.0
    %2339 = vmatpush2.msra.mxu0 0.0
    %2340 = vmatprep.subr.mxu0 0.0
    %2341 = vmatpush2.msra.mxu0 0.0
    %2342 = vmatprep.subr.mxu0 0.0
    %2343 = vmatpush2.msra.mxu0 0.0
    %2344 = vmatprep.subr.mxu0 0.0
    %2345 = vmatpush2.msra.mxu0 0.0
    %2346 = vmatprep.subr.mxu0 0.0
    %2347 = vmatpush2.msra.mxu0 0.0
    %2348 = vmatprep.subr.mxu0 0.0
    %2349 = vmatpush2.msra.mxu0 0.0
    %2350 = vmatprep.mubr.f32.mxu0 0.0
    %v2351 = vand.u32 %v2185, 4294901760
    %2352 = vmatmul.mubr.f32.gmra.mxu0 %v2351
    %v2353 = vpop.f32.mrf.mxu0
    %v2354 = vadd.f32 %v2263, %v2353
    %v2355 = vpop.f32.mrf.mxu0
    %2356 = vdwg.mxu0
    %2357 = vmatprep.subr.mxu0 0.0
    %2358 = vmatpush1.msra.mxu0 0.0
    %2359 = vmatprep.subr.mxu0 0.0
    %2360 = vmatpush1.msra.mxu0 0.0
    %2361 = vmatprep.subr.mxu0 0.0
    %2362 = vmatpush1.msra.mxu0 0.0
    %2363 = vmatprep.subr.mxu0 0.0
    %2364 = vmatpush1.msra.mxu0 0.0
    %2365 = vmatprep.subr.mxu0 0.0
    %2366 = vmatpush1.msra.mxu0 0.0
    %2367 = vmatprep.subr.mxu0 0.0
    %2368 = vmatpush1.msra.mxu0 0.0
    %2369 = vmatprep.subr.mxu0 0.0
    %2370 = vmatpush1.msra.mxu0 0.0
    %2371 = vmatprep.subr.mxu0 0.0
    %2372 = vmatpush1.msra.mxu0 0.0
    %2373 = vmatprep.subr.mxu0 0.0
    %2374 = vmatpush1.msra.mxu0 0.0
    %2375 = vmatprep.subr.mxu0 0.0
    %2376 = vmatpush1.msra.mxu0 0.0
    %2377 = vmatprep.subr.mxu0 0.0
    %2378 = vmatpush1.msra.mxu0 0.0
    %2379 = vmatprep.subr.mxu0 0.0
    %2380 = vmatpush1.msra.mxu0 0.0
    %2381 = vmatprep.subr.mxu0 0.0
    %v2382 = vand.u32 %v118, 4294901760
    %v2383 = vsub.f32 %v118, %v2382
    %2384 = vmatpush1.msra.mxu0 %v2383
    %2385 = vmatprep.subr.mxu0 0.0
    %v2386 = vand.u32 %v117, 4294901760
    %v2387 = vsub.f32 %v117, %v2386
    %2388 = vmatpush1.msra.mxu0 %v2387
    %2389 = vmatprep.subr.mxu0 0.0
    %v2390 = vand.u32 %v116, 4294901760
    %v2391 = vsub.f32 %v116, %v2390
    %2392 = vmatpush1.msra.mxu0 %v2391
    %2393 = vmatprep.subr.mxu0 0.0
    %v2394 = vand.u32 %v115, 4294901760
    %v2395 = vsub.f32 %v115, %v2394
    %2396 = vmatpush1.msra.mxu0 %v2395
    %2397 = vmatprep.subr.mxu0 0.0
    %2398 = vmatpush2.msra.mxu0 0.0
    %2399 = vmatprep.subr.mxu0 0.0
    %2400 = vmatpush2.msra.mxu0 0.0
    %2401 = vmatprep.subr.mxu0 0.0
    %2402 = vmatpush2.msra.mxu0 0.0
    %2403 = vmatprep.subr.mxu0 0.0
    %2404 = vmatpush2.msra.mxu0 0.0
    %2405 = vmatprep.subr.mxu0 0.0
    %2406 = vmatpush2.msra.mxu0 0.0
    %2407 = vmatprep.subr.mxu0 0.0
    %2408 = vmatpush2.msra.mxu0 0.0
    %2409 = vmatprep.subr.mxu0 0.0
    %2410 = vmatpush2.msra.mxu0 0.0
    %2411 = vmatprep.subr.mxu0 0.0
    %2412 = vmatpush2.msra.mxu0 0.0
    %2413 = vmatprep.subr.mxu0 0.0
    %2414 = vmatpush2.msra.mxu0 0.0
    %2415 = vmatprep.subr.mxu0 0.0
    %2416 = vmatpush2.msra.mxu0 0.0
    %2417 = vmatprep.subr.mxu0 0.0
    %2418 = vmatpush2.msra.mxu0 0.0
    %2419 = vmatprep.subr.mxu0 0.0
    %2420 = vmatpush2.msra.mxu0 0.0
    %2421 = vmatprep.subr.mxu0 0.0
    %2422 = vmatpush2.msra.mxu0 0.0
    %2423 = vmatprep.subr.mxu0 0.0
    %2424 = vmatpush2.msra.mxu0 0.0
    %2425 = vmatprep.subr.mxu0 0.0
    %2426 = vmatpush2.msra.mxu0 0.0
    %2427 = vmatprep.subr.mxu0 0.0
    %2428 = vmatpush2.msra.mxu0 0.0
    %2429 = vmatprep.mubr.f32.mxu0 0.0
    %v2430 = vand.u32 %v2185, 4294901760
    %v2431 = vsub.f32 %v2185, %v2430
    %2432 = vmatmul.mubr.f32.gmra.mxu0 %v2431
    %v2433 = vpop.f32.mrf.mxu0
    %v2434 = vadd.f32 %v2354, %v2433
    %v2435 = vpop.f32.mrf.mxu0
    %2436 = vdwg.mxu0
    %2437 = vmatprep.subr.mxu0 0.0
    %2438 = vmatpush1.msra.mxu0 0.0
    %2439 = vmatprep.subr.mxu0 0.0
    %2440 = vmatpush1.msra.mxu0 0.0
    %2441 = vmatprep.subr.mxu0 0.0
    %2442 = vmatpush1.msra.mxu0 0.0
    %2443 = vmatprep.subr.mxu0 0.0
    %2444 = vmatpush1.msra.mxu0 0.0
    %2445 = vmatprep.subr.mxu0 0.0
    %2446 = vmatpush1.msra.mxu0 0.0
    %2447 = vmatprep.subr.mxu0 0.0
    %2448 = vmatpush1.msra.mxu0 0.0
    %2449 = vmatprep.subr.mxu0 0.0
    %2450 = vmatpush1.msra.mxu0 0.0
    %2451 = vmatprep.subr.mxu0 0.0
    %2452 = vmatpush1.msra.mxu0 0.0
    %2453 = vmatprep.subr.mxu0 0.0
    %2454 = vmatpush1.msra.mxu0 0.0
    %2455 = vmatprep.subr.mxu0 0.0
    %2456 = vmatpush1.msra.mxu0 0.0
    %2457 = vmatprep.subr.mxu0 0.0
    %2458 = vmatpush1.msra.mxu0 0.0
    %2459 = vmatprep.subr.mxu0 0.0
    %2460 = vmatpush1.msra.mxu0 0.0
    %2461 = vmatprep.subr.mxu0 0.0
    %v2462 = vand.u32 %v118, 4294901760
    %2463 = vmatpush1.msra.mxu0 %v2462
    %2464 = vmatprep.subr.mxu0 0.0
    %v2465 = vand.u32 %v117, 4294901760
    %2466 = vmatpush1.msra.mxu0 %v2465
    %2467 = vmatprep.subr.mxu0 0.0
    %v2468 = vand.u32 %v116, 4294901760
    %2469 = vmatpush1.msra.mxu0 %v2468
    %2470 = vmatprep.subr.mxu0 0.0
    %v2471 = vand.u32 %v115, 4294901760
    %2472 = vmatpush1.msra.mxu0 %v2471
    %2473 = vmatprep.subr.mxu0 0.0
    %2474 = vmatpush2.msra.mxu0 0.0
    %2475 = vmatprep.subr.mxu0 0.0
    %2476 = vmatpush2.msra.mxu0 0.0
    %2477 = vmatprep.subr.mxu0 0.0
    %2478 = vmatpush2.msra.mxu0 0.0
    %2479 = vmatprep.subr.mxu0 0.0
    %2480 = vmatpush2.msra.mxu0 0.0
    %2481 = vmatprep.subr.mxu0 0.0
    %2482 = vmatpush2.msra.mxu0 0.0
    %2483 = vmatprep.subr.mxu0 0.0
    %2484 = vmatpush2.msra.mxu0 0.0
    %2485 = vmatprep.subr.mxu0 0.0
    %2486 = vmatpush2.msra.mxu0 0.0
    %2487 = vmatprep.subr.mxu0 0.0
    %2488 = vmatpush2.msra.mxu0 0.0
    %2489 = vmatprep.subr.mxu0 0.0
    %2490 = vmatpush2.msra.mxu0 0.0
    %2491 = vmatprep.subr.mxu0 0.0
    %2492 = vmatpush2.msra.mxu0 0.0
    %2493 = vmatprep.subr.mxu0 0.0
    %2494 = vmatpush2.msra.mxu0 0.0
    %2495 = vmatprep.subr.mxu0 0.0
    %2496 = vmatpush2.msra.mxu0 0.0
    %2497 = vmatprep.subr.mxu0 0.0
    %2498 = vmatpush2.msra.mxu0 0.0
    %2499 = vmatprep.subr.mxu0 0.0
    %2500 = vmatpush2.msra.mxu0 0.0
    %2501 = vmatprep.subr.mxu0 0.0
    %2502 = vmatpush2.msra.mxu0 0.0
    %2503 = vmatprep.subr.mxu0 0.0
    %2504 = vmatpush2.msra.mxu0 0.0
    %2505 = vmatprep.mubr.f32.mxu0 0.0
    %v2506 = vand.u32 %v2185, 4294901760
    %v2507 = vsub.f32 %v2185, %v2506
    %v2508 = vand.u32 %v2507, 4294901760
    %2509 = vmatmul.mubr.f32.gmra.mxu0 %v2508
    %v2510 = vpop.f32.mrf.mxu0
    %v2511 = vadd.f32 %v2434, %v2510
    %v2512 = vpop.f32.mrf.mxu0
    %2513 = vdwg.mxu0
    %2514 = vmatprep.subr.mxu0 0.0
    %2515 = vmatpush1.msra.mxu0 0.0
    %2516 = vmatprep.subr.mxu0 0.0
    %2517 = vmatpush1.msra.mxu0 0.0
    %2518 = vmatprep.subr.mxu0 0.0
    %2519 = vmatpush1.msra.mxu0 0.0
    %2520 = vmatprep.subr.mxu0 0.0
    %2521 = vmatpush1.msra.mxu0 0.0
    %2522 = vmatprep.subr.mxu0 0.0
    %2523 = vmatpush1.msra.mxu0 0.0
    %2524 = vmatprep.subr.mxu0 0.0
    %2525 = vmatpush1.msra.mxu0 0.0
    %2526 = vmatprep.subr.mxu0 0.0
    %2527 = vmatpush1.msra.mxu0 0.0
    %2528 = vmatprep.subr.mxu0 0.0
    %2529 = vmatpush1.msra.mxu0 0.0
    %2530 = vmatprep.subr.mxu0 0.0
    %2531 = vmatpush1.msra.mxu0 0.0
    %2532 = vmatprep.subr.mxu0 0.0
    %2533 = vmatpush1.msra.mxu0 0.0
    %2534 = vmatprep.subr.mxu0 0.0
    %2535 = vmatpush1.msra.mxu0 0.0
    %2536 = vmatprep.subr.mxu0 0.0
    %2537 = vmatpush1.msra.mxu0 0.0
    %2538 = vmatprep.subr.mxu0 0.0
    %v2539 = vand.u32 %v118, 4294901760
    %v2540 = vsub.f32 %v118, %v2539
    %v2541 = vand.u32 %v2540, 4294901760
    %2542 = vmatpush1.msra.mxu0 %v2541
    %2543 = vmatprep.subr.mxu0 0.0
    %v2544 = vand.u32 %v117, 4294901760
    %v2545 = vsub.f32 %v117, %v2544
    %v2546 = vand.u32 %v2545, 4294901760
    %2547 = vmatpush1.msra.mxu0 %v2546
    %2548 = vmatprep.subr.mxu0 0.0
    %v2549 = vand.u32 %v116, 4294901760
    %v2550 = vsub.f32 %v116, %v2549
    %v2551 = vand.u32 %v2550, 4294901760
    %2552 = vmatpush1.msra.mxu0 %v2551
    %2553 = vmatprep.subr.mxu0 0.0
    %v2554 = vand.u32 %v115, 4294901760
    %v2555 = vsub.f32 %v115, %v2554
    %v2556 = vand.u32 %v2555, 4294901760
    %2557 = vmatpush1.msra.mxu0 %v2556
    %2558 = vmatprep.subr.mxu0 0.0
    %2559 = vmatpush2.msra.mxu0 0.0
    %2560 = vmatprep.subr.mxu0 0.0
    %2561 = vmatpush2.msra.mxu0 0.0
    %2562 = vmatprep.subr.mxu0 0.0
    %2563 = vmatpush2.msra.mxu0 0.0
    %2564 = vmatprep.subr.mxu0 0.0
    %2565 = vmatpush2.msra.mxu0 0.0
    %2566 = vmatprep.subr.mxu0 0.0
    %2567 = vmatpush2.msra.mxu0 0.0
    %2568 = vmatprep.subr.mxu0 0.0
    %2569 = vmatpush2.msra.mxu0 0.0
    %2570 = vmatprep.subr.mxu0 0.0
    %2571 = vmatpush2.msra.mxu0 0.0
    %2572 = vmatprep.subr.mxu0 0.0
    %2573 = vmatpush2.msra.mxu0 0.0
    %2574 = vmatprep.subr.mxu0 0.0
    %2575 = vmatpush2.msra.mxu0 0.0
    %2576 = vmatprep.subr.mxu0 0.0
    %2577 = vmatpush2.msra.mxu0 0.0
    %2578 = vmatprep.subr.mxu0 0.0
    %2579 = vmatpush2.msra.mxu0 0.0
    %2580 = vmatprep.subr.mxu0 0.0
    %2581 = vmatpush2.msra.mxu0 0.0
    %2582 = vmatprep.subr.mxu0 0.0
    %2583 = vmatpush2.msra.mxu0 0.0
    %2584 = vmatprep.subr.mxu0 0.0
    %2585 = vmatpush2.msra.mxu0 0.0
    %2586 = vmatprep.subr.mxu0 0.0
    %2587 = vmatpush2.msra.mxu0 0.0
    %2588 = vmatprep.subr.mxu0 0.0
    %2589 = vmatpush2.msra.mxu0 0.0
    %2590 = vmatprep.mubr.f32.mxu0 0.0
    %v2591 = vand.u32 %v2185, 4294901760
    %2592 = vmatmul.mubr.f32.gmra.mxu0 %v2591
    %v2593 = vpop.f32.mrf.mxu0
    %v2594 = vadd.f32 %v2511, %v2593
    %v2595 = vpop.f32.mrf.mxu0
    %2596 = vdwg.mxu0
    %2597 = vmatprep.subr.mxu0 0.0
    %2598 = vmatpush1.msra.mxu0 0.0
    %2599 = vmatprep.subr.mxu0 0.0
    %2600 = vmatpush1.msra.mxu0 0.0
    %2601 = vmatprep.subr.mxu0 0.0
    %2602 = vmatpush1.msra.mxu0 0.0
    %2603 = vmatprep.subr.mxu0 0.0
    %2604 = vmatpush1.msra.mxu0 0.0
    %2605 = vmatprep.subr.mxu0 0.0
    %2606 = vmatpush1.msra.mxu0 0.0
    %2607 = vmatprep.subr.mxu0 0.0
    %2608 = vmatpush1.msra.mxu0 0.0
    %2609 = vmatprep.subr.mxu0 0.0
    %2610 = vmatpush1.msra.mxu0 0.0
    %2611 = vmatprep.subr.mxu0 0.0
    %2612 = vmatpush1.msra.mxu0 0.0
    %2613 = vmatprep.subr.mxu0 0.0
    %2614 = vmatpush1.msra.mxu0 0.0
    %2615 = vmatprep.subr.mxu0 0.0
    %2616 = vmatpush1.msra.mxu0 0.0
    %2617 = vmatprep.subr.mxu0 0.0
    %2618 = vmatpush1.msra.mxu0 0.0
    %2619 = vmatprep.subr.mxu0 0.0
    %2620 = vmatpush1.msra.mxu0 0.0
    %2621 = vmatprep.subr.mxu0 0.0
    %v2622 = vand.u32 %v118, 4294901760
    %2623 = vmatpush1.msra.mxu0 %v2622
    %2624 = vmatprep.subr.mxu0 0.0
    %v2625 = vand.u32 %v117, 4294901760
    %2626 = vmatpush1.msra.mxu0 %v2625
    %2627 = vmatprep.subr.mxu0 0.0
    %v2628 = vand.u32 %v116, 4294901760
    %2629 = vmatpush1.msra.mxu0 %v2628
    %2630 = vmatprep.subr.mxu0 0.0
    %v2631 = vand.u32 %v115, 4294901760
    %2632 = vmatpush1.msra.mxu0 %v2631
    %2633 = vmatprep.subr.mxu0 0.0
    %2634 = vmatpush2.msra.mxu0 0.0
    %2635 = vmatprep.subr.mxu0 0.0
    %2636 = vmatpush2.msra.mxu0 0.0
    %2637 = vmatprep.subr.mxu0 0.0
    %2638 = vmatpush2.msra.mxu0 0.0
    %2639 = vmatprep.subr.mxu0 0.0
    %2640 = vmatpush2.msra.mxu0 0.0
    %2641 = vmatprep.subr.mxu0 0.0
    %2642 = vmatpush2.msra.mxu0 0.0
    %2643 = vmatprep.subr.mxu0 0.0
    %2644 = vmatpush2.msra.mxu0 0.0
    %2645 = vmatprep.subr.mxu0 0.0
    %2646 = vmatpush2.msra.mxu0 0.0
    %2647 = vmatprep.subr.mxu0 0.0
    %2648 = vmatpush2.msra.mxu0 0.0
    %2649 = vmatprep.subr.mxu0 0.0
    %2650 = vmatpush2.msra.mxu0 0.0
    %2651 = vmatprep.subr.mxu0 0.0
    %2652 = vmatpush2.msra.mxu0 0.0
    %2653 = vmatprep.subr.mxu0 0.0
    %2654 = vmatpush2.msra.mxu0 0.0
    %2655 = vmatprep.subr.mxu0 0.0
    %2656 = vmatpush2.msra.mxu0 0.0
    %2657 = vmatprep.subr.mxu0 0.0
    %2658 = vmatpush2.msra.mxu0 0.0
    %2659 = vmatprep.subr.mxu0 0.0
    %2660 = vmatpush2.msra.mxu0 0.0
    %2661 = vmatprep.subr.mxu0 0.0
    %2662 = vmatpush2.msra.mxu0 0.0
    %2663 = vmatprep.subr.mxu0 0.0
    %2664 = vmatpush2.msra.mxu0 0.0
    %2665 = vmatprep.mubr.f32.mxu0 0.0
    %v2666 = vand.u32 %v2185, 4294901760
    %2667 = vmatmul.mubr.f32.gmra.mxu0 %v2666
    %v2668 = vpop.f32.mrf.mxu0
    %v2669 = vadd.f32 %v2594, %v2668
    %v2670 = vpop.f32.mrf.mxu0
    %2671 = vdwg.mxu0
    %v2672 = vmax.f32 %v2160, %v2669
    %v2673 = vsub.f32 %v2160, %v2672
    %v2674 = vmul.f32 %v2673, 1.442695
    %v2675 = vpow.pop %v2674
    %v2676 = vsub.f32 %v2669, %v2672
    %v2677 = vmul.f32 %v2676, 1.442695
    %v2678 = vpow.pop %v2677
    %2680 = vrot.lane.b32.xlu0 %v2675, 96
    %v2681 = vpop.permute.xlu0 %2680
    %v2683 = vmul.f32 %v2181, %v2681
    %2685 = vrot.lane.b32.xlu0 %v2669, 32
    %v2686 = vpop.permute.xlu0 %2685
    %v2688 = vmul.f32 %v2678, %v2686
    %2690 = vrot.lane.b32.xlu0 %v2688, 96
    %v2691 = vpop.permute.xlu0 %2690
    %v2693 = vadd.f32 %v2683, %v2691
    %v2694 = vmul.f32 %v2183, %v2675
    %v2695 = vadd.f32 %v2694, %v2678
    %2696 = vrot.lane.b32.xlu0 %v2184, 96
    %v2697 = vpop.permute.xlu0 %2696
    %v2698 = vsel %vm126, %v2697, 0
    %2700 = vmatprep.subr.mxu0 0.0
    %2701 = vmatpush1.msra.mxu0 0.0
    %2702 = vmatprep.subr.mxu0 0.0
    %2703 = vmatpush1.msra.mxu0 0.0
    %2704 = vmatprep.subr.mxu0 0.0
    %2705 = vmatpush1.msra.mxu0 0.0
    %2706 = vmatprep.subr.mxu0 0.0
    %2707 = vmatpush1.msra.mxu0 0.0
    %2708 = vmatprep.subr.mxu0 0.0
    %2709 = vmatpush1.msra.mxu0 0.0
    %2710 = vmatprep.subr.mxu0 0.0
    %2711 = vmatpush1.msra.mxu0 0.0
    %2712 = vmatprep.subr.mxu0 0.0
    %2713 = vmatpush1.msra.mxu0 0.0
    %2714 = vmatprep.subr.mxu0 0.0
    %2715 = vmatpush1.msra.mxu0 0.0
    %2716 = vmatprep.subr.mxu0 0.0
    %2717 = vmatpush1.msra.mxu0 0.0
    %2718 = vmatprep.subr.mxu0 0.0
    %2719 = vmatpush1.msra.mxu0 0.0
    %2720 = vmatprep.subr.mxu0 0.0
    %2721 = vmatpush1.msra.mxu0 0.0
    %2722 = vmatprep.subr.mxu0 0.0
    %2723 = vmatpush1.msra.mxu0 0.0
    %2724 = vmatprep.subr.mxu0 0.0
    %v2725 = vand.u32 %v118, 4294901760
    %2726 = vmatpush1.msra.mxu0 %v2725
    %2727 = vmatprep.subr.mxu0 0.0
    %v2728 = vand.u32 %v117, 4294901760
    %2729 = vmatpush1.msra.mxu0 %v2728
    %2730 = vmatprep.subr.mxu0 0.0
    %v2731 = vand.u32 %v116, 4294901760
    %2732 = vmatpush1.msra.mxu0 %v2731
    %2733 = vmatprep.subr.mxu0 0.0
    %v2734 = vand.u32 %v115, 4294901760
    %2735 = vmatpush1.msra.mxu0 %v2734
    %2736 = vmatprep.subr.mxu0 0.0
    %2737 = vmatpush2.msra.mxu0 0.0
    %2738 = vmatprep.subr.mxu0 0.0
    %2739 = vmatpush2.msra.mxu0 0.0
    %2740 = vmatprep.subr.mxu0 0.0
    %2741 = vmatpush2.msra.mxu0 0.0
    %2742 = vmatprep.subr.mxu0 0.0
    %2743 = vmatpush2.msra.mxu0 0.0
    %2744 = vmatprep.subr.mxu0 0.0
    %2745 = vmatpush2.msra.mxu0 0.0
    %2746 = vmatprep.subr.mxu0 0.0
    %2747 = vmatpush2.msra.mxu0 0.0
    %2748 = vmatprep.subr.mxu0 0.0
    %2749 = vmatpush2.msra.mxu0 0.0
    %2750 = vmatprep.subr.mxu0 0.0
    %2751 = vmatpush2.msra.mxu0 0.0
    %2752 = vmatprep.subr.mxu0 0.0
    %2753 = vmatpush2.msra.mxu0 0.0
    %2754 = vmatprep.subr.mxu0 0.0
    %2755 = vmatpush2.msra.mxu0 0.0
    %2756 = vmatprep.subr.mxu0 0.0
    %2757 = vmatpush2.msra.mxu0 0.0
    %2758 = vmatprep.subr.mxu0 0.0
    %2759 = vmatpush2.msra.mxu0 0.0
    %2760 = vmatprep.subr.mxu0 0.0
    %2761 = vmatpush2.msra.mxu0 0.0
    %2762 = vmatprep.subr.mxu0 0.0
    %2763 = vmatpush2.msra.mxu0 0.0
    %2764 = vmatprep.subr.mxu0 0.0
    %2765 = vmatpush2.msra.mxu0 0.0
    %2766 = vmatprep.subr.mxu0 0.0
    %2767 = vmatpush2.msra.mxu0 0.0
    %2768 = vmatprep.mubr.f32.mxu0 0.0
    %v2769 = vand.u32 %v2698, 4294901760
    %v2770 = vsub.f32 %v2698, %v2769
    %v2771 = vand.u32 %v2770, 4294901760
    %v2772 = vsub.f32 %v2770, %v2771
    %v2773 = vand.u32 %v2772, 4294901760
    %2774 = vmatmul.mubr.f32.gmra.mxu0 %v2773
    %v2775 = vpop.f32.mrf.mxu0
    %v2776 = vadd.f32 %v124, %v2775
    %v2777 = vpop.f32.mrf.mxu0
    %2778 = vdwg.mxu0
    %2779 = vmatprep.subr.mxu0 0.0
    %2780 = vmatpush1.msra.mxu0 0.0
    %2781 = vmatprep.subr.mxu0 0.0
    %2782 = vmatpush1.msra.mxu0 0.0
    %2783 = vmatprep.subr.mxu0 0.0
    %2784 = vmatpush1.msra.mxu0 0.0
    %2785 = vmatprep.subr.mxu0 0.0
    %2786 = vmatpush1.msra.mxu0 0.0
    %2787 = vmatprep.subr.mxu0 0.0
    %2788 = vmatpush1.msra.mxu0 0.0
    %2789 = vmatprep.subr.mxu0 0.0
    %2790 = vmatpush1.msra.mxu0 0.0
    %2791 = vmatprep.subr.mxu0 0.0
    %2792 = vmatpush1.msra.mxu0 0.0
    %2793 = vmatprep.subr.mxu0 0.0
    %2794 = vmatpush1.msra.mxu0 0.0
    %2795 = vmatprep.subr.mxu0 0.0
    %2796 = vmatpush1.msra.mxu0 0.0
    %2797 = vmatprep.subr.mxu0 0.0
    %2798 = vmatpush1.msra.mxu0 0.0
    %2799 = vmatprep.subr.mxu0 0.0
    %2800 = vmatpush1.msra.mxu0 0.0
    %2801 = vmatprep.subr.mxu0 0.0
    %2802 = vmatpush1.msra.mxu0 0.0
    %2803 = vmatprep.subr.mxu0 0.0
    %v2804 = vand.u32 %v118, 4294901760
    %v2805 = vsub.f32 %v118, %v2804
    %v2806 = vand.u32 %v2805, 4294901760
    %v2807 = vsub.f32 %v2805, %v2806
    %v2808 = vand.u32 %v2807, 4294901760
    %2809 = vmatpush1.msra.mxu0 %v2808
    %2810 = vmatprep.subr.mxu0 0.0
    %v2811 = vand.u32 %v117, 4294901760
    %v2812 = vsub.f32 %v117, %v2811
    %v2813 = vand.u32 %v2812, 4294901760
    %v2814 = vsub.f32 %v2812, %v2813
    %v2815 = vand.u32 %v2814, 4294901760
    %2816 = vmatpush1.msra.mxu0 %v2815
    %2817 = vmatprep.subr.mxu0 0.0
    %v2818 = vand.u32 %v116, 4294901760
    %v2819 = vsub.f32 %v116, %v2818
    %v2820 = vand.u32 %v2819, 4294901760
    %v2821 = vsub.f32 %v2819, %v2820
    %v2822 = vand.u32 %v2821, 4294901760
    %2823 = vmatpush1.msra.mxu0 %v2822
    %2824 = vmatprep.subr.mxu0 0.0
    %v2825 = vand.u32 %v115, 4294901760
    %v2826 = vsub.f32 %v115, %v2825
    %v2827 = vand.u32 %v2826, 4294901760
    %v2828 = vsub.f32 %v2826, %v2827
    %v2829 = vand.u32 %v2828, 4294901760
    %2830 = vmatpush1.msra.mxu0 %v2829
    %2831 = vmatprep.subr.mxu0 0.0
    %2832 = vmatpush2.msra.mxu0 0.0
    %2833 = vmatprep.subr.mxu0 0.0
    %2834 = vmatpush2.msra.mxu0 0.0
    %2835 = vmatprep.subr.mxu0 0.0
    %2836 = vmatpush2.msra.mxu0 0.0
    %2837 = vmatprep.subr.mxu0 0.0
    %2838 = vmatpush2.msra.mxu0 0.0
    %2839 = vmatprep.subr.mxu0 0.0
    %2840 = vmatpush2.msra.mxu0 0.0
    %2841 = vmatprep.subr.mxu0 0.0
    %2842 = vmatpush2.msra.mxu0 0.0
    %2843 = vmatprep.subr.mxu0 0.0
    %2844 = vmatpush2.msra.mxu0 0.0
    %2845 = vmatprep.subr.mxu0 0.0
    %2846 = vmatpush2.msra.mxu0 0.0
    %2847 = vmatprep.subr.mxu0 0.0
    %2848 = vmatpush2.msra.mxu0 0.0
    %2849 = vmatprep.subr.mxu0 0.0
    %2850 = vmatpush2.msra.mxu0 0.0
    %2851 = vmatprep.subr.mxu0 0.0
    %2852 = vmatpush2.msra.mxu0 0.0
    %2853 = vmatprep.subr.mxu0 0.0
    %2854 = vmatpush2.msra.mxu0 0.0
    %2855 = vmatprep.subr.mxu0 0.0
    %2856 = vmatpush2.msra.mxu0 0.0
    %2857 = vmatprep.subr.mxu0 0.0
    %2858 = vmatpush2.msra.mxu0 0.0
    %2859 = vmatprep.subr.mxu0 0.0
    %2860 = vmatpush2.msra.mxu0 0.0
    %2861 = vmatprep.subr.mxu0 0.0
    %2862 = vmatpush2.msra.mxu0 0.0
    %2863 = vmatprep.mubr.f32.mxu0 0.0
    %v2864 = vand.u32 %v2698, 4294901760
    %2865 = vmatmul.mubr.f32.gmra.mxu0 %v2864
    %v2866 = vpop.f32.mrf.mxu0
    %v2867 = vadd.f32 %v2776, %v2866
    %v2868 = vpop.f32.mrf.mxu0
    %2869 = vdwg.mxu0
    %2870 = vmatprep.subr.mxu0 0.0
    %2871 = vmatpush1.msra.mxu0 0.0
    %2872 = vmatprep.subr.mxu0 0.0
    %2873 = vmatpush1.msra.mxu0 0.0
    %2874 = vmatprep.subr.mxu0 0.0
    %2875 = vmatpush1.msra.mxu0 0.0
    %2876 = vmatprep.subr.mxu0 0.0
    %2877 = vmatpush1.msra.mxu0 0.0
    %2878 = vmatprep.subr.mxu0 0.0
    %2879 = vmatpush1.msra.mxu0 0.0
    %2880 = vmatprep.subr.mxu0 0.0
    %2881 = vmatpush1.msra.mxu0 0.0
    %2882 = vmatprep.subr.mxu0 0.0
    %2883 = vmatpush1.msra.mxu0 0.0
    %2884 = vmatprep.subr.mxu0 0.0
    %2885 = vmatpush1.msra.mxu0 0.0
    %2886 = vmatprep.subr.mxu0 0.0
    %2887 = vmatpush1.msra.mxu0 0.0
    %2888 = vmatprep.subr.mxu0 0.0
    %2889 = vmatpush1.msra.mxu0 0.0
    %2890 = vmatprep.subr.mxu0 0.0
    %2891 = vmatpush1.msra.mxu0 0.0
    %2892 = vmatprep.subr.mxu0 0.0
    %2893 = vmatpush1.msra.mxu0 0.0
    %2894 = vmatprep.subr.mxu0 0.0
    %v2895 = vand.u32 %v118, 4294901760
    %v2896 = vsub.f32 %v118, %v2895
    %2897 = vmatpush1.msra.mxu0 %v2896
    %2898 = vmatprep.subr.mxu0 0.0
    %v2899 = vand.u32 %v117, 4294901760
    %v2900 = vsub.f32 %v117, %v2899
    %2901 = vmatpush1.msra.mxu0 %v2900
    %2902 = vmatprep.subr.mxu0 0.0
    %v2903 = vand.u32 %v116, 4294901760
    %v2904 = vsub.f32 %v116, %v2903
    %2905 = vmatpush1.msra.mxu0 %v2904
    %2906 = vmatprep.subr.mxu0 0.0
    %v2907 = vand.u32 %v115, 4294901760
    %v2908 = vsub.f32 %v115, %v2907
    %2909 = vmatpush1.msra.mxu0 %v2908
    %2910 = vmatprep.subr.mxu0 0.0
    %2911 = vmatpush2.msra.mxu0 0.0
    %2912 = vmatprep.subr.mxu0 0.0
    %2913 = vmatpush2.msra.mxu0 0.0
    %2914 = vmatprep.subr.mxu0 0.0
    %2915 = vmatpush2.msra.mxu0 0.0
    %2916 = vmatprep.subr.mxu0 0.0
    %2917 = vmatpush2.msra.mxu0 0.0
    %2918 = vmatprep.subr.mxu0 0.0
    %2919 = vmatpush2.msra.mxu0 0.0
    %2920 = vmatprep.subr.mxu0 0.0
    %2921 = vmatpush2.msra.mxu0 0.0
    %2922 = vmatprep.subr.mxu0 0.0
    %2923 = vmatpush2.msra.mxu0 0.0
    %2924 = vmatprep.subr.mxu0 0.0
    %2925 = vmatpush2.msra.mxu0 0.0
    %2926 = vmatprep.subr.mxu0 0.0
    %2927 = vmatpush2.msra.mxu0 0.0
    %2928 = vmatprep.subr.mxu0 0.0
    %2929 = vmatpush2.msra.mxu0 0.0
    %2930 = vmatprep.subr.mxu0 0.0
    %2931 = vmatpush2.msra.mxu0 0.0
    %2932 = vmatprep.subr.mxu0 0.0
    %2933 = vmatpush2.msra.mxu0 0.0
    %2934 = vmatprep.subr.mxu0 0.0
    %2935 = vmatpush2.msra.mxu0 0.0
    %2936 = vmatprep.subr.mxu0 0.0
    %2937 = vmatpush2.msra.mxu0 0.0
    %2938 = vmatprep.subr.mxu0 0.0
    %2939 = vmatpush2.msra.mxu0 0.0
    %2940 = vmatprep.subr.mxu0 0.0
    %2941 = vmatpush2.msra.mxu0 0.0
    %2942 = vmatprep.mubr.f32.mxu0 0.0
    %v2943 = vand.u32 %v2698, 4294901760
    %v2944 = vsub.f32 %v2698, %v2943
    %2945 = vmatmul.mubr.f32.gmra.mxu0 %v2944
    %v2946 = vpop.f32.mrf.mxu0
    %v2947 = vadd.f32 %v2867, %v2946
    %v2948 = vpop.f32.mrf.mxu0
    %2949 = vdwg.mxu0
    %2950 = vmatprep.subr.mxu0 0.0
    %2951 = vmatpush1.msra.mxu0 0.0
    %2952 = vmatprep.subr.mxu0 0.0
    %2953 = vmatpush1.msra.mxu0 0.0
    %2954 = vmatprep.subr.mxu0 0.0
    %2955 = vmatpush1.msra.mxu0 0.0
    %2956 = vmatprep.subr.mxu0 0.0
    %2957 = vmatpush1.msra.mxu0 0.0
    %2958 = vmatprep.subr.mxu0 0.0
    %2959 = vmatpush1.msra.mxu0 0.0
    %2960 = vmatprep.subr.mxu0 0.0
    %2961 = vmatpush1.msra.mxu0 0.0
    %2962 = vmatprep.subr.mxu0 0.0
    %2963 = vmatpush1.msra.mxu0 0.0
    %2964 = vmatprep.subr.mxu0 0.0
    %2965 = vmatpush1.msra.mxu0 0.0
    %2966 = vmatprep.subr.mxu0 0.0
    %2967 = vmatpush1.msra.mxu0 0.0
    %2968 = vmatprep.subr.mxu0 0.0
    %2969 = vmatpush1.msra.mxu0 0.0
    %2970 = vmatprep.subr.mxu0 0.0
    %2971 = vmatpush1.msra.mxu0 0.0
    %2972 = vmatprep.subr.mxu0 0.0
    %2973 = vmatpush1.msra.mxu0 0.0
    %2974 = vmatprep.subr.mxu0 0.0
    %v2975 = vand.u32 %v118, 4294901760
    %2976 = vmatpush1.msra.mxu0 %v2975
    %2977 = vmatprep.subr.mxu0 0.0
    %v2978 = vand.u32 %v117, 4294901760
    %2979 = vmatpush1.msra.mxu0 %v2978
    %2980 = vmatprep.subr.mxu0 0.0
    %v2981 = vand.u32 %v116, 4294901760
    %2982 = vmatpush1.msra.mxu0 %v2981
    %2983 = vmatprep.subr.mxu0 0.0
    %v2984 = vand.u32 %v115, 4294901760
    %2985 = vmatpush1.msra.mxu0 %v2984
    %2986 = vmatprep.subr.mxu0 0.0
    %2987 = vmatpush2.msra.mxu0 0.0
    %2988 = vmatprep.subr.mxu0 0.0
    %2989 = vmatpush2.msra.mxu0 0.0
    %2990 = vmatprep.subr.mxu0 0.0
    %2991 = vmatpush2.msra.mxu0 0.0
    %2992 = vmatprep.subr.mxu0 0.0
    %2993 = vmatpush2.msra.mxu0 0.0
    %2994 = vmatprep.subr.mxu0 0.0
    %2995 = vmatpush2.msra.mxu0 0.0
    %2996 = vmatprep.subr.mxu0 0.0
    %2997 = vmatpush2.msra.mxu0 0.0
    %2998 = vmatprep.subr.mxu0 0.0
    %2999 = vmatpush2.msra.mxu0 0.0
    %3000 = vmatprep.subr.mxu0 0.0
    %3001 = vmatpush2.msra.mxu0 0.0
    %3002 = vmatprep.subr.mxu0 0.0
    %3003 = vmatpush2.msra.mxu0 0.0
    %3004 = vmatprep.subr.mxu0 0.0
    %3005 = vmatpush2.msra.mxu0 0.0
    %3006 = vmatprep.subr.mxu0 0.0
    %3007 = vmatpush2.msra.mxu0 0.0
    %3008 = vmatprep.subr.mxu0 0.0
    %3009 = vmatpush2.msra.mxu0 0.0
    %3010 = vmatprep.subr.mxu0 0.0
    %3011 = vmatpush2.msra.mxu0 0.0
    %3012 = vmatprep.subr.mxu0 0.0
    %3013 = vmatpush2.msra.mxu0 0.0
    %3014 = vmatprep.subr.mxu0 0.0
    %3015 = vmatpush2.msra.mxu0 0.0
    %3016 = vmatprep.subr.mxu0 0.0
    %3017 = vmatpush2.msra.mxu0 0.0
    %3018 = vmatprep.mubr.f32.mxu0 0.0
    %v3019 = vand.u32 %v2698, 4294901760
    %v3020 = vsub.f32 %v2698, %v3019
    %v3021 = vand.u32 %v3020, 4294901760
    %3022 = vmatmul.mubr.f32.gmra.mxu0 %v3021
    %v3023 = vpop.f32.mrf.mxu0
    %v3024 = vadd.f32 %v2947, %v3023
    %v3025 = vpop.f32.mrf.mxu0
    %3026 = vdwg.mxu0
    %3027 = vmatprep.subr.mxu0 0.0
    %3028 = vmatpush1.msra.mxu0 0.0
    %3029 = vmatprep.subr.mxu0 0.0
    %3030 = vmatpush1.msra.mxu0 0.0
    %3031 = vmatprep.subr.mxu0 0.0
    %3032 = vmatpush1.msra.mxu0 0.0
    %3033 = vmatprep.subr.mxu0 0.0
    %3034 = vmatpush1.msra.mxu0 0.0
    %3035 = vmatprep.subr.mxu0 0.0
    %3036 = vmatpush1.msra.mxu0 0.0
    %3037 = vmatprep.subr.mxu0 0.0
    %3038 = vmatpush1.msra.mxu0 0.0
    %3039 = vmatprep.subr.mxu0 0.0
    %3040 = vmatpush1.msra.mxu0 0.0
    %3041 = vmatprep.subr.mxu0 0.0
    %3042 = vmatpush1.msra.mxu0 0.0
    %3043 = vmatprep.subr.mxu0 0.0
    %3044 = vmatpush1.msra.mxu0 0.0
    %3045 = vmatprep.subr.mxu0 0.0
    %3046 = vmatpush1.msra.mxu0 0.0
    %3047 = vmatprep.subr.mxu0 0.0
    %3048 = vmatpush1.msra.mxu0 0.0
    %3049 = vmatprep.subr.mxu0 0.0
    %3050 = vmatpush1.msra.mxu0 0.0
    %3051 = vmatprep.subr.mxu0 0.0
    %v3052 = vand.u32 %v118, 4294901760
    %v3053 = vsub.f32 %v118, %v3052
    %v3054 = vand.u32 %v3053, 4294901760
    %3055 = vmatpush1.msra.mxu0 %v3054
    %3056 = vmatprep.subr.mxu0 0.0
    %v3057 = vand.u32 %v117, 4294901760
    %v3058 = vsub.f32 %v117, %v3057
    %v3059 = vand.u32 %v3058, 4294901760
    %3060 = vmatpush1.msra.mxu0 %v3059
    %3061 = vmatprep.subr.mxu0 0.0
    %v3062 = vand.u32 %v116, 4294901760
    %v3063 = vsub.f32 %v116, %v3062
    %v3064 = vand.u32 %v3063, 4294901760
    %3065 = vmatpush1.msra.mxu0 %v3064
    %3066 = vmatprep.subr.mxu0 0.0
    %v3067 = vand.u32 %v115, 4294901760
    %v3068 = vsub.f32 %v115, %v3067
    %v3069 = vand.u32 %v3068, 4294901760
    %3070 = vmatpush1.msra.mxu0 %v3069
    %3071 = vmatprep.subr.mxu0 0.0
    %3072 = vmatpush2.msra.mxu0 0.0
    %3073 = vmatprep.subr.mxu0 0.0
    %3074 = vmatpush2.msra.mxu0 0.0
    %3075 = vmatprep.subr.mxu0 0.0
    %3076 = vmatpush2.msra.mxu0 0.0
    %3077 = vmatprep.subr.mxu0 0.0
    %3078 = vmatpush2.msra.mxu0 0.0
    %3079 = vmatprep.subr.mxu0 0.0
    %3080 = vmatpush2.msra.mxu0 0.0
    %3081 = vmatprep.subr.mxu0 0.0
    %3082 = vmatpush2.msra.mxu0 0.0
    %3083 = vmatprep.subr.mxu0 0.0
    %3084 = vmatpush2.msra.mxu0 0.0
    %3085 = vmatprep.subr.mxu0 0.0
    %3086 = vmatpush2.msra.mxu0 0.0
    %3087 = vmatprep.subr.mxu0 0.0
    %3088 = vmatpush2.msra.mxu0 0.0
    %3089 = vmatprep.subr.mxu0 0.0
    %3090 = vmatpush2.msra.mxu0 0.0
    %3091 = vmatprep.subr.mxu0 0.0
    %3092 = vmatpush2.msra.mxu0 0.0
    %3093 = vmatprep.subr.mxu0 0.0
    %3094 = vmatpush2.msra.mxu0 0.0
    %3095 = vmatprep.subr.mxu0 0.0
    %3096 = vmatpush2.msra.mxu0 0.0
    %3097 = vmatprep.subr.mxu0 0.0
    %3098 = vmatpush2.msra.mxu0 0.0
    %3099 = vmatprep.subr.mxu0 0.0
    %3100 = vmatpush2.msra.mxu0 0.0
    %3101 = vmatprep.subr.mxu0 0.0
    %3102 = vmatpush2.msra.mxu0 0.0
    %3103 = vmatprep.mubr.f32.mxu0 0.0
    %v3104 = vand.u32 %v2698, 4294901760
    %3105 = vmatmul.mubr.f32.gmra.mxu0 %v3104
    %v3106 = vpop.f32.mrf.mxu0
    %v3107 = vadd.f32 %v3024, %v3106
    %v3108 = vpop.f32.mrf.mxu0
    %3109 = vdwg.mxu0
    %3110 = vmatprep.subr.mxu0 0.0
    %3111 = vmatpush1.msra.mxu0 0.0
    %3112 = vmatprep.subr.mxu0 0.0
    %3113 = vmatpush1.msra.mxu0 0.0
    %3114 = vmatprep.subr.mxu0 0.0
    %3115 = vmatpush1.msra.mxu0 0.0
    %3116 = vmatprep.subr.mxu0 0.0
    %3117 = vmatpush1.msra.mxu0 0.0
    %3118 = vmatprep.subr.mxu0 0.0
    %3119 = vmatpush1.msra.mxu0 0.0
    %3120 = vmatprep.subr.mxu0 0.0
    %3121 = vmatpush1.msra.mxu0 0.0
    %3122 = vmatprep.subr.mxu0 0.0
    %3123 = vmatpush1.msra.mxu0 0.0
    %3124 = vmatprep.subr.mxu0 0.0
    %3125 = vmatpush1.msra.mxu0 0.0
    %3126 = vmatprep.subr.mxu0 0.0
    %3127 = vmatpush1.msra.mxu0 0.0
    %3128 = vmatprep.subr.mxu0 0.0
    %3129 = vmatpush1.msra.mxu0 0.0
    %3130 = vmatprep.subr.mxu0 0.0
    %3131 = vmatpush1.msra.mxu0 0.0
    %3132 = vmatprep.subr.mxu0 0.0
    %3133 = vmatpush1.msra.mxu0 0.0
    %3134 = vmatprep.subr.mxu0 0.0
    %v3135 = vand.u32 %v118, 4294901760
    %3136 = vmatpush1.msra.mxu0 %v3135
    %3137 = vmatprep.subr.mxu0 0.0
    %v3138 = vand.u32 %v117, 4294901760
    %3139 = vmatpush1.msra.mxu0 %v3138
    %3140 = vmatprep.subr.mxu0 0.0
    %v3141 = vand.u32 %v116, 4294901760
    %3142 = vmatpush1.msra.mxu0 %v3141
    %3143 = vmatprep.subr.mxu0 0.0
    %v3144 = vand.u32 %v115, 4294901760
    %3145 = vmatpush1.msra.mxu0 %v3144
    %3146 = vmatprep.subr.mxu0 0.0
    %3147 = vmatpush2.msra.mxu0 0.0
    %3148 = vmatprep.subr.mxu0 0.0
    %3149 = vmatpush2.msra.mxu0 0.0
    %3150 = vmatprep.subr.mxu0 0.0
    %3151 = vmatpush2.msra.mxu0 0.0
    %3152 = vmatprep.subr.mxu0 0.0
    %3153 = vmatpush2.msra.mxu0 0.0
    %3154 = vmatprep.subr.mxu0 0.0
    %3155 = vmatpush2.msra.mxu0 0.0
    %3156 = vmatprep.subr.mxu0 0.0
    %3157 = vmatpush2.msra.mxu0 0.0
    %3158 = vmatprep.subr.mxu0 0.0
    %3159 = vmatpush2.msra.mxu0 0.0
    %3160 = vmatprep.subr.mxu0 0.0
    %3161 = vmatpush2.msra.mxu0 0.0
    %3162 = vmatprep.subr.mxu0 0.0
    %3163 = vmatpush2.msra.mxu0 0.0
    %3164 = vmatprep.subr.mxu0 0.0
    %3165 = vmatpush2.msra.mxu0 0.0
    %3166 = vmatprep.subr.mxu0 0.0
    %3167 = vmatpush2.msra.mxu0 0.0
    %3168 = vmatprep.subr.mxu0 0.0
    %3169 = vmatpush2.msra.mxu0 0.0
    %3170 = vmatprep.subr.mxu0 0.0
    %3171 = vmatpush2.msra.mxu0 0.0
    %3172 = vmatprep.subr.mxu0 0.0
    %3173 = vmatpush2.msra.mxu0 0.0
    %3174 = vmatprep.subr.mxu0 0.0
    %3175 = vmatpush2.msra.mxu0 0.0
    %3176 = vmatprep.subr.mxu0 0.0
    %3177 = vmatpush2.msra.mxu0 0.0
    %3178 = vmatprep.mubr.f32.mxu0 0.0
    %v3179 = vand.u32 %v2698, 4294901760
    %3180 = vmatmul.mubr.f32.gmra.mxu0 %v3179
    %v3181 = vpop.f32.mrf.mxu0
    %v3182 = vadd.f32 %v3107, %v3181
    %v3183 = vpop.f32.mrf.mxu0
    %3184 = vdwg.mxu0
    %v3185 = vmax.f32 %v2672, %v3182
    %v3186 = vsub.f32 %v2672, %v3185
    %v3187 = vmul.f32 %v3186, 1.442695
    %v3188 = vpow.pop %v3187
    %v3189 = vsub.f32 %v3182, %v3185
    %v3190 = vmul.f32 %v3189, 1.442695
    %v3191 = vpow.pop %v3190
    %3193 = vrot.lane.b32.xlu0 %v3188, 96
    %v3194 = vpop.permute.xlu0 %3193
    %v3196 = vmul.f32 %v2693, %v3194
    %3198 = vrot.lane.b32.xlu0 %v3182, 32
    %v3199 = vpop.permute.xlu0 %3198
    %v3201 = vmul.f32 %v3191, %v3199
    %3203 = vrot.lane.b32.xlu0 %v3201, 96
    %v3204 = vpop.permute.xlu0 %3203
    %v3206 = vadd.f32 %v3196, %v3204
    %v3207 = vmul.f32 %v2695, %v3188
    %v3208 = vadd.f32 %v3207, %v3191
    %3209 = vrot.lane.b32.xlu0 %v2184, 64
    %v3210 = vpop.permute.xlu0 %3209
    %v3211 = vsel %vm126, %v3210, 0
    %3213 = vmatprep.subr.mxu0 0.0
    %3214 = vmatpush1.msra.mxu0 0.0
    %3215 = vmatprep.subr.mxu0 0.0
    %3216 = vmatpush1.msra.mxu0 0.0
    %3217 = vmatprep.subr.mxu0 0.0
    %3218 = vmatpush1.msra.mxu0 0.0
    %3219 = vmatprep.subr.mxu0 0.0
    %3220 = vmatpush1.msra.mxu0 0.0
    %3221 = vmatprep.subr.mxu0 0.0
    %3222 = vmatpush1.msra.mxu0 0.0
    %3223 = vmatprep.subr.mxu0 0.0
    %3224 = vmatpush1.msra.mxu0 0.0
    %3225 = vmatprep.subr.mxu0 0.0
    %3226 = vmatpush1.msra.mxu0 0.0
    %3227 = vmatprep.subr.mxu0 0.0
    %3228 = vmatpush1.msra.mxu0 0.0
    %3229 = vmatprep.subr.mxu0 0.0
    %3230 = vmatpush1.msra.mxu0 0.0
    %3231 = vmatprep.subr.mxu0 0.0
    %3232 = vmatpush1.msra.mxu0 0.0
    %3233 = vmatprep.subr.mxu0 0.0
    %3234 = vmatpush1.msra.mxu0 0.0
    %3235 = vmatprep.subr.mxu0 0.0
    %3236 = vmatpush1.msra.mxu0 0.0
    %3237 = vmatprep.subr.mxu0 0.0
    %v3238 = vand.u32 %v118, 4294901760
    %3239 = vmatpush1.msra.mxu0 %v3238
    %3240 = vmatprep.subr.mxu0 0.0
    %v3241 = vand.u32 %v117, 4294901760
    %3242 = vmatpush1.msra.mxu0 %v3241
    %3243 = vmatprep.subr.mxu0 0.0
    %v3244 = vand.u32 %v116, 4294901760
    %3245 = vmatpush1.msra.mxu0 %v3244
    %3246 = vmatprep.subr.mxu0 0.0
    %v3247 = vand.u32 %v115, 4294901760
    %3248 = vmatpush1.msra.mxu0 %v3247
    %3249 = vmatprep.subr.mxu0 0.0
    %3250 = vmatpush2.msra.mxu0 0.0
    %3251 = vmatprep.subr.mxu0 0.0
    %3252 = vmatpush2.msra.mxu0 0.0
    %3253 = vmatprep.subr.mxu0 0.0
    %3254 = vmatpush2.msra.mxu0 0.0
    %3255 = vmatprep.subr.mxu0 0.0
    %3256 = vmatpush2.msra.mxu0 0.0
    %3257 = vmatprep.subr.mxu0 0.0
    %3258 = vmatpush2.msra.mxu0 0.0
    %3259 = vmatprep.subr.mxu0 0.0
    %3260 = vmatpush2.msra.mxu0 0.0
    %3261 = vmatprep.subr.mxu0 0.0
    %3262 = vmatpush2.msra.mxu0 0.0
    %3263 = vmatprep.subr.mxu0 0.0
    %3264 = vmatpush2.msra.mxu0 0.0
    %3265 = vmatprep.subr.mxu0 0.0
    %3266 = vmatpush2.msra.mxu0 0.0
    %3267 = vmatprep.subr.mxu0 0.0
    %3268 = vmatpush2.msra.mxu0 0.0
    %3269 = vmatprep.subr.mxu0 0.0
    %3270 = vmatpush2.msra.mxu0 0.0
    %3271 = vmatprep.subr.mxu0 0.0
    %3272 = vmatpush2.msra.mxu0 0.0
    %3273 = vmatprep.subr.mxu0 0.0
    %3274 = vmatpush2.msra.mxu0 0.0
    %3275 = vmatprep.subr.mxu0 0.0
    %3276 = vmatpush2.msra.mxu0 0.0
    %3277 = vmatprep.subr.mxu0 0.0
    %3278 = vmatpush2.msra.mxu0 0.0
    %3279 = vmatprep.subr.mxu0 0.0
    %3280 = vmatpush2.msra.mxu0 0.0
    %3281 = vmatprep.mubr.f32.mxu0 0.0
    %v3282 = vand.u32 %v3211, 4294901760
    %v3283 = vsub.f32 %v3211, %v3282
    %v3284 = vand.u32 %v3283, 4294901760
    %v3285 = vsub.f32 %v3283, %v3284
    %v3286 = vand.u32 %v3285, 4294901760
    %3287 = vmatmul.mubr.f32.gmra.mxu0 %v3286
    %v3288 = vpop.f32.mrf.mxu0
    %v3289 = vadd.f32 %v124, %v3288
    %v3290 = vpop.f32.mrf.mxu0
    %3291 = vdwg.mxu0
    %3292 = vmatprep.subr.mxu0 0.0
    %3293 = vmatpush1.msra.mxu0 0.0
    %3294 = vmatprep.subr.mxu0 0.0
    %3295 = vmatpush1.msra.mxu0 0.0
    %3296 = vmatprep.subr.mxu0 0.0
    %3297 = vmatpush1.msra.mxu0 0.0
    %3298 = vmatprep.subr.mxu0 0.0
    %3299 = vmatpush1.msra.mxu0 0.0
    %3300 = vmatprep.subr.mxu0 0.0
    %3301 = vmatpush1.msra.mxu0 0.0
    %3302 = vmatprep.subr.mxu0 0.0
    %3303 = vmatpush1.msra.mxu0 0.0
    %3304 = vmatprep.subr.mxu0 0.0
    %3305 = vmatpush1.msra.mxu0 0.0
    %3306 = vmatprep.subr.mxu0 0.0
    %3307 = vmatpush1.msra.mxu0 0.0
    %3308 = vmatprep.subr.mxu0 0.0
    %3309 = vmatpush1.msra.mxu0 0.0
    %3310 = vmatprep.subr.mxu0 0.0
    %3311 = vmatpush1.msra.mxu0 0.0
    %3312 = vmatprep.subr.mxu0 0.0
    %3313 = vmatpush1.msra.mxu0 0.0
    %3314 = vmatprep.subr.mxu0 0.0
    %3315 = vmatpush1.msra.mxu0 0.0
    %3316 = vmatprep.subr.mxu0 0.0
    %v3317 = vand.u32 %v118, 4294901760
    %v3318 = vsub.f32 %v118, %v3317
    %v3319 = vand.u32 %v3318, 4294901760
    %v3320 = vsub.f32 %v3318, %v3319
    %v3321 = vand.u32 %v3320, 4294901760
    %3322 = vmatpush1.msra.mxu0 %v3321
    %3323 = vmatprep.subr.mxu0 0.0
    %v3324 = vand.u32 %v117, 4294901760
    %v3325 = vsub.f32 %v117, %v3324
    %v3326 = vand.u32 %v3325, 4294901760
    %v3327 = vsub.f32 %v3325, %v3326
    %v3328 = vand.u32 %v3327, 4294901760
    %3329 = vmatpush1.msra.mxu0 %v3328
    %3330 = vmatprep.subr.mxu0 0.0
    %v3331 = vand.u32 %v116, 4294901760
    %v3332 = vsub.f32 %v116, %v3331
    %v3333 = vand.u32 %v3332, 4294901760
    %v3334 = vsub.f32 %v3332, %v3333
    %v3335 = vand.u32 %v3334, 4294901760
    %3336 = vmatpush1.msra.mxu0 %v3335
    %3337 = vmatprep.subr.mxu0 0.0
    %v3338 = vand.u32 %v115, 4294901760
    %v3339 = vsub.f32 %v115, %v3338
    %v3340 = vand.u32 %v3339, 4294901760
    %v3341 = vsub.f32 %v3339, %v3340
    %v3342 = vand.u32 %v3341, 4294901760
    %3343 = vmatpush1.msra.mxu0 %v3342
    %3344 = vmatprep.subr.mxu0 0.0
    %3345 = vmatpush2.msra.mxu0 0.0
    %3346 = vmatprep.subr.mxu0 0.0
    %3347 = vmatpush2.msra.mxu0 0.0
    %3348 = vmatprep.subr.mxu0 0.0
    %3349 = vmatpush2.msra.mxu0 0.0
    %3350 = vmatprep.subr.mxu0 0.0
    %3351 = vmatpush2.msra.mxu0 0.0
    %3352 = vmatprep.subr.mxu0 0.0
    %3353 = vmatpush2.msra.mxu0 0.0
    %3354 = vmatprep.subr.mxu0 0.0
    %3355 = vmatpush2.msra.mxu0 0.0
    %3356 = vmatprep.subr.mxu0 0.0
    %3357 = vmatpush2.msra.mxu0 0.0
    %3358 = vmatprep.subr.mxu0 0.0
    %3359 = vmatpush2.msra.mxu0 0.0
    %3360 = vmatprep.subr.mxu0 0.0
    %3361 = vmatpush2.msra.mxu0 0.0
    %3362 = vmatprep.subr.mxu0 0.0
    %3363 = vmatpush2.msra.mxu0 0.0
    %3364 = vmatprep.subr.mxu0 0.0
    %3365 = vmatpush2.msra.mxu0 0.0
    %3366 = vmatprep.subr.mxu0 0.0
    %3367 = vmatpush2.msra.mxu0 0.0
    %3368 = vmatprep.subr.mxu0 0.0
    %3369 = vmatpush2.msra.mxu0 0.0
    %3370 = vmatprep.subr.mxu0 0.0
    %3371 = vmatpush2.msra.mxu0 0.0
    %3372 = vmatprep.subr.mxu0 0.0
    %3373 = vmatpush2.msra.mxu0 0.0
    %3374 = vmatprep.subr.mxu0 0.0
    %3375 = vmatpush2.msra.mxu0 0.0
    %3376 = vmatprep.mubr.f32.mxu0 0.0
    %v3377 = vand.u32 %v3211, 4294901760
    %3378 = vmatmul.mubr.f32.gmra.mxu0 %v3377
    %v3379 = vpop.f32.mrf.mxu0
    %v3380 = vadd.f32 %v3289, %v3379
    %v3381 = vpop.f32.mrf.mxu0
    %3382 = vdwg.mxu0
    %3383 = vmatprep.subr.mxu0 0.0
    %3384 = vmatpush1.msra.mxu0 0.0
    %3385 = vmatprep.subr.mxu0 0.0
    %3386 = vmatpush1.msra.mxu0 0.0
    %3387 = vmatprep.subr.mxu0 0.0
    %3388 = vmatpush1.msra.mxu0 0.0
    %3389 = vmatprep.subr.mxu0 0.0
    %3390 = vmatpush1.msra.mxu0 0.0
    %3391 = vmatprep.subr.mxu0 0.0
    %3392 = vmatpush1.msra.mxu0 0.0
    %3393 = vmatprep.subr.mxu0 0.0
    %3394 = vmatpush1.msra.mxu0 0.0
    %3395 = vmatprep.subr.mxu0 0.0
    %3396 = vmatpush1.msra.mxu0 0.0
    %3397 = vmatprep.subr.mxu0 0.0
    %3398 = vmatpush1.msra.mxu0 0.0
    %3399 = vmatprep.subr.mxu0 0.0
    %3400 = vmatpush1.msra.mxu0 0.0
    %3401 = vmatprep.subr.mxu0 0.0
    %3402 = vmatpush1.msra.mxu0 0.0
    %3403 = vmatprep.subr.mxu0 0.0
    %3404 = vmatpush1.msra.mxu0 0.0
    %3405 = vmatprep.subr.mxu0 0.0
    %3406 = vmatpush1.msra.mxu0 0.0
    %3407 = vmatprep.subr.mxu0 0.0
    %v3408 = vand.u32 %v118, 4294901760
    %v3409 = vsub.f32 %v118, %v3408
    %3410 = vmatpush1.msra.mxu0 %v3409
    %3411 = vmatprep.subr.mxu0 0.0
    %v3412 = vand.u32 %v117, 4294901760
    %v3413 = vsub.f32 %v117, %v3412
    %3414 = vmatpush1.msra.mxu0 %v3413
    %3415 = vmatprep.subr.mxu0 0.0
    %v3416 = vand.u32 %v116, 4294901760
    %v3417 = vsub.f32 %v116, %v3416
    %3418 = vmatpush1.msra.mxu0 %v3417
    %3419 = vmatprep.subr.mxu0 0.0
    %v3420 = vand.u32 %v115, 4294901760
    %v3421 = vsub.f32 %v115, %v3420
    %3422 = vmatpush1.msra.mxu0 %v3421
    %3423 = vmatprep.subr.mxu0 0.0
    %3424 = vmatpush2.msra.mxu0 0.0
    %3425 = vmatprep.subr.mxu0 0.0
    %3426 = vmatpush2.msra.mxu0 0.0
    %3427 = vmatprep.subr.mxu0 0.0
    %3428 = vmatpush2.msra.mxu0 0.0
    %3429 = vmatprep.subr.mxu0 0.0
    %3430 = vmatpush2.msra.mxu0 0.0
    %3431 = vmatprep.subr.mxu0 0.0
    %3432 = vmatpush2.msra.mxu0 0.0
    %3433 = vmatprep.subr.mxu0 0.0
    %3434 = vmatpush2.msra.mxu0 0.0
    %3435 = vmatprep.subr.mxu0 0.0
    %3436 = vmatpush2.msra.mxu0 0.0
    %3437 = vmatprep.subr.mxu0 0.0
    %3438 = vmatpush2.msra.mxu0 0.0
    %3439 = vmatprep.subr.mxu0 0.0
    %3440 = vmatpush2.msra.mxu0 0.0
    %3441 = vmatprep.subr.mxu0 0.0
    %3442 = vmatpush2.msra.mxu0 0.0
    %3443 = vmatprep.subr.mxu0 0.0
    %3444 = vmatpush2.msra.mxu0 0.0
    %3445 = vmatprep.subr.mxu0 0.0
    %3446 = vmatpush2.msra.mxu0 0.0
    %3447 = vmatprep.subr.mxu0 0.0
    %3448 = vmatpush2.msra.mxu0 0.0
    %3449 = vmatprep.subr.mxu0 0.0
    %3450 = vmatpush2.msra.mxu0 0.0
    %3451 = vmatprep.subr.mxu0 0.0
    %3452 = vmatpush2.msra.mxu0 0.0
    %3453 = vmatprep.subr.mxu0 0.0
    %3454 = vmatpush2.msra.mxu0 0.0
    %3455 = vmatprep.mubr.f32.mxu0 0.0
    %v3456 = vand.u32 %v3211, 4294901760
    %v3457 = vsub.f32 %v3211, %v3456
    %3458 = vmatmul.mubr.f32.gmra.mxu0 %v3457
    %v3459 = vpop.f32.mrf.mxu0
    %v3460 = vadd.f32 %v3380, %v3459
    %v3461 = vpop.f32.mrf.mxu0
    %3462 = vdwg.mxu0
    %3463 = vmatprep.subr.mxu0 0.0
    %3464 = vmatpush1.msra.mxu0 0.0
    %3465 = vmatprep.subr.mxu0 0.0
    %3466 = vmatpush1.msra.mxu0 0.0
    %3467 = vmatprep.subr.mxu0 0.0
    %3468 = vmatpush1.msra.mxu0 0.0
    %3469 = vmatprep.subr.mxu0 0.0
    %3470 = vmatpush1.msra.mxu0 0.0
    %3471 = vmatprep.subr.mxu0 0.0
    %3472 = vmatpush1.msra.mxu0 0.0
    %3473 = vmatprep.subr.mxu0 0.0
    %3474 = vmatpush1.msra.mxu0 0.0
    %3475 = vmatprep.subr.mxu0 0.0
    %3476 = vmatpush1.msra.mxu0 0.0
    %3477 = vmatprep.subr.mxu0 0.0
    %3478 = vmatpush1.msra.mxu0 0.0
    %3479 = vmatprep.subr.mxu0 0.0
    %3480 = vmatpush1.msra.mxu0 0.0
    %3481 = vmatprep.subr.mxu0 0.0
    %3482 = vmatpush1.msra.mxu0 0.0
    %3483 = vmatprep.subr.mxu0 0.0
    %3484 = vmatpush1.msra.mxu0 0.0
    %3485 = vmatprep.subr.mxu0 0.0
    %3486 = vmatpush1.msra.mxu0 0.0
    %3487 = vmatprep.subr.mxu0 0.0
    %v3488 = vand.u32 %v118, 4294901760
    %3489 = vmatpush1.msra.mxu0 %v3488
    %3490 = vmatprep.subr.mxu0 0.0
    %v3491 = vand.u32 %v117, 4294901760
    %3492 = vmatpush1.msra.mxu0 %v3491
    %3493 = vmatprep.subr.mxu0 0.0
    %v3494 = vand.u32 %v116, 4294901760
    %3495 = vmatpush1.msra.mxu0 %v3494
    %3496 = vmatprep.subr.mxu0 0.0
    %v3497 = vand.u32 %v115, 4294901760
    %3498 = vmatpush1.msra.mxu0 %v3497
    %3499 = vmatprep.subr.mxu0 0.0
    %3500 = vmatpush2.msra.mxu0 0.0
    %3501 = vmatprep.subr.mxu0 0.0
    %3502 = vmatpush2.msra.mxu0 0.0
    %3503 = vmatprep.subr.mxu0 0.0
    %3504 = vmatpush2.msra.mxu0 0.0
    %3505 = vmatprep.subr.mxu0 0.0
    %3506 = vmatpush2.msra.mxu0 0.0
    %3507 = vmatprep.subr.mxu0 0.0
    %3508 = vmatpush2.msra.mxu0 0.0
    %3509 = vmatprep.subr.mxu0 0.0
    %3510 = vmatpush2.msra.mxu0 0.0
    %3511 = vmatprep.subr.mxu0 0.0
    %3512 = vmatpush2.msra.mxu0 0.0
    %3513 = vmatprep.subr.mxu0 0.0
    %3514 = vmatpush2.msra.mxu0 0.0
    %3515 = vmatprep.subr.mxu0 0.0
    %3516 = vmatpush2.msra.mxu0 0.0
    %3517 = vmatprep.subr.mxu0 0.0
    %3518 = vmatpush2.msra.mxu0 0.0
    %3519 = vmatprep.subr.mxu0 0.0
    %3520 = vmatpush2.msra.mxu0 0.0
    %3521 = vmatprep.subr.mxu0 0.0
    %3522 = vmatpush2.msra.mxu0 0.0
    %3523 = vmatprep.subr.mxu0 0.0
    %3524 = vmatpush2.msra.mxu0 0.0
    %3525 = vmatprep.subr.mxu0 0.0
    %3526 = vmatpush2.msra.mxu0 0.0
    %3527 = vmatprep.subr.mxu0 0.0
    %3528 = vmatpush2.msra.mxu0 0.0
    %3529 = vmatprep.subr.mxu0 0.0
    %3530 = vmatpush2.msra.mxu0 0.0
    %3531 = vmatprep.mubr.f32.mxu0 0.0
    %v3532 = vand.u32 %v3211, 4294901760
    %v3533 = vsub.f32 %v3211, %v3532
    %v3534 = vand.u32 %v3533, 4294901760
    %3535 = vmatmul.mubr.f32.gmra.mxu0 %v3534
    %v3536 = vpop.f32.mrf.mxu0
    %v3537 = vadd.f32 %v3460, %v3536
    %v3538 = vpop.f32.mrf.mxu0
    %3539 = vdwg.mxu0
    %3540 = vmatprep.subr.mxu0 0.0
    %3541 = vmatpush1.msra.mxu0 0.0
    %3542 = vmatprep.subr.mxu0 0.0
    %3543 = vmatpush1.msra.mxu0 0.0
    %3544 = vmatprep.subr.mxu0 0.0
    %3545 = vmatpush1.msra.mxu0 0.0
    %3546 = vmatprep.subr.mxu0 0.0
    %3547 = vmatpush1.msra.mxu0 0.0
    %3548 = vmatprep.subr.mxu0 0.0
    %3549 = vmatpush1.msra.mxu0 0.0
    %3550 = vmatprep.subr.mxu0 0.0
    %3551 = vmatpush1.msra.mxu0 0.0
    %3552 = vmatprep.subr.mxu0 0.0
    %3553 = vmatpush1.msra.mxu0 0.0
    %3554 = vmatprep.subr.mxu0 0.0
    %3555 = vmatpush1.msra.mxu0 0.0
    %3556 = vmatprep.subr.mxu0 0.0
    %3557 = vmatpush1.msra.mxu0 0.0
    %3558 = vmatprep.subr.mxu0 0.0
    %3559 = vmatpush1.msra.mxu0 0.0
    %3560 = vmatprep.subr.mxu0 0.0
    %3561 = vmatpush1.msra.mxu0 0.0
    %3562 = vmatprep.subr.mxu0 0.0
    %3563 = vmatpush1.msra.mxu0 0.0
    %3564 = vmatprep.subr.mxu0 0.0
    %v3565 = vand.u32 %v118, 4294901760
    %v3566 = vsub.f32 %v118, %v3565
    %v3567 = vand.u32 %v3566, 4294901760
    %3568 = vmatpush1.msra.mxu0 %v3567
    %3569 = vmatprep.subr.mxu0 0.0
    %v3570 = vand.u32 %v117, 4294901760
    %v3571 = vsub.f32 %v117, %v3570
    %v3572 = vand.u32 %v3571, 4294901760
    %3573 = vmatpush1.msra.mxu0 %v3572
    %3574 = vmatprep.subr.mxu0 0.0
    %v3575 = vand.u32 %v116, 4294901760
    %v3576 = vsub.f32 %v116, %v3575
    %v3577 = vand.u32 %v3576, 4294901760
    %3578 = vmatpush1.msra.mxu0 %v3577
    %3579 = vmatprep.subr.mxu0 0.0
    %v3580 = vand.u32 %v115, 4294901760
    %v3581 = vsub.f32 %v115, %v3580
    %v3582 = vand.u32 %v3581, 4294901760
    %3583 = vmatpush1.msra.mxu0 %v3582
    %3584 = vmatprep.subr.mxu0 0.0
    %3585 = vmatpush2.msra.mxu0 0.0
    %3586 = vmatprep.subr.mxu0 0.0
    %3587 = vmatpush2.msra.mxu0 0.0
    %3588 = vmatprep.subr.mxu0 0.0
    %3589 = vmatpush2.msra.mxu0 0.0
    %3590 = vmatprep.subr.mxu0 0.0
    %3591 = vmatpush2.msra.mxu0 0.0
    %3592 = vmatprep.subr.mxu0 0.0
    %3593 = vmatpush2.msra.mxu0 0.0
    %3594 = vmatprep.subr.mxu0 0.0
    %3595 = vmatpush2.msra.mxu0 0.0
    %3596 = vmatprep.subr.mxu0 0.0
    %3597 = vmatpush2.msra.mxu0 0.0
    %3598 = vmatprep.subr.mxu0 0.0
    %3599 = vmatpush2.msra.mxu0 0.0
    %3600 = vmatprep.subr.mxu0 0.0
    %3601 = vmatpush2.msra.mxu0 0.0
    %3602 = vmatprep.subr.mxu0 0.0
    %3603 = vmatpush2.msra.mxu0 0.0
    %3604 = vmatprep.subr.mxu0 0.0
    %3605 = vmatpush2.msra.mxu0 0.0
    %3606 = vmatprep.subr.mxu0 0.0
    %3607 = vmatpush2.msra.mxu0 0.0
    %3608 = vmatprep.subr.mxu0 0.0
    %3609 = vmatpush2.msra.mxu0 0.0
    %3610 = vmatprep.subr.mxu0 0.0
    %3611 = vmatpush2.msra.mxu0 0.0
    %3612 = vmatprep.subr.mxu0 0.0
    %3613 = vmatpush2.msra.mxu0 0.0
    %3614 = vmatprep.subr.mxu0 0.0
    %3615 = vmatpush2.msra.mxu0 0.0
    %3616 = vmatprep.mubr.f32.mxu0 0.0
    %v3617 = vand.u32 %v3211, 4294901760
    %3618 = vmatmul.mubr.f32.gmra.mxu0 %v3617
    %v3619 = vpop.f32.mrf.mxu0
    %v3620 = vadd.f32 %v3537, %v3619
    %v3621 = vpop.f32.mrf.mxu0
    %3622 = vdwg.mxu0
    %3623 = vmatprep.subr.mxu0 0.0
    %3624 = vmatpush1.msra.mxu0 0.0
    %3625 = vmatprep.subr.mxu0 0.0
    %3626 = vmatpush1.msra.mxu0 0.0
    %3627 = vmatprep.subr.mxu0 0.0
    %3628 = vmatpush1.msra.mxu0 0.0
    %3629 = vmatprep.subr.mxu0 0.0
    %3630 = vmatpush1.msra.mxu0 0.0
    %3631 = vmatprep.subr.mxu0 0.0
    %3632 = vmatpush1.msra.mxu0 0.0
    %3633 = vmatprep.subr.mxu0 0.0
    %3634 = vmatpush1.msra.mxu0 0.0
    %3635 = vmatprep.subr.mxu0 0.0
    %3636 = vmatpush1.msra.mxu0 0.0
    %3637 = vmatprep.subr.mxu0 0.0
    %3638 = vmatpush1.msra.mxu0 0.0
    %3639 = vmatprep.subr.mxu0 0.0
    %3640 = vmatpush1.msra.mxu0 0.0
    %3641 = vmatprep.subr.mxu0 0.0
    %3642 = vmatpush1.msra.mxu0 0.0
    %3643 = vmatprep.subr.mxu0 0.0
    %3644 = vmatpush1.msra.mxu0 0.0
    %3645 = vmatprep.subr.mxu0 0.0
    %3646 = vmatpush1.msra.mxu0 0.0
    %3647 = vmatprep.subr.mxu0 0.0
    %v3648 = vand.u32 %v118, 4294901760
    %3649 = vmatpush1.msra.mxu0 %v3648
    %3650 = vmatprep.subr.mxu0 0.0
    %v3651 = vand.u32 %v117, 4294901760
    %3652 = vmatpush1.msra.mxu0 %v3651
    %3653 = vmatprep.subr.mxu0 0.0
    %v3654 = vand.u32 %v116, 4294901760
    %3655 = vmatpush1.msra.mxu0 %v3654
    %3656 = vmatprep.subr.mxu0 0.0
    %v3657 = vand.u32 %v115, 4294901760
    %3658 = vmatpush1.msra.mxu0 %v3657
    %3659 = vmatprep.subr.mxu0 0.0
    %3660 = vmatpush2.msra.mxu0 0.0
    %3661 = vmatprep.subr.mxu0 0.0
    %3662 = vmatpush2.msra.mxu0 0.0
    %3663 = vmatprep.subr.mxu0 0.0
    %3664 = vmatpush2.msra.mxu0 0.0
    %3665 = vmatprep.subr.mxu0 0.0
    %3666 = vmatpush2.msra.mxu0 0.0
    %3667 = vmatprep.subr.mxu0 0.0
    %3668 = vmatpush2.msra.mxu0 0.0
    %3669 = vmatprep.subr.mxu0 0.0
    %3670 = vmatpush2.msra.mxu0 0.0
    %3671 = vmatprep.subr.mxu0 0.0
    %3672 = vmatpush2.msra.mxu0 0.0
    %3673 = vmatprep.subr.mxu0 0.0
    %3674 = vmatpush2.msra.mxu0 0.0
    %3675 = vmatprep.subr.mxu0 0.0
    %3676 = vmatpush2.msra.mxu0 0.0
    %3677 = vmatprep.subr.mxu0 0.0
    %3678 = vmatpush2.msra.mxu0 0.0
    %3679 = vmatprep.subr.mxu0 0.0
    %3680 = vmatpush2.msra.mxu0 0.0
    %3681 = vmatprep.subr.mxu0 0.0
    %3682 = vmatpush2.msra.mxu0 0.0
    %3683 = vmatprep.subr.mxu0 0.0
    %3684 = vmatpush2.msra.mxu0 0.0
    %3685 = vmatprep.subr.mxu0 0.0
    %3686 = vmatpush2.msra.mxu0 0.0
    %3687 = vmatprep.subr.mxu0 0.0
    %3688 = vmatpush2.msra.mxu0 0.0
    %3689 = vmatprep.subr.mxu0 0.0
    %3690 = vmatpush2.msra.mxu0 0.0
    %3691 = vmatprep.mubr.f32.mxu0 0.0
    %v3692 = vand.u32 %v3211, 4294901760
    %3693 = vmatmul.mubr.f32.gmra.mxu0 %v3692
    %v3694 = vpop.f32.mrf.mxu0
    %v3695 = vadd.f32 %v3620, %v3694
    %v3696 = vpop.f32.mrf.mxu0
    %3697 = vdwg.mxu0
    %v3698 = vmax.f32 %v3185, %v3695
    %v3699 = vsub.f32 %v3185, %v3698
    %v3700 = vmul.f32 %v3699, 1.442695
    %v3701 = vpow.pop %v3700
    %v3702 = vsub.f32 %v3695, %v3698
    %v3703 = vmul.f32 %v3702, 1.442695
    %v3704 = vpow.pop %v3703
    %3706 = vrot.lane.b32.xlu0 %v3701, 96
    %v3707 = vpop.permute.xlu0 %3706
    %v3709 = vmul.f32 %v3206, %v3707
    %3711 = vrot.lane.b32.xlu0 %v3695, 32
    %v3712 = vpop.permute.xlu0 %3711
    %v3714 = vmul.f32 %v3704, %v3712
    %3716 = vrot.lane.b32.xlu0 %v3714, 96
    %v3717 = vpop.permute.xlu0 %3716
    %v3719 = vadd.f32 %v3709, %v3717
    %v3720 = vmul.f32 %v3208, %v3701
    %v3721 = vadd.f32 %v3720, %v3704
    %3723 = vrot.lane.b32.xlu0 %v3721, 96
    %v3724 = vpop.permute.xlu0 %3723
    %v3726 = vrcp.pop %v3724
    %v3727 = vmul.f32 %v3719, %v3726
    %v3728 = vld [vmem:[#allocation8] sm:$0xff]
    %v3729 = vld [vmem:[#allocation8 + $0x8] sm:$0xff]
    %v3730 = vld [vmem:[#allocation8 + $0x10] sm:$0xff]
    %v3731 = vld [vmem:[#allocation8 + $0x18] sm:$0xff]
    %v3732 = vld [vmem:[%s5] sm:$0x1]
    %v3734 = vlaneseq
    %v3735 = vshrl.u32 %v3734, 7
    %v3736 = vsub.s32 0, %v3735
    %v3737 = vrot.slane %v3732, %v3736
    %v3740 = vsel %vm126, %v3727, 0
    %3742 = vmatprep.subr.mxu0 0.0
    %3743 = vmatpush1.msra.mxu0 0.0
    %3744 = vmatprep.subr.mxu0 0.0
    %3745 = vmatpush1.msra.mxu0 0.0
    %3746 = vmatprep.subr.mxu0 0.0
    %3747 = vmatpush1.msra.mxu0 0.0
    %3748 = vmatprep.subr.mxu0 0.0
    %3749 = vmatpush1.msra.mxu0 0.0
    %3750 = vmatprep.subr.mxu0 0.0
    %3751 = vmatpush1.msra.mxu0 0.0
    %3752 = vmatprep.subr.mxu0 0.0
    %3753 = vmatpush1.msra.mxu0 0.0
    %3754 = vmatprep.subr.mxu0 0.0
    %3755 = vmatpush1.msra.mxu0 0.0
    %3756 = vmatprep.subr.mxu0 0.0
    %3757 = vmatpush1.msra.mxu0 0.0
    %3758 = vmatprep.subr.mxu0 0.0
    %3759 = vmatpush1.msra.mxu0 0.0
    %3760 = vmatprep.subr.mxu0 0.0
    %3761 = vmatpush1.msra.mxu0 0.0
    %3762 = vmatprep.subr.mxu0 0.0
    %3763 = vmatpush1.msra.mxu0 0.0
    %3764 = vmatprep.subr.mxu0 0.0
    %3765 = vmatpush1.msra.mxu0 0.0
    %3766 = vmatprep.subr.mxu0 0.0
    %v3767 = vand.u32 %v3731, 4294901760
    %3768 = vmatpush1.msra.mxu0 %v3767
    %3769 = vmatprep.subr.mxu0 0.0
    %v3770 = vand.u32 %v3730, 4294901760
    %3771 = vmatpush1.msra.mxu0 %v3770
    %3772 = vmatprep.subr.mxu0 0.0
    %v3773 = vand.u32 %v3729, 4294901760
    %3774 = vmatpush1.msra.mxu0 %v3773
    %3775 = vmatprep.subr.mxu0 0.0
    %v3776 = vand.u32 %v3728, 4294901760
    %3777 = vmatpush1.msra.mxu0 %v3776
    %3778 = vmatprep.subr.mxu0 0.0
    %3779 = vmatpush2.msra.mxu0 0.0
    %3780 = vmatprep.subr.mxu0 0.0
    %3781 = vmatpush2.msra.mxu0 0.0
    %3782 = vmatprep.subr.mxu0 0.0
    %3783 = vmatpush2.msra.mxu0 0.0
    %3784 = vmatprep.subr.mxu0 0.0
    %3785 = vmatpush2.msra.mxu0 0.0
    %3786 = vmatprep.subr.mxu0 0.0
    %3787 = vmatpush2.msra.mxu0 0.0
    %3788 = vmatprep.subr.mxu0 0.0
    %3789 = vmatpush2.msra.mxu0 0.0
    %3790 = vmatprep.subr.mxu0 0.0
    %3791 = vmatpush2.msra.mxu0 0.0
    %3792 = vmatprep.subr.mxu0 0.0
    %3793 = vmatpush2.msra.mxu0 0.0
    %3794 = vmatprep.subr.mxu0 0.0
    %3795 = vmatpush2.msra.mxu0 0.0
    %3796 = vmatprep.subr.mxu0 0.0
    %3797 = vmatpush2.msra.mxu0 0.0
    %3798 = vmatprep.subr.mxu0 0.0
    %3799 = vmatpush2.msra.mxu0 0.0
    %3800 = vmatprep.subr.mxu0 0.0
    %3801 = vmatpush2.msra.mxu0 0.0
    %3802 = vmatprep.subr.mxu0 0.0
    %3803 = vmatpush2.msra.mxu0 0.0
    %3804 = vmatprep.subr.mxu0 0.0
    %3805 = vmatpush2.msra.mxu0 0.0
    %3806 = vmatprep.subr.mxu0 0.0
    %3807 = vmatpush2.msra.mxu0 0.0
    %3808 = vmatprep.subr.mxu0 0.0
    %3809 = vmatpush2.msra.mxu0 0.0
    %3810 = vmatprep.mubr.f32.mxu0 0.0
    %v3811 = vand.u32 %v3740, 4294901760
    %v3812 = vsub.f32 %v3740, %v3811
    %v3813 = vand.u32 %v3812, 4294901760
    %v3814 = vsub.f32 %v3812, %v3813
    %v3815 = vand.u32 %v3814, 4294901760
    %3816 = vmatmul.mubr.f32.gmra.mxu0 %v3815
    %v3817 = vpop.f32.mrf.mxu0
    %v3818 = vadd.f32 %v3737, %v3817
    %v3819 = vpop.f32.mrf.mxu0
    %3820 = vdwg.mxu0
    %3821 = vmatprep.subr.mxu0 0.0
    %3822 = vmatpush1.msra.mxu0 0.0
    %3823 = vmatprep.subr.mxu0 0.0
    %3824 = vmatpush1.msra.mxu0 0.0
    %3825 = vmatprep.subr.mxu0 0.0
    %3826 = vmatpush1.msra.mxu0 0.0
    %3827 = vmatprep.subr.mxu0 0.0
    %3828 = vmatpush1.msra.mxu0 0.0
    %3829 = vmatprep.subr.mxu0 0.0
    %3830 = vmatpush1.msra.mxu0 0.0
    %3831 = vmatprep.subr.mxu0 0.0
    %3832 = vmatpush1.msra.mxu0 0.0
    %3833 = vmatprep.subr.mxu0 0.0
    %3834 = vmatpush1.msra.mxu0 0.0
    %3835 = vmatprep.subr.mxu0 0.0
    %3836 = vmatpush1.msra.mxu0 0.0
    %3837 = vmatprep.subr.mxu0 0.0
    %3838 = vmatpush1.msra.mxu0 0.0
    %3839 = vmatprep.subr.mxu0 0.0
    %3840 = vmatpush1.msra.mxu0 0.0
    %3841 = vmatprep.subr.mxu0 0.0
    %3842 = vmatpush1.msra.mxu0 0.0
    %3843 = vmatprep.subr.mxu0 0.0
    %3844 = vmatpush1.msra.mxu0 0.0
    %3845 = vmatprep.subr.mxu0 0.0
    %v3846 = vand.u32 %v3731, 4294901760
    %v3847 = vsub.f32 %v3731, %v3846
    %v3848 = vand.u32 %v3847, 4294901760
    %v3849 = vsub.f32 %v3847, %v3848
    %v3850 = vand.u32 %v3849, 4294901760
    %3851 = vmatpush1.msra.mxu0 %v3850
    %3852 = vmatprep.subr.mxu0 0.0
    %v3853 = vand.u32 %v3730, 4294901760
    %v3854 = vsub.f32 %v3730, %v3853
    %v3855 = vand.u32 %v3854, 4294901760
    %v3856 = vsub.f32 %v3854, %v3855
    %v3857 = vand.u32 %v3856, 4294901760
    %3858 = vmatpush1.msra.mxu0 %v3857
    %3859 = vmatprep.subr.mxu0 0.0
    %v3860 = vand.u32 %v3729, 4294901760
    %v3861 = vsub.f32 %v3729, %v3860
    %v3862 = vand.u32 %v3861, 4294901760
    %v3863 = vsub.f32 %v3861, %v3862
    %v3864 = vand.u32 %v3863, 4294901760
    %3865 = vmatpush1.msra.mxu0 %v3864
    %3866 = vmatprep.subr.mxu0 0.0
    %v3867 = vand.u32 %v3728, 4294901760
    %v3868 = vsub.f32 %v3728, %v3867
    %v3869 = vand.u32 %v3868, 4294901760
    %v3870 = vsub.f32 %v3868, %v3869
    %v3871 = vand.u32 %v3870, 4294901760
    %3872 = vmatpush1.msra.mxu0 %v3871
    %3873 = vmatprep.subr.mxu0 0.0
    %3874 = vmatpush2.msra.mxu0 0.0
    %3875 = vmatprep.subr.mxu0 0.0
    %3876 = vmatpush2.msra.mxu0 0.0
    %3877 = vmatprep.subr.mxu0 0.0
    %3878 = vmatpush2.msra.mxu0 0.0
    %3879 = vmatprep.subr.mxu0 0.0
    %3880 = vmatpush2.msra.mxu0 0.0
    %3881 = vmatprep.subr.mxu0 0.0
    %3882 = vmatpush2.msra.mxu0 0.0
    %3883 = vmatprep.subr.mxu0 0.0
    %3884 = vmatpush2.msra.mxu0 0.0
    %3885 = vmatprep.subr.mxu0 0.0
    %3886 = vmatpush2.msra.mxu0 0.0
    %3887 = vmatprep.subr.mxu0 0.0
    %3888 = vmatpush2.msra.mxu0 0.0
    %3889 = vmatprep.subr.mxu0 0.0
    %3890 = vmatpush2.msra.mxu0 0.0
    %3891 = vmatprep.subr.mxu0 0.0
    %3892 = vmatpush2.msra.mxu0 0.0
    %3893 = vmatprep.subr.mxu0 0.0
    %3894 = vmatpush2.msra.mxu0 0.0
    %3895 = vmatprep.subr.mxu0 0.0
    %3896 = vmatpush2.msra.mxu0 0.0
    %3897 = vmatprep.subr.mxu0 0.0
    %3898 = vmatpush2.msra.mxu0 0.0
    %3899 = vmatprep.subr.mxu0 0.0
    %3900 = vmatpush2.msra.mxu0 0.0
    %3901 = vmatprep.subr.mxu0 0.0
    %3902 = vmatpush2.msra.mxu0 0.0
    %3903 = vmatprep.subr.mxu0 0.0
    %3904 = vmatpush2.msra.mxu0 0.0
    %3905 = vmatprep.mubr.f32.mxu0 0.0
    %v3906 = vand.u32 %v3740, 4294901760
    %3907 = vmatmul.mubr.f32.gmra.mxu0 %v3906
    %v3908 = vpop.f32.mrf.mxu0
    %v3909 = vadd.f32 %v3818, %v3908
    %v3910 = vpop.f32.mrf.mxu0
    %3911 = vdwg.mxu0
    %3912 = vmatprep.subr.mxu0 0.0
    %3913 = vmatpush1.msra.mxu0 0.0
    %3914 = vmatprep.subr.mxu0 0.0
    %3915 = vmatpush1.msra.mxu0 0.0
    %3916 = vmatprep.subr.mxu0 0.0
    %3917 = vmatpush1.msra.mxu0 0.0
    %3918 = vmatprep.subr.mxu0 0.0
    %3919 = vmatpush1.msra.mxu0 0.0
    %3920 = vmatprep.subr.mxu0 0.0
    %3921 = vmatpush1.msra.mxu0 0.0
    %3922 = vmatprep.subr.mxu0 0.0
    %3923 = vmatpush1.msra.mxu0 0.0
    %3924 = vmatprep.subr.mxu0 0.0
    %3925 = vmatpush1.msra.mxu0 0.0
    %3926 = vmatprep.subr.mxu0 0.0
    %3927 = vmatpush1.msra.mxu0 0.0
    %3928 = vmatprep.subr.mxu0 0.0
    %3929 = vmatpush1.msra.mxu0 0.0
    %3930 = vmatprep.subr.mxu0 0.0
    %3931 = vmatpush1.msra.mxu0 0.0
    %3932 = vmatprep.subr.mxu0 0.0
    %3933 = vmatpush1.msra.mxu0 0.0
    %3934 = vmatprep.subr.mxu0 0.0
    %3935 = vmatpush1.msra.mxu0 0.0
    %3936 = vmatprep.subr.mxu0 0.0
    %v3937 = vand.u32 %v3731, 4294901760
    %v3938 = vsub.f32 %v3731, %v3937
    %3939 = vmatpush1.msra.mxu0 %v3938
    %3940 = vmatprep.subr.mxu0 0.0
    %v3941 = vand.u32 %v3730, 4294901760
    %v3942 = vsub.f32 %v3730, %v3941
    %3943 = vmatpush1.msra.mxu0 %v3942
    %3944 = vmatprep.subr.mxu0 0.0
    %v3945 = vand.u32 %v3729, 4294901760
    %v3946 = vsub.f32 %v3729, %v3945
    %3947 = vmatpush1.msra.mxu0 %v3946
    %3948 = vmatprep.subr.mxu0 0.0
    %v3949 = vand.u32 %v3728, 4294901760
    %v3950 = vsub.f32 %v3728, %v3949
    %3951 = vmatpush1.msra.mxu0 %v3950
    %3952 = vmatprep.subr.mxu0 0.0
    %3953 = vmatpush2.msra.mxu0 0.0
    %3954 = vmatprep.subr.mxu0 0.0
    %3955 = vmatpush2.msra.mxu0 0.0
    %3956 = vmatprep.subr.mxu0 0.0
    %3957 = vmatpush2.msra.mxu0 0.0
    %3958 = vmatprep.subr.mxu0 0.0
    %3959 = vmatpush2.msra.mxu0 0.0
    %3960 = vmatprep.subr.mxu0 0.0
    %3961 = vmatpush2.msra.mxu0 0.0
    %3962 = vmatprep.subr.mxu0 0.0
    %3963 = vmatpush2.msra.mxu0 0.0
    %3964 = vmatprep.subr.mxu0 0.0
    %3965 = vmatpush2.msra.mxu0 0.0
    %3966 = vmatprep.subr.mxu0 0.0
    %3967 = vmatpush2.msra.mxu0 0.0
    %3968 = vmatprep.subr.mxu0 0.0
    %3969 = vmatpush2.msra.mxu0 0.0
    %3970 = vmatprep.subr.mxu0 0.0
    %3971 = vmatpush2.msra.mxu0 0.0
    %3972 = vmatprep.subr.mxu0 0.0
    %3973 = vmatpush2.msra.mxu0 0.0
    %3974 = vmatprep.subr.mxu0 0.0
    %3975 = vmatpush2.msra.mxu0 0.0
    %3976 = vmatprep.subr.mxu0 0.0
    %3977 = vmatpush2.msra.mxu0 0.0
    %3978 = vmatprep.subr.mxu0 0.0
    %3979 = vmatpush2.msra.mxu0 0.0
    %3980 = vmatprep.subr.mxu0 0.0
    %3981 = vmatpush2.msra.mxu0 0.0
    %3982 = vmatprep.subr.mxu0 0.0
    %3983 = vmatpush2.msra.mxu0 0.0
    %3984 = vmatprep.mubr.f32.mxu0 0.0
    %v3985 = vand.u32 %v3740, 4294901760
    %v3986 = vsub.f32 %v3740, %v3985
    %3987 = vmatmul.mubr.f32.gmra.mxu0 %v3986
    %v3988 = vpop.f32.mrf.mxu0
    %v3989 = vadd.f32 %v3909, %v3988
    %v3990 = vpop.f32.mrf.mxu0
    %3991 = vdwg.mxu0
    %3992 = vmatprep.subr.mxu0 0.0
    %3993 = vmatpush1.msra.mxu0 0.0
    %3994 = vmatprep.subr.mxu0 0.0
    %3995 = vmatpush1.msra.mxu0 0.0
    %3996 = vmatprep.subr.mxu0 0.0
    %3997 = vmatpush1.msra.mxu0 0.0
    %3998 = vmatprep.subr.mxu0 0.0
    %3999 = vmatpush1.msra.mxu0 0.0
    %4000 = vmatprep.subr.mxu0 0.0
    %4001 = vmatpush1.msra.mxu0 0.0
    %4002 = vmatprep.subr.mxu0 0.0
    %4003 = vmatpush1.msra.mxu0 0.0
    %4004 = vmatprep.subr.mxu0 0.0
    %4005 = vmatpush1.msra.mxu0 0.0
    %4006 = vmatprep.subr.mxu0 0.0
    %4007 = vmatpush1.msra.mxu0 0.0
    %4008 = vmatprep.subr.mxu0 0.0
    %4009 = vmatpush1.msra.mxu0 0.0
    %4010 = vmatprep.subr.mxu0 0.0
    %4011 = vmatpush1.msra.mxu0 0.0
    %4012 = vmatprep.subr.mxu0 0.0
    %4013 = vmatpush1.msra.mxu0 0.0
    %4014 = vmatprep.subr.mxu0 0.0
    %4015 = vmatpush1.msra.mxu0 0.0
    %4016 = vmatprep.subr.mxu0 0.0
    %v4017 = vand.u32 %v3731, 4294901760
    %4018 = vmatpush1.msra.mxu0 %v4017
    %4019 = vmatprep.subr.mxu0 0.0
    %v4020 = vand.u32 %v3730, 4294901760
    %4021 = vmatpush1.msra.mxu0 %v4020
    %4022 = vmatprep.subr.mxu0 0.0
    %v4023 = vand.u32 %v3729, 4294901760
    %4024 = vmatpush1.msra.mxu0 %v4023
    %4025 = vmatprep.subr.mxu0 0.0
    %v4026 = vand.u32 %v3728, 4294901760
    %4027 = vmatpush1.msra.mxu0 %v4026
    %4028 = vmatprep.subr.mxu0 0.0
    %4029 = vmatpush2.msra.mxu0 0.0
    %4030 = vmatprep.subr.mxu0 0.0
    %4031 = vmatpush2.msra.mxu0 0.0
    %4032 = vmatprep.subr.mxu0 0.0
    %4033 = vmatpush2.msra.mxu0 0.0
    %4034 = vmatprep.subr.mxu0 0.0
    %4035 = vmatpush2.msra.mxu0 0.0
    %4036 = vmatprep.subr.mxu0 0.0
    %4037 = vmatpush2.msra.mxu0 0.0
    %4038 = vmatprep.subr.mxu0 0.0
    %4039 = vmatpush2.msra.mxu0 0.0
    %4040 = vmatprep.subr.mxu0 0.0
    %4041 = vmatpush2.msra.mxu0 0.0
    %4042 = vmatprep.subr.mxu0 0.0
    %4043 = vmatpush2.msra.mxu0 0.0
    %4044 = vmatprep.subr.mxu0 0.0
    %4045 = vmatpush2.msra.mxu0 0.0
    %4046 = vmatprep.subr.mxu0 0.0
    %4047 = vmatpush2.msra.mxu0 0.0
    %4048 = vmatprep.subr.mxu0 0.0
    %4049 = vmatpush2.msra.mxu0 0.0
    %4050 = vmatprep.subr.mxu0 0.0
    %4051 = vmatpush2.msra.mxu0 0.0
    %4052 = vmatprep.subr.mxu0 0.0
    %4053 = vmatpush2.msra.mxu0 0.0
    %4054 = vmatprep.subr.mxu0 0.0
    %4055 = vmatpush2.msra.mxu0 0.0
    %4056 = vmatprep.subr.mxu0 0.0
    %4057 = vmatpush2.msra.mxu0 0.0
    %4058 = vmatprep.subr.mxu0 0.0
    %4059 = vmatpush2.msra.mxu0 0.0
    %4060 = vmatprep.mubr.f32.mxu0 0.0
    %v4061 = vand.u32 %v3740, 4294901760
    %v4062 = vsub.f32 %v3740, %v4061
    %v4063 = vand.u32 %v4062, 4294901760
    %4064 = vmatmul.mubr.f32.gmra.mxu0 %v4063
    %v4065 = vpop.f32.mrf.mxu0
    %v4066 = vadd.f32 %v3989, %v4065
    %v4067 = vpop.f32.mrf.mxu0
    %4068 = vdwg.mxu0
    %4069 = vmatprep.subr.mxu0 0.0
    %4070 = vmatpush1.msra.mxu0 0.0
    %4071 = vmatprep.subr.mxu0 0.0
    %4072 = vmatpush1.msra.mxu0 0.0
    %4073 = vmatprep.subr.mxu0 0.0
    %4074 = vmatpush1.msra.mxu0 0.0
    %4075 = vmatprep.subr.mxu0 0.0
    %4076 = vmatpush1.msra.mxu0 0.0
    %4077 = vmatprep.subr.mxu0 0.0
    %4078 = vmatpush1.msra.mxu0 0.0
    %4079 = vmatprep.subr.mxu0 0.0
    %4080 = vmatpush1.msra.mxu0 0.0
    %4081 = vmatprep.subr.mxu0 0.0
    %4082 = vmatpush1.msra.mxu0 0.0
    %4083 = vmatprep.subr.mxu0 0.0
    %4084 = vmatpush1.msra.mxu0 0.0
    %4085 = vmatprep.subr.mxu0 0.0
    %4086 = vmatpush1.msra.mxu0 0.0
    %4087 = vmatprep.subr.mxu0 0.0
    %4088 = vmatpush1.msra.mxu0 0.0
    %4089 = vmatprep.subr.mxu0 0.0
    %4090 = vmatpush1.msra.mxu0 0.0
    %4091 = vmatprep.subr.mxu0 0.0
    %4092 = vmatpush1.msra.mxu0 0.0
    %4093 = vmatprep.subr.mxu0 0.0
    %v4094 = vand.u32 %v3731, 4294901760
    %v4095 = vsub.f32 %v3731, %v4094
    %v4096 = vand.u32 %v4095, 4294901760
    %4097 = vmatpush1.msra.mxu0 %v4096
    %4098 = vmatprep.subr.mxu0 0.0
    %v4099 = vand.u32 %v3730, 4294901760
    %v4100 = vsub.f32 %v3730, %v4099
    %v4101 = vand.u32 %v4100, 4294901760
    %4102 = vmatpush1.msra.mxu0 %v4101
    %4103 = vmatprep.subr.mxu0 0.0
    %v4104 = vand.u32 %v3729, 4294901760
    %v4105 = vsub.f32 %v3729, %v4104
    %v4106 = vand.u32 %v4105, 4294901760
    %4107 = vmatpush1.msra.mxu0 %v4106
    %4108 = vmatprep.subr.mxu0 0.0
    %v4109 = vand.u32 %v3728, 4294901760
    %v4110 = vsub.f32 %v3728, %v4109
    %v4111 = vand.u32 %v4110, 4294901760
    %4112 = vmatpush1.msra.mxu0 %v4111
    %4113 = vmatprep.subr.mxu0 0.0
    %4114 = vmatpush2.msra.mxu0 0.0
    %4115 = vmatprep.subr.mxu0 0.0
    %4116 = vmatpush2.msra.mxu0 0.0
    %4117 = vmatprep.subr.mxu0 0.0
    %4118 = vmatpush2.msra.mxu0 0.0
    %4119 = vmatprep.subr.mxu0 0.0
    %4120 = vmatpush2.msra.mxu0 0.0
    %4121 = vmatprep.subr.mxu0 0.0
    %4122 = vmatpush2.msra.mxu0 0.0
    %4123 = vmatprep.subr.mxu0 0.0
    %4124 = vmatpush2.msra.mxu0 0.0
    %4125 = vmatprep.subr.mxu0 0.0
    %4126 = vmatpush2.msra.mxu0 0.0
    %4127 = vmatprep.subr.mxu0 0.0
    %4128 = vmatpush2.msra.mxu0 0.0
    %4129 = vmatprep.subr.mxu0 0.0
    %4130 = vmatpush2.msra.mxu0 0.0
    %4131 = vmatprep.subr.mxu0 0.0
    %4132 = vmatpush2.msra.mxu0 0.0
    %4133 = vmatprep.subr.mxu0 0.0
    %4134 = vmatpush2.msra.mxu0 0.0
    %4135 = vmatprep.subr.mxu0 0.0
    %4136 = vmatpush2.msra.mxu0 0.0
    %4137 = vmatprep.subr.mxu0 0.0
    %4138 = vmatpush2.msra.mxu0 0.0
    %4139 = vmatprep.subr.mxu0 0.0
    %4140 = vmatpush2.msra.mxu0 0.0
    %4141 = vmatprep.subr.mxu0 0.0
    %4142 = vmatpush2.msra.mxu0 0.0
    %4143 = vmatprep.subr.mxu0 0.0
    %4144 = vmatpush2.msra.mxu0 0.0
    %4145 = vmatprep.mubr.f32.mxu0 0.0
    %v4146 = vand.u32 %v3740, 4294901760
    %4147 = vmatmul.mubr.f32.gmra.mxu0 %v4146
    %v4148 = vpop.f32.mrf.mxu0
    %v4149 = vadd.f32 %v4066, %v4148
    %v4150 = vpop.f32.mrf.mxu0
    %4151 = vdwg.mxu0
    %4152 = vmatprep.subr.mxu0 0.0
    %4153 = vmatpush1.msra.mxu0 0.0
    %4154 = vmatprep.subr.mxu0 0.0
    %4155 = vmatpush1.msra.mxu0 0.0
    %4156 = vmatprep.subr.mxu0 0.0
    %4157 = vmatpush1.msra.mxu0 0.0
    %4158 = vmatprep.subr.mxu0 0.0
    %4159 = vmatpush1.msra.mxu0 0.0
    %4160 = vmatprep.subr.mxu0 0.0
    %4161 = vmatpush1.msra.mxu0 0.0
    %4162 = vmatprep.subr.mxu0 0.0
    %4163 = vmatpush1.msra.mxu0 0.0
    %4164 = vmatprep.subr.mxu0 0.0
    %4165 = vmatpush1.msra.mxu0 0.0
    %4166 = vmatprep.subr.mxu0 0.0
    %4167 = vmatpush1.msra.mxu0 0.0
    %4168 = vmatprep.subr.mxu0 0.0
    %4169 = vmatpush1.msra.mxu0 0.0
    %4170 = vmatprep.subr.mxu0 0.0
    %4171 = vmatpush1.msra.mxu0 0.0
    %4172 = vmatprep.subr.mxu0 0.0
    %4173 = vmatpush1.msra.mxu0 0.0
    %4174 = vmatprep.subr.mxu0 0.0
    %4175 = vmatpush1.msra.mxu0 0.0
    %4176 = vmatprep.subr.mxu0 0.0
    %v4177 = vand.u32 %v3731, 4294901760
    %4178 = vmatpush1.msra.mxu0 %v4177
    %4179 = vmatprep.subr.mxu0 0.0
    %v4180 = vand.u32 %v3730, 4294901760
    %4181 = vmatpush1.msra.mxu0 %v4180
    %4182 = vmatprep.subr.mxu0 0.0
    %v4183 = vand.u32 %v3729, 4294901760
    %4184 = vmatpush1.msra.mxu0 %v4183
    %4185 = vmatprep.subr.mxu0 0.0
    %v4186 = vand.u32 %v3728, 4294901760
    %4187 = vmatpush1.msra.mxu0 %v4186
    %4188 = vmatprep.subr.mxu0 0.0
    %4189 = vmatpush2.msra.mxu0 0.0
    %4190 = vmatprep.subr.mxu0 0.0
    %4191 = vmatpush2.msra.mxu0 0.0
    %4192 = vmatprep.subr.mxu0 0.0
    %4193 = vmatpush2.msra.mxu0 0.0
    %4194 = vmatprep.subr.mxu0 0.0
    %4195 = vmatpush2.msra.mxu0 0.0
    %4196 = vmatprep.subr.mxu0 0.0
    %4197 = vmatpush2.msra.mxu0 0.0
    %4198 = vmatprep.subr.mxu0 0.0
    %4199 = vmatpush2.msra.mxu0 0.0
    %4200 = vmatprep.subr.mxu0 0.0
    %4201 = vmatpush2.msra.mxu0 0.0
    %4202 = vmatprep.subr.mxu0 0.0
    %4203 = vmatpush2.msra.mxu0 0.0
    %4204 = vmatprep.subr.mxu0 0.0
    %4205 = vmatpush2.msra.mxu0 0.0
    %4206 = vmatprep.subr.mxu0 0.0
    %4207 = vmatpush2.msra.mxu0 0.0
    %4208 = vmatprep.subr.mxu0 0.0
    %4209 = vmatpush2.msra.mxu0 0.0
    %4210 = vmatprep.subr.mxu0 0.0
    %4211 = vmatpush2.msra.mxu0 0.0
    %4212 = vmatprep.subr.mxu0 0.0
    %4213 = vmatpush2.msra.mxu0 0.0
    %4214 = vmatprep.subr.mxu0 0.0
    %4215 = vmatpush2.msra.mxu0 0.0
    %4216 = vmatprep.subr.mxu0 0.0
    %4217 = vmatpush2.msra.mxu0 0.0
    %4218 = vmatprep.subr.mxu0 0.0
    %4219 = vmatpush2.msra.mxu0 0.0
    %4220 = vmatprep.mubr.f32.mxu0 0.0
    %v4221 = vand.u32 %v3740, 4294901760
    %4222 = vmatmul.mubr.f32.gmra.mxu0 %v4221
    %v4223 = vpop.f32.mrf.mxu0
    %v4224 = vadd.f32 %v4149, %v4223
    %v4225 = vpop.f32.mrf.mxu0
    %4226 = vdwg.mxu0
    %v4227 = vld [vmem:[#allocation5] sm:$0x3]
    %v4228 = vld [vmem:[#allocation10] sm:$0xff]
    %v4229 = vld [vmem:[#allocation10 + $0x8] sm:$0xff]
    %v4230 = vld [vmem:[#allocation10 + $0x10] sm:$0xff]
    %v4231 = vld [vmem:[#allocation10 + $0x18] sm:$0xff]
    %v4232 = vld [vmem:[%s7] sm:$0x1]
    %v4234 = vlaneseq
    %v4235 = vshrl.u32 %v4234, 7
    %v4236 = vsub.s32 0, %v4235
    %v4237 = vrot.slane %v4232, %v4236
    %v4240 = vsel %vm126, %v4227, 0
    %4242 = vmatprep.subr.mxu0 0.0
    %4243 = vmatpush1.msra.mxu0 0.0
    %4244 = vmatprep.subr.mxu0 0.0
    %4245 = vmatpush1.msra.mxu0 0.0
    %4246 = vmatprep.subr.mxu0 0.0
    %4247 = vmatpush1.msra.mxu0 0.0
    %4248 = vmatprep.subr.mxu0 0.0
    %4249 = vmatpush1.msra.mxu0 0.0
    %4250 = vmatprep.subr.mxu0 0.0
    %4251 = vmatpush1.msra.mxu0 0.0
    %4252 = vmatprep.subr.mxu0 0.0
    %4253 = vmatpush1.msra.mxu0 0.0
    %4254 = vmatprep.subr.mxu0 0.0
    %4255 = vmatpush1.msra.mxu0 0.0
    %4256 = vmatprep.subr.mxu0 0.0
    %4257 = vmatpush1.msra.mxu0 0.0
    %4258 = vmatprep.subr.mxu0 0.0
    %4259 = vmatpush1.msra.mxu0 0.0
    %4260 = vmatprep.subr.mxu0 0.0
    %4261 = vmatpush1.msra.mxu0 0.0
    %4262 = vmatprep.subr.mxu0 0.0
    %4263 = vmatpush1.msra.mxu0 0.0
    %4264 = vmatprep.subr.mxu0 0.0
    %4265 = vmatpush1.msra.mxu0 0.0
    %4266 = vmatprep.subr.mxu0 0.0
    %v4267 = vand.u32 %v4231, 4294901760
    %4268 = vmatpush1.msra.mxu0 %v4267
    %4269 = vmatprep.subr.mxu0 0.0
    %v4270 = vand.u32 %v4230, 4294901760
    %4271 = vmatpush1.msra.mxu0 %v4270
    %4272 = vmatprep.subr.mxu0 0.0
    %v4273 = vand.u32 %v4229, 4294901760
    %4274 = vmatpush1.msra.mxu0 %v4273
    %4275 = vmatprep.subr.mxu0 0.0
    %v4276 = vand.u32 %v4228, 4294901760
    %4277 = vmatpush1.msra.mxu0 %v4276
    %4278 = vmatprep.subr.mxu0 0.0
    %4279 = vmatpush2.msra.mxu0 0.0
    %4280 = vmatprep.subr.mxu0 0.0
    %4281 = vmatpush2.msra.mxu0 0.0
    %4282 = vmatprep.subr.mxu0 0.0
    %4283 = vmatpush2.msra.mxu0 0.0
    %4284 = vmatprep.subr.mxu0 0.0
    %4285 = vmatpush2.msra.mxu0 0.0
    %4286 = vmatprep.subr.mxu0 0.0
    %4287 = vmatpush2.msra.mxu0 0.0
    %4288 = vmatprep.subr.mxu0 0.0
    %4289 = vmatpush2.msra.mxu0 0.0
    %4290 = vmatprep.subr.mxu0 0.0
    %4291 = vmatpush2.msra.mxu0 0.0
    %4292 = vmatprep.subr.mxu0 0.0
    %4293 = vmatpush2.msra.mxu0 0.0
    %4294 = vmatprep.subr.mxu0 0.0
    %4295 = vmatpush2.msra.mxu0 0.0
    %4296 = vmatprep.subr.mxu0 0.0
    %4297 = vmatpush2.msra.mxu0 0.0
    %4298 = vmatprep.subr.mxu0 0.0
    %4299 = vmatpush2.msra.mxu0 0.0
    %4300 = vmatprep.subr.mxu0 0.0
    %4301 = vmatpush2.msra.mxu0 0.0
    %4302 = vmatprep.subr.mxu0 0.0
    %4303 = vmatpush2.msra.mxu0 0.0
    %4304 = vmatprep.subr.mxu0 0.0
    %4305 = vmatpush2.msra.mxu0 0.0
    %4306 = vmatprep.subr.mxu0 0.0
    %4307 = vmatpush2.msra.mxu0 0.0
    %4308 = vmatprep.subr.mxu0 0.0
    %4309 = vmatpush2.msra.mxu0 0.0
    %4310 = vmatprep.mubr.f32.mxu0 0.0
    %v4311 = vand.u32 %v4240, 4294901760
    %v4312 = vsub.f32 %v4240, %v4311
    %v4313 = vand.u32 %v4312, 4294901760
    %v4314 = vsub.f32 %v4312, %v4313
    %v4315 = vand.u32 %v4314, 4294901760
    %4316 = vmatmul.mubr.f32.gmra.mxu0 %v4315
    %v4317 = vpop.f32.mrf.mxu0
    %v4318 = vadd.f32 %v4237, %v4317
    %v4319 = vpop.f32.mrf.mxu0
    %4320 = vdwg.mxu0
    %4321 = vmatprep.subr.mxu0 0.0
    %4322 = vmatpush1.msra.mxu0 0.0
    %4323 = vmatprep.subr.mxu0 0.0
    %4324 = vmatpush1.msra.mxu0 0.0
    %4325 = vmatprep.subr.mxu0 0.0
    %4326 = vmatpush1.msra.mxu0 0.0
    %4327 = vmatprep.subr.mxu0 0.0
    %4328 = vmatpush1.msra.mxu0 0.0
    %4329 = vmatprep.subr.mxu0 0.0
    %4330 = vmatpush1.msra.mxu0 0.0
    %4331 = vmatprep.subr.mxu0 0.0
    %4332 = vmatpush1.msra.mxu0 0.0
    %4333 = vmatprep.subr.mxu0 0.0
    %4334 = vmatpush1.msra.mxu0 0.0
    %4335 = vmatprep.subr.mxu0 0.0
    %4336 = vmatpush1.msra.mxu0 0.0
    %4337 = vmatprep.subr.mxu0 0.0
    %4338 = vmatpush1.msra.mxu0 0.0
    %4339 = vmatprep.subr.mxu0 0.0
    %4340 = vmatpush1.msra.mxu0 0.0
    %4341 = vmatprep.subr.mxu0 0.0
    %4342 = vmatpush1.msra.mxu0 0.0
    %4343 = vmatprep.subr.mxu0 0.0
    %4344 = vmatpush1.msra.mxu0 0.0
    %4345 = vmatprep.subr.mxu0 0.0
    %v4346 = vand.u32 %v4231, 4294901760
    %v4347 = vsub.f32 %v4231, %v4346
    %v4348 = vand.u32 %v4347, 4294901760
    %v4349 = vsub.f32 %v4347, %v4348
    %v4350 = vand.u32 %v4349, 4294901760
    %4351 = vmatpush1.msra.mxu0 %v4350
    %4352 = vmatprep.subr.mxu0 0.0
    %v4353 = vand.u32 %v4230, 4294901760
    %v4354 = vsub.f32 %v4230, %v4353
    %v4355 = vand.u32 %v4354, 4294901760
    %v4356 = vsub.f32 %v4354, %v4355
    %v4357 = vand.u32 %v4356, 4294901760
    %4358 = vmatpush1.msra.mxu0 %v4357
    %4359 = vmatprep.subr.mxu0 0.0
    %v4360 = vand.u32 %v4229, 4294901760
    %v4361 = vsub.f32 %v4229, %v4360
    %v4362 = vand.u32 %v4361, 4294901760
    %v4363 = vsub.f32 %v4361, %v4362
    %v4364 = vand.u32 %v4363, 4294901760
    %4365 = vmatpush1.msra.mxu0 %v4364
    %4366 = vmatprep.subr.mxu0 0.0
    %v4367 = vand.u32 %v4228, 4294901760
    %v4368 = vsub.f32 %v4228, %v4367
    %v4369 = vand.u32 %v4368, 4294901760
    %v4370 = vsub.f32 %v4368, %v4369
    %v4371 = vand.u32 %v4370, 4294901760
    %4372 = vmatpush1.msra.mxu0 %v4371
    %4373 = vmatprep.subr.mxu0 0.0
    %4374 = vmatpush2.msra.mxu0 0.0
    %4375 = vmatprep.subr.mxu0 0.0
    %4376 = vmatpush2.msra.mxu0 0.0
    %4377 = vmatprep.subr.mxu0 0.0
    %4378 = vmatpush2.msra.mxu0 0.0
    %4379 = vmatprep.subr.mxu0 0.0
    %4380 = vmatpush2.msra.mxu0 0.0
    %4381 = vmatprep.subr.mxu0 0.0
    %4382 = vmatpush2.msra.mxu0 0.0
    %4383 = vmatprep.subr.mxu0 0.0
    %4384 = vmatpush2.msra.mxu0 0.0
    %4385 = vmatprep.subr.mxu0 0.0
    %4386 = vmatpush2.msra.mxu0 0.0
    %4387 = vmatprep.subr.mxu0 0.0
    %4388 = vmatpush2.msra.mxu0 0.0
    %4389 = vmatprep.subr.mxu0 0.0
    %4390 = vmatpush2.msra.mxu0 0.0
    %4391 = vmatprep.subr.mxu0 0.0
    %4392 = vmatpush2.msra.mxu0 0.0
    %4393 = vmatprep.subr.mxu0 0.0
    %4394 = vmatpush2.msra.mxu0 0.0
    %4395 = vmatprep.subr.mxu0 0.0
    %4396 = vmatpush2.msra.mxu0 0.0
    %4397 = vmatprep.subr.mxu0 0.0
    %4398 = vmatpush2.msra.mxu0 0.0
    %4399 = vmatprep.subr.mxu0 0.0
    %4400 = vmatpush2.msra.mxu0 0.0
    %4401 = vmatprep.subr.mxu0 0.0
    %4402 = vmatpush2.msra.mxu0 0.0
    %4403 = vmatprep.subr.mxu0 0.0
    %4404 = vmatpush2.msra.mxu0 0.0
    %4405 = vmatprep.mubr.f32.mxu0 0.0
    %v4406 = vand.u32 %v4240, 4294901760
    %4407 = vmatmul.mubr.f32.gmra.mxu0 %v4406
    %v4408 = vpop.f32.mrf.mxu0
    %v4409 = vadd.f32 %v4318, %v4408
    %v4410 = vpop.f32.mrf.mxu0
    %4411 = vdwg.mxu0
    %4412 = vmatprep.subr.mxu0 0.0
    %4413 = vmatpush1.msra.mxu0 0.0
    %4414 = vmatprep.subr.mxu0 0.0
    %4415 = vmatpush1.msra.mxu0 0.0
    %4416 = vmatprep.subr.mxu0 0.0
    %4417 = vmatpush1.msra.mxu0 0.0
    %4418 = vmatprep.subr.mxu0 0.0
    %4419 = vmatpush1.msra.mxu0 0.0
    %4420 = vmatprep.subr.mxu0 0.0
    %4421 = vmatpush1.msra.mxu0 0.0
    %4422 = vmatprep.subr.mxu0 0.0
    %4423 = vmatpush1.msra.mxu0 0.0
    %4424 = vmatprep.subr.mxu0 0.0
    %4425 = vmatpush1.msra.mxu0 0.0
    %4426 = vmatprep.subr.mxu0 0.0
    %4427 = vmatpush1.msra.mxu0 0.0
    %4428 = vmatprep.subr.mxu0 0.0
    %4429 = vmatpush1.msra.mxu0 0.0
    %4430 = vmatprep.subr.mxu0 0.0
    %4431 = vmatpush1.msra.mxu0 0.0
    %4432 = vmatprep.subr.mxu0 0.0
    %4433 = vmatpush1.msra.mxu0 0.0
    %4434 = vmatprep.subr.mxu0 0.0
    %4435 = vmatpush1.msra.mxu0 0.0
    %4436 = vmatprep.subr.mxu0 0.0
    %v4437 = vand.u32 %v4231, 4294901760
    %v4438 = vsub.f32 %v4231, %v4437
    %4439 = vmatpush1.msra.mxu0 %v4438
    %4440 = vmatprep.subr.mxu0 0.0
    %v4441 = vand.u32 %v4230, 4294901760
    %v4442 = vsub.f32 %v4230, %v4441
    %4443 = vmatpush1.msra.mxu0 %v4442
    %4444 = vmatprep.subr.mxu0 0.0
    %v4445 = vand.u32 %v4229, 4294901760
    %v4446 = vsub.f32 %v4229, %v4445
    %4447 = vmatpush1.msra.mxu0 %v4446
    %4448 = vmatprep.subr.mxu0 0.0
    %v4449 = vand.u32 %v4228, 4294901760
    %v4450 = vsub.f32 %v4228, %v4449
    %4451 = vmatpush1.msra.mxu0 %v4450
    %4452 = vmatprep.subr.mxu0 0.0
    %4453 = vmatpush2.msra.mxu0 0.0
    %4454 = vmatprep.subr.mxu0 0.0
    %4455 = vmatpush2.msra.mxu0 0.0
    %4456 = vmatprep.subr.mxu0 0.0
    %4457 = vmatpush2.msra.mxu0 0.0
    %4458 = vmatprep.subr.mxu0 0.0
    %4459 = vmatpush2.msra.mxu0 0.0
    %4460 = vmatprep.subr.mxu0 0.0
    %4461 = vmatpush2.msra.mxu0 0.0
    %4462 = vmatprep.subr.mxu0 0.0
    %4463 = vmatpush2.msra.mxu0 0.0
    %4464 = vmatprep.subr.mxu0 0.0
    %4465 = vmatpush2.msra.mxu0 0.0
    %4466 = vmatprep.subr.mxu0 0.0
    %4467 = vmatpush2.msra.mxu0 0.0
    %4468 = vmatprep.subr.mxu0 0.0
    %4469 = vmatpush2.msra.mxu0 0.0
    %4470 = vmatprep.subr.mxu0 0.0
    %4471 = vmatpush2.msra.mxu0 0.0
    %4472 = vmatprep.subr.mxu0 0.0
    %4473 = vmatpush2.msra.mxu0 0.0
    %4474 = vmatprep.subr.mxu0 0.0
    %4475 = vmatpush2.msra.mxu0 0.0
    %4476 = vmatprep.subr.mxu0 0.0
    %4477 = vmatpush2.msra.mxu0 0.0
    %4478 = vmatprep.subr.mxu0 0.0
    %4479 = vmatpush2.msra.mxu0 0.0
    %4480 = vmatprep.subr.mxu0 0.0
    %4481 = vmatpush2.msra.mxu0 0.0
    %4482 = vmatprep.subr.mxu0 0.0
    %4483 = vmatpush2.msra.mxu0 0.0
    %4484 = vmatprep.mubr.f32.mxu0 0.0
    %v4485 = vand.u32 %v4240, 4294901760
    %v4486 = vsub.f32 %v4240, %v4485
    %4487 = vmatmul.mubr.f32.gmra.mxu0 %v4486
    %v4488 = vpop.f32.mrf.mxu0
    %v4489 = vadd.f32 %v4409, %v4488
    %v4490 = vpop.f32.mrf.mxu0
    %4491 = vdwg.mxu0
    %4492 = vmatprep.subr.mxu0 0.0
    %4493 = vmatpush1.msra.mxu0 0.0
    %4494 = vmatprep.subr.mxu0 0.0
    %4495 = vmatpush1.msra.mxu0 0.0
    %4496 = vmatprep.subr.mxu0 0.0
    %4497 = vmatpush1.msra.mxu0 0.0
    %4498 = vmatprep.subr.mxu0 0.0
    %4499 = vmatpush1.msra.mxu0 0.0
    %4500 = vmatprep.subr.mxu0 0.0
    %4501 = vmatpush1.msra.mxu0 0.0
    %4502 = vmatprep.subr.mxu0 0.0
    %4503 = vmatpush1.msra.mxu0 0.0
    %4504 = vmatprep.subr.mxu0 0.0
    %4505 = vmatpush1.msra.mxu0 0.0
    %4506 = vmatprep.subr.mxu0 0.0
    %4507 = vmatpush1.msra.mxu0 0.0
    %4508 = vmatprep.subr.mxu0 0.0
    %4509 = vmatpush1.msra.mxu0 0.0
    %4510 = vmatprep.subr.mxu0 0.0
    %4511 = vmatpush1.msra.mxu0 0.0
    %4512 = vmatprep.subr.mxu0 0.0
    %4513 = vmatpush1.msra.mxu0 0.0
    %4514 = vmatprep.subr.mxu0 0.0
    %4515 = vmatpush1.msra.mxu0 0.0
    %4516 = vmatprep.subr.mxu0 0.0
    %v4517 = vand.u32 %v4231, 4294901760
    %4518 = vmatpush1.msra.mxu0 %v4517
    %4519 = vmatprep.subr.mxu0 0.0
    %v4520 = vand.u32 %v4230, 4294901760
    %4521 = vmatpush1.msra.mxu0 %v4520
    %4522 = vmatprep.subr.mxu0 0.0
    %v4523 = vand.u32 %v4229, 4294901760
    %4524 = vmatpush1.msra.mxu0 %v4523
    %4525 = vmatprep.subr.mxu0 0.0
    %v4526 = vand.u32 %v4228, 4294901760
    %4527 = vmatpush1.msra.mxu0 %v4526
    %4528 = vmatprep.subr.mxu0 0.0
    %4529 = vmatpush2.msra.mxu0 0.0
    %4530 = vmatprep.subr.mxu0 0.0
    %4531 = vmatpush2.msra.mxu0 0.0
    %4532 = vmatprep.subr.mxu0 0.0
    %4533 = vmatpush2.msra.mxu0 0.0
    %4534 = vmatprep.subr.mxu0 0.0
    %4535 = vmatpush2.msra.mxu0 0.0
    %4536 = vmatprep.subr.mxu0 0.0
    %4537 = vmatpush2.msra.mxu0 0.0
    %4538 = vmatprep.subr.mxu0 0.0
    %4539 = vmatpush2.msra.mxu0 0.0
    %4540 = vmatprep.subr.mxu0 0.0
    %4541 = vmatpush2.msra.mxu0 0.0
    %4542 = vmatprep.subr.mxu0 0.0
    %4543 = vmatpush2.msra.mxu0 0.0
    %4544 = vmatprep.subr.mxu0 0.0
    %4545 = vmatpush2.msra.mxu0 0.0
    %4546 = vmatprep.subr.mxu0 0.0
    %4547 = vmatpush2.msra.mxu0 0.0
    %4548 = vmatprep.subr.mxu0 0.0
    %4549 = vmatpush2.msra.mxu0 0.0
    %4550 = vmatprep.subr.mxu0 0.0
    %4551 = vmatpush2.msra.mxu0 0.0
    %4552 = vmatprep.subr.mxu0 0.0
    %4553 = vmatpush2.msra.mxu0 0.0
    %4554 = vmatprep.subr.mxu0 0.0
    %4555 = vmatpush2.msra.mxu0 0.0
    %4556 = vmatprep.subr.mxu0 0.0
    %4557 = vmatpush2.msra.mxu0 0.0
    %4558 = vmatprep.subr.mxu0 0.0
    %4559 = vmatpush2.msra.mxu0 0.0
    %4560 = vmatprep.mubr.f32.mxu0 0.0
    %v4561 = vand.u32 %v4240, 4294901760
    %v4562 = vsub.f32 %v4240, %v4561
    %v4563 = vand.u32 %v4562, 4294901760
    %4564 = vmatmul.mubr.f32.gmra.mxu0 %v4563
    %v4565 = vpop.f32.mrf.mxu0
    %v4566 = vadd.f32 %v4489, %v4565
    %v4567 = vpop.f32.mrf.mxu0
    %4568 = vdwg.mxu0
    %4569 = vmatprep.subr.mxu0 0.0
    %4570 = vmatpush1.msra.mxu0 0.0
    %4571 = vmatprep.subr.mxu0 0.0
    %4572 = vmatpush1.msra.mxu0 0.0
    %4573 = vmatprep.subr.mxu0 0.0
    %4574 = vmatpush1.msra.mxu0 0.0
    %4575 = vmatprep.subr.mxu0 0.0
    %4576 = vmatpush1.msra.mxu0 0.0
    %4577 = vmatprep.subr.mxu0 0.0
    %4578 = vmatpush1.msra.mxu0 0.0
    %4579 = vmatprep.subr.mxu0 0.0
    %4580 = vmatpush1.msra.mxu0 0.0
    %4581 = vmatprep.subr.mxu0 0.0
    %4582 = vmatpush1.msra.mxu0 0.0
    %4583 = vmatprep.subr.mxu0 0.0
    %4584 = vmatpush1.msra.mxu0 0.0
    %4585 = vmatprep.subr.mxu0 0.0
    %4586 = vmatpush1.msra.mxu0 0.0
    %4587 = vmatprep.subr.mxu0 0.0
    %4588 = vmatpush1.msra.mxu0 0.0
    %4589 = vmatprep.subr.mxu0 0.0
    %4590 = vmatpush1.msra.mxu0 0.0
    %4591 = vmatprep.subr.mxu0 0.0
    %4592 = vmatpush1.msra.mxu0 0.0
    %4593 = vmatprep.subr.mxu0 0.0
    %v4594 = vand.u32 %v4231, 4294901760
    %v4595 = vsub.f32 %v4231, %v4594
    %v4596 = vand.u32 %v4595, 4294901760
    %4597 = vmatpush1.msra.mxu0 %v4596
    %4598 = vmatprep.subr.mxu0 0.0
    %v4599 = vand.u32 %v4230, 4294901760
    %v4600 = vsub.f32 %v4230, %v4599
    %v4601 = vand.u32 %v4600, 4294901760
    %4602 = vmatpush1.msra.mxu0 %v4601
    %4603 = vmatprep.subr.mxu0 0.0
    %v4604 = vand.u32 %v4229, 4294901760
    %v4605 = vsub.f32 %v4229, %v4604
    %v4606 = vand.u32 %v4605, 4294901760
    %4607 = vmatpush1.msra.mxu0 %v4606
    %4608 = vmatprep.subr.mxu0 0.0
    %v4609 = vand.u32 %v4228, 4294901760
    %v4610 = vsub.f32 %v4228, %v4609
    %v4611 = vand.u32 %v4610, 4294901760
    %4612 = vmatpush1.msra.mxu0 %v4611
    %4613 = vmatprep.subr.mxu0 0.0
    %4614 = vmatpush2.msra.mxu0 0.0
    %4615 = vmatprep.subr.mxu0 0.0
    %4616 = vmatpush2.msra.mxu0 0.0
    %4617 = vmatprep.subr.mxu0 0.0
    %4618 = vmatpush2.msra.mxu0 0.0
    %4619 = vmatprep.subr.mxu0 0.0
    %4620 = vmatpush2.msra.mxu0 0.0
    %4621 = vmatprep.subr.mxu0 0.0
    %4622 = vmatpush2.msra.mxu0 0.0
    %4623 = vmatprep.subr.mxu0 0.0
    %4624 = vmatpush2.msra.mxu0 0.0
    %4625 = vmatprep.subr.mxu0 0.0
    %4626 = vmatpush2.msra.mxu0 0.0
    %4627 = vmatprep.subr.mxu0 0.0
    %4628 = vmatpush2.msra.mxu0 0.0
    %4629 = vmatprep.subr.mxu0 0.0
    %4630 = vmatpush2.msra.mxu0 0.0
    %4631 = vmatprep.subr.mxu0 0.0
    %4632 = vmatpush2.msra.mxu0 0.0
    %4633 = vmatprep.subr.mxu0 0.0
    %4634 = vmatpush2.msra.mxu0 0.0
    %4635 = vmatprep.subr.mxu0 0.0
    %4636 = vmatpush2.msra.mxu0 0.0
    %4637 = vmatprep.subr.mxu0 0.0
    %4638 = vmatpush2.msra.mxu0 0.0
    %4639 = vmatprep.subr.mxu0 0.0
    %4640 = vmatpush2.msra.mxu0 0.0
    %4641 = vmatprep.subr.mxu0 0.0
    %4642 = vmatpush2.msra.mxu0 0.0
    %4643 = vmatprep.subr.mxu0 0.0
    %4644 = vmatpush2.msra.mxu0 0.0
    %4645 = vmatprep.mubr.f32.mxu0 0.0
    %v4646 = vand.u32 %v4240, 4294901760
    %4647 = vmatmul.mubr.f32.gmra.mxu0 %v4646
    %v4648 = vpop.f32.mrf.mxu0
    %v4649 = vadd.f32 %v4566, %v4648
    %v4650 = vpop.f32.mrf.mxu0
    %4651 = vdwg.mxu0
    %4652 = vmatprep.subr.mxu0 0.0
    %4653 = vmatpush1.msra.mxu0 0.0
    %4654 = vmatprep.subr.mxu0 0.0
    %4655 = vmatpush1.msra.mxu0 0.0
    %4656 = vmatprep.subr.mxu0 0.0
    %4657 = vmatpush1.msra.mxu0 0.0
    %4658 = vmatprep.subr.mxu0 0.0
    %4659 = vmatpush1.msra.mxu0 0.0
    %4660 = vmatprep.subr.mxu0 0.0
    %4661 = vmatpush1.msra.mxu0 0.0
    %4662 = vmatprep.subr.mxu0 0.0
    %4663 = vmatpush1.msra.mxu0 0.0
    %4664 = vmatprep.subr.mxu0 0.0
    %4665 = vmatpush1.msra.mxu0 0.0
    %4666 = vmatprep.subr.mxu0 0.0
    %4667 = vmatpush1.msra.mxu0 0.0
    %4668 = vmatprep.subr.mxu0 0.0
    %4669 = vmatpush1.msra.mxu0 0.0
    %4670 = vmatprep.subr.mxu0 0.0
    %4671 = vmatpush1.msra.mxu0 0.0
    %4672 = vmatprep.subr.mxu0 0.0
    %4673 = vmatpush1.msra.mxu0 0.0
    %4674 = vmatprep.subr.mxu0 0.0
    %4675 = vmatpush1.msra.mxu0 0.0
    %4676 = vmatprep.subr.mxu0 0.0
    %v4677 = vand.u32 %v4231, 4294901760
    %4678 = vmatpush1.msra.mxu0 %v4677
    %4679 = vmatprep.subr.mxu0 0.0
    %v4680 = vand.u32 %v4230, 4294901760
    %4681 = vmatpush1.msra.mxu0 %v4680
    %4682 = vmatprep.subr.mxu0 0.0
    %v4683 = vand.u32 %v4229, 4294901760
    %4684 = vmatpush1.msra.mxu0 %v4683
    %4685 = vmatprep.subr.mxu0 0.0
    %v4686 = vand.u32 %v4228, 4294901760
    %4687 = vmatpush1.msra.mxu0 %v4686
    %4688 = vmatprep.subr.mxu0 0.0
    %4689 = vmatpush2.msra.mxu0 0.0
    %4690 = vmatprep.subr.mxu0 0.0
    %4691 = vmatpush2.msra.mxu0 0.0
    %4692 = vmatprep.subr.mxu0 0.0
    %4693 = vmatpush2.msra.mxu0 0.0
    %4694 = vmatprep.subr.mxu0 0.0
    %4695 = vmatpush2.msra.mxu0 0.0
    %4696 = vmatprep.subr.mxu0 0.0
    %4697 = vmatpush2.msra.mxu0 0.0
    %4698 = vmatprep.subr.mxu0 0.0
    %4699 = vmatpush2.msra.mxu0 0.0
    %4700 = vmatprep.subr.mxu0 0.0
    %4701 = vmatpush2.msra.mxu0 0.0
    %4702 = vmatprep.subr.mxu0 0.0
    %4703 = vmatpush2.msra.mxu0 0.0
    %4704 = vmatprep.subr.mxu0 0.0
    %4705 = vmatpush2.msra.mxu0 0.0
    %4706 = vmatprep.subr.mxu0 0.0
    %4707 = vmatpush2.msra.mxu0 0.0
    %4708 = vmatprep.subr.mxu0 0.0
    %4709 = vmatpush2.msra.mxu0 0.0
    %4710 = vmatprep.subr.mxu0 0.0
    %4711 = vmatpush2.msra.mxu0 0.0
    %4712 = vmatprep.subr.mxu0 0.0
    %4713 = vmatpush2.msra.mxu0 0.0
    %4714 = vmatprep.subr.mxu0 0.0
    %4715 = vmatpush2.msra.mxu0 0.0
    %4716 = vmatprep.subr.mxu0 0.0
    %4717 = vmatpush2.msra.mxu0 0.0
    %4718 = vmatprep.subr.mxu0 0.0
    %4719 = vmatpush2.msra.mxu0 0.0
    %4720 = vmatprep.mubr.f32.mxu0 0.0
    %v4721 = vand.u32 %v4240, 4294901760
    %4722 = vmatmul.mubr.f32.gmra.mxu0 %v4721
    %v4723 = vpop.f32.mrf.mxu0
    %v4724 = vadd.f32 %v4649, %v4723
    %v4725 = vpop.f32.mrf.mxu0
    %4726 = vdwg.mxu0
    %v4727 = vld [vmem:[#allocation11] sm:$0xff]
    %v4728 = vld [vmem:[#allocation11 + $0x8] sm:$0xff]
    %v4729 = vld [vmem:[#allocation11 + $0x10] sm:$0xff]
    %v4730 = vld [vmem:[#allocation11 + $0x18] sm:$0xff]
    %v4731 = vld [vmem:[%s9] sm:$0x1]
    %v4733 = vlaneseq
    %v4734 = vshrl.u32 %v4733, 7
    %v4735 = vsub.s32 0, %v4734
    %v4736 = vrot.slane %v4731, %v4735
    %v4739 = vsel %vm126, %v4224, 0
    %4741 = vmatprep.subr.mxu0 0.0
    %4742 = vmatpush1.msra.mxu0 0.0
    %4743 = vmatprep.subr.mxu0 0.0
    %4744 = vmatpush1.msra.mxu0 0.0
    %4745 = vmatprep.subr.mxu0 0.0
    %4746 = vmatpush1.msra.mxu0 0.0
    %4747 = vmatprep.subr.mxu0 0.0
    %4748 = vmatpush1.msra.mxu0 0.0
    %4749 = vmatprep.subr.mxu0 0.0
    %4750 = vmatpush1.msra.mxu0 0.0
    %4751 = vmatprep.subr.mxu0 0.0
    %4752 = vmatpush1.msra.mxu0 0.0
    %4753 = vmatprep.subr.mxu0 0.0
    %4754 = vmatpush1.msra.mxu0 0.0
    %4755 = vmatprep.subr.mxu0 0.0
    %4756 = vmatpush1.msra.mxu0 0.0
    %4757 = vmatprep.subr.mxu0 0.0
    %4758 = vmatpush1.msra.mxu0 0.0
    %4759 = vmatprep.subr.mxu0 0.0
    %4760 = vmatpush1.msra.mxu0 0.0
    %4761 = vmatprep.subr.mxu0 0.0
    %4762 = vmatpush1.msra.mxu0 0.0
    %4763 = vmatprep.subr.mxu0 0.0
    %4764 = vmatpush1.msra.mxu0 0.0
    %4765 = vmatprep.subr.mxu0 0.0
    %v4766 = vand.u32 %v4730, 4294901760
    %4767 = vmatpush1.msra.mxu0 %v4766
    %4768 = vmatprep.subr.mxu0 0.0
    %v4769 = vand.u32 %v4729, 4294901760
    %4770 = vmatpush1.msra.mxu0 %v4769
    %4771 = vmatprep.subr.mxu0 0.0
    %v4772 = vand.u32 %v4728, 4294901760
    %4773 = vmatpush1.msra.mxu0 %v4772
    %4774 = vmatprep.subr.mxu0 0.0
    %v4775 = vand.u32 %v4727, 4294901760
    %4776 = vmatpush1.msra.mxu0 %v4775
    %4777 = vmatprep.subr.mxu0 0.0
    %4778 = vmatpush2.msra.mxu0 0.0
    %4779 = vmatprep.subr.mxu0 0.0
    %4780 = vmatpush2.msra.mxu0 0.0
    %4781 = vmatprep.subr.mxu0 0.0
    %4782 = vmatpush2.msra.mxu0 0.0
    %4783 = vmatprep.subr.mxu0 0.0
    %4784 = vmatpush2.msra.mxu0 0.0
    %4785 = vmatprep.subr.mxu0 0.0
    %4786 = vmatpush2.msra.mxu0 0.0
    %4787 = vmatprep.subr.mxu0 0.0
    %4788 = vmatpush2.msra.mxu0 0.0
    %4789 = vmatprep.subr.mxu0 0.0
    %4790 = vmatpush2.msra.mxu0 0.0
    %4791 = vmatprep.subr.mxu0 0.0
    %4792 = vmatpush2.msra.mxu0 0.0
    %4793 = vmatprep.subr.mxu0 0.0
    %4794 = vmatpush2.msra.mxu0 0.0
    %4795 = vmatprep.subr.mxu0 0.0
    %4796 = vmatpush2.msra.mxu0 0.0
    %4797 = vmatprep.subr.mxu0 0.0
    %4798 = vmatpush2.msra.mxu0 0.0
    %4799 = vmatprep.subr.mxu0 0.0
    %4800 = vmatpush2.msra.mxu0 0.0
    %4801 = vmatprep.subr.mxu0 0.0
    %4802 = vmatpush2.msra.mxu0 0.0
    %4803 = vmatprep.subr.mxu0 0.0
    %4804 = vmatpush2.msra.mxu0 0.0
    %4805 = vmatprep.subr.mxu0 0.0
    %4806 = vmatpush2.msra.mxu0 0.0
    %4807 = vmatprep.subr.mxu0 0.0
    %4808 = vmatpush2.msra.mxu0 0.0
    %4809 = vmatprep.mubr.f32.mxu0 0.0
    %v4810 = vand.u32 %v4739, 4294901760
    %v4811 = vsub.f32 %v4739, %v4810
    %v4812 = vand.u32 %v4811, 4294901760
    %v4813 = vsub.f32 %v4811, %v4812
    %v4814 = vand.u32 %v4813, 4294901760
    %4815 = vmatmul.mubr.f32.gmra.mxu0 %v4814
    %v4816 = vpop.f32.mrf.mxu0
    %v4817 = vadd.f32 %v4736, %v4816
    %v4818 = vpop.f32.mrf.mxu0
    %4819 = vdwg.mxu0
    %4820 = vmatprep.subr.mxu0 0.0
    %4821 = vmatpush1.msra.mxu0 0.0
    %4822 = vmatprep.subr.mxu0 0.0
    %4823 = vmatpush1.msra.mxu0 0.0
    %4824 = vmatprep.subr.mxu0 0.0
    %4825 = vmatpush1.msra.mxu0 0.0
    %4826 = vmatprep.subr.mxu0 0.0
    %4827 = vmatpush1.msra.mxu0 0.0
    %4828 = vmatprep.subr.mxu0 0.0
    %4829 = vmatpush1.msra.mxu0 0.0
    %4830 = vmatprep.subr.mxu0 0.0
    %4831 = vmatpush1.msra.mxu0 0.0
    %4832 = vmatprep.subr.mxu0 0.0
    %4833 = vmatpush1.msra.mxu0 0.0
    %4834 = vmatprep.subr.mxu0 0.0
    %4835 = vmatpush1.msra.mxu0 0.0
    %4836 = vmatprep.subr.mxu0 0.0
    %4837 = vmatpush1.msra.mxu0 0.0
    %4838 = vmatprep.subr.mxu0 0.0
    %4839 = vmatpush1.msra.mxu0 0.0
    %4840 = vmatprep.subr.mxu0 0.0
    %4841 = vmatpush1.msra.mxu0 0.0
    %4842 = vmatprep.subr.mxu0 0.0
    %4843 = vmatpush1.msra.mxu0 0.0
    %4844 = vmatprep.subr.mxu0 0.0
    %v4845 = vand.u32 %v4730, 4294901760
    %v4846 = vsub.f32 %v4730, %v4845
    %v4847 = vand.u32 %v4846, 4294901760
    %v4848 = vsub.f32 %v4846, %v4847
    %v4849 = vand.u32 %v4848, 4294901760
    %4850 = vmatpush1.msra.mxu0 %v4849
    %4851 = vmatprep.subr.mxu0 0.0
    %v4852 = vand.u32 %v4729, 4294901760
    %v4853 = vsub.f32 %v4729, %v4852
    %v4854 = vand.u32 %v4853, 4294901760
    %v4855 = vsub.f32 %v4853, %v4854
    %v4856 = vand.u32 %v4855, 4294901760
    %4857 = vmatpush1.msra.mxu0 %v4856
    %4858 = vmatprep.subr.mxu0 0.0
    %v4859 = vand.u32 %v4728, 4294901760
    %v4860 = vsub.f32 %v4728, %v4859
    %v4861 = vand.u32 %v4860, 4294901760
    %v4862 = vsub.f32 %v4860, %v4861
    %v4863 = vand.u32 %v4862, 4294901760
    %4864 = vmatpush1.msra.mxu0 %v4863
    %4865 = vmatprep.subr.mxu0 0.0
    %v4866 = vand.u32 %v4727, 4294901760
    %v4867 = vsub.f32 %v4727, %v4866
    %v4868 = vand.u32 %v4867, 4294901760
    %v4869 = vsub.f32 %v4867, %v4868
    %v4870 = vand.u32 %v4869, 4294901760
    %4871 = vmatpush1.msra.mxu0 %v4870
    %4872 = vmatprep.subr.mxu0 0.0
    %4873 = vmatpush2.msra.mxu0 0.0
    %4874 = vmatprep.subr.mxu0 0.0
    %4875 = vmatpush2.msra.mxu0 0.0
    %4876 = vmatprep.subr.mxu0 0.0
    %4877 = vmatpush2.msra.mxu0 0.0
    %4878 = vmatprep.subr.mxu0 0.0
    %4879 = vmatpush2.msra.mxu0 0.0
    %4880 = vmatprep.subr.mxu0 0.0
    %4881 = vmatpush2.msra.mxu0 0.0
    %4882 = vmatprep.subr.mxu0 0.0
    %4883 = vmatpush2.msra.mxu0 0.0
    %4884 = vmatprep.subr.mxu0 0.0
    %4885 = vmatpush2.msra.mxu0 0.0
    %4886 = vmatprep.subr.mxu0 0.0
    %4887 = vmatpush2.msra.mxu0 0.0
    %4888 = vmatprep.subr.mxu0 0.0
    %4889 = vmatpush2.msra.mxu0 0.0
    %4890 = vmatprep.subr.mxu0 0.0
    %4891 = vmatpush2.msra.mxu0 0.0
    %4892 = vmatprep.subr.mxu0 0.0
    %4893 = vmatpush2.msra.mxu0 0.0
    %4894 = vmatprep.subr.mxu0 0.0
    %4895 = vmatpush2.msra.mxu0 0.0
    %4896 = vmatprep.subr.mxu0 0.0
    %4897 = vmatpush2.msra.mxu0 0.0
    %4898 = vmatprep.subr.mxu0 0.0
    %4899 = vmatpush2.msra.mxu0 0.0
    %4900 = vmatprep.subr.mxu0 0.0
    %4901 = vmatpush2.msra.mxu0 0.0
    %4902 = vmatprep.subr.mxu0 0.0
    %4903 = vmatpush2.msra.mxu0 0.0
    %4904 = vmatprep.mubr.f32.mxu0 0.0
    %v4905 = vand.u32 %v4739, 4294901760
    %4906 = vmatmul.mubr.f32.gmra.mxu0 %v4905
    %v4907 = vpop.f32.mrf.mxu0
    %v4908 = vadd.f32 %v4817, %v4907
    %v4909 = vpop.f32.mrf.mxu0
    %4910 = vdwg.mxu0
    %4911 = vmatprep.subr.mxu0 0.0
    %4912 = vmatpush1.msra.mxu0 0.0
    %4913 = vmatprep.subr.mxu0 0.0
    %4914 = vmatpush1.msra.mxu0 0.0
    %4915 = vmatprep.subr.mxu0 0.0
    %4916 = vmatpush1.msra.mxu0 0.0
    %4917 = vmatprep.subr.mxu0 0.0
    %4918 = vmatpush1.msra.mxu0 0.0
    %4919 = vmatprep.subr.mxu0 0.0
    %4920 = vmatpush1.msra.mxu0 0.0
    %4921 = vmatprep.subr.mxu0 0.0
    %4922 = vmatpush1.msra.mxu0 0.0
    %4923 = vmatprep.subr.mxu0 0.0
    %4924 = vmatpush1.msra.mxu0 0.0
    %4925 = vmatprep.subr.mxu0 0.0
    %4926 = vmatpush1.msra.mxu0 0.0
    %4927 = vmatprep.subr.mxu0 0.0
    %4928 = vmatpush1.msra.mxu0 0.0
    %4929 = vmatprep.subr.mxu0 0.0
    %4930 = vmatpush1.msra.mxu0 0.0
    %4931 = vmatprep.subr.mxu0 0.0
    %4932 = vmatpush1.msra.mxu0 0.0
    %4933 = vmatprep.subr.mxu0 0.0
    %4934 = vmatpush1.msra.mxu0 0.0
    %4935 = vmatprep.subr.mxu0 0.0
    %v4936 = vand.u32 %v4730, 4294901760
    %v4937 = vsub.f32 %v4730, %v4936
    %4938 = vmatpush1.msra.mxu0 %v4937
    %4939 = vmatprep.subr.mxu0 0.0
    %v4940 = vand.u32 %v4729, 4294901760
    %v4941 = vsub.f32 %v4729, %v4940
    %4942 = vmatpush1.msra.mxu0 %v4941
    %4943 = vmatprep.subr.mxu0 0.0
    %v4944 = vand.u32 %v4728, 4294901760
    %v4945 = vsub.f32 %v4728, %v4944
    %4946 = vmatpush1.msra.mxu0 %v4945
    %4947 = vmatprep.subr.mxu0 0.0
    %v4948 = vand.u32 %v4727, 4294901760
    %v4949 = vsub.f32 %v4727, %v4948
    %4950 = vmatpush1.msra.mxu0 %v4949
    %4951 = vmatprep.subr.mxu0 0.0
    %4952 = vmatpush2.msra.mxu0 0.0
    %4953 = vmatprep.subr.mxu0 0.0
    %4954 = vmatpush2.msra.mxu0 0.0
    %4955 = vmatprep.subr.mxu0 0.0
    %4956 = vmatpush2.msra.mxu0 0.0
    %4957 = vmatprep.subr.mxu0 0.0
    %4958 = vmatpush2.msra.mxu0 0.0
    %4959 = vmatprep.subr.mxu0 0.0
    %4960 = vmatpush2.msra.mxu0 0.0
    %4961 = vmatprep.subr.mxu0 0.0
    %4962 = vmatpush2.msra.mxu0 0.0
    %4963 = vmatprep.subr.mxu0 0.0
    %4964 = vmatpush2.msra.mxu0 0.0
    %4965 = vmatprep.subr.mxu0 0.0
    %4966 = vmatpush2.msra.mxu0 0.0
    %4967 = vmatprep.subr.mxu0 0.0
    %4968 = vmatpush2.msra.mxu0 0.0
    %4969 = vmatprep.subr.mxu0 0.0
    %4970 = vmatpush2.msra.mxu0 0.0
    %4971 = vmatprep.subr.mxu0 0.0
    %4972 = vmatpush2.msra.mxu0 0.0
    %4973 = vmatprep.subr.mxu0 0.0
    %4974 = vmatpush2.msra.mxu0 0.0
    %4975 = vmatprep.subr.mxu0 0.0
    %4976 = vmatpush2.msra.mxu0 0.0
    %4977 = vmatprep.subr.mxu0 0.0
    %4978 = vmatpush2.msra.mxu0 0.0
    %4979 = vmatprep.subr.mxu0 0.0
    %4980 = vmatpush2.msra.mxu0 0.0
    %4981 = vmatprep.subr.mxu0 0.0
    %4982 = vmatpush2.msra.mxu0 0.0
    %4983 = vmatprep.mubr.f32.mxu0 0.0
    %v4984 = vand.u32 %v4739, 4294901760
    %v4985 = vsub.f32 %v4739, %v4984
    %4986 = vmatmul.mubr.f32.gmra.mxu0 %v4985
    %v4987 = vpop.f32.mrf.mxu0
    %v4988 = vadd.f32 %v4908, %v4987
    %v4989 = vpop.f32.mrf.mxu0
    %4990 = vdwg.mxu0
    %4991 = vmatprep.subr.mxu0 0.0
    %4992 = vmatpush1.msra.mxu0 0.0
    %4993 = vmatprep.subr.mxu0 0.0
    %4994 = vmatpush1.msra.mxu0 0.0
    %4995 = vmatprep.subr.mxu0 0.0
    %4996 = vmatpush1.msra.mxu0 0.0
    %4997 = vmatprep.subr.mxu0 0.0
    %4998 = vmatpush1.msra.mxu0 0.0
    %4999 = vmatprep.subr.mxu0 0.0
    %5000 = vmatpush1.msra.mxu0 0.0
    %5001 = vmatprep.subr.mxu0 0.0
    %5002 = vmatpush1.msra.mxu0 0.0
    %5003 = vmatprep.subr.mxu0 0.0
    %5004 = vmatpush1.msra.mxu0 0.0
    %5005 = vmatprep.subr.mxu0 0.0
    %5006 = vmatpush1.msra.mxu0 0.0
    %5007 = vmatprep.subr.mxu0 0.0
    %5008 = vmatpush1.msra.mxu0 0.0
    %5009 = vmatprep.subr.mxu0 0.0
    %5010 = vmatpush1.msra.mxu0 0.0
    %5011 = vmatprep.subr.mxu0 0.0
    %5012 = vmatpush1.msra.mxu0 0.0
    %5013 = vmatprep.subr.mxu0 0.0
    %5014 = vmatpush1.msra.mxu0 0.0
    %5015 = vmatprep.subr.mxu0 0.0
    %v5016 = vand.u32 %v4730, 4294901760
    %5017 = vmatpush1.msra.mxu0 %v5016
    %5018 = vmatprep.subr.mxu0 0.0
    %v5019 = vand.u32 %v4729, 4294901760
    %5020 = vmatpush1.msra.mxu0 %v5019
    %5021 = vmatprep.subr.mxu0 0.0
    %v5022 = vand.u32 %v4728, 4294901760
    %5023 = vmatpush1.msra.mxu0 %v5022
    %5024 = vmatprep.subr.mxu0 0.0
    %v5025 = vand.u32 %v4727, 4294901760
    %5026 = vmatpush1.msra.mxu0 %v5025
    %5027 = vmatprep.subr.mxu0 0.0
    %5028 = vmatpush2.msra.mxu0 0.0
    %5029 = vmatprep.subr.mxu0 0.0
    %5030 = vmatpush2.msra.mxu0 0.0
    %5031 = vmatprep.subr.mxu0 0.0
    %5032 = vmatpush2.msra.mxu0 0.0
    %5033 = vmatprep.subr.mxu0 0.0
    %5034 = vmatpush2.msra.mxu0 0.0
    %5035 = vmatprep.subr.mxu0 0.0
    %5036 = vmatpush2.msra.mxu0 0.0
    %5037 = vmatprep.subr.mxu0 0.0
    %5038 = vmatpush2.msra.mxu0 0.0
    %5039 = vmatprep.subr.mxu0 0.0
    %5040 = vmatpush2.msra.mxu0 0.0
    %5041 = vmatprep.subr.mxu0 0.0
    %5042 = vmatpush2.msra.mxu0 0.0
    %5043 = vmatprep.subr.mxu0 0.0
    %5044 = vmatpush2.msra.mxu0 0.0
    %5045 = vmatprep.subr.mxu0 0.0
    %5046 = vmatpush2.msra.mxu0 0.0
    %5047 = vmatprep.subr.mxu0 0.0
    %5048 = vmatpush2.msra.mxu0 0.0
    %5049 = vmatprep.subr.mxu0 0.0
    %5050 = vmatpush2.msra.mxu0 0.0
    %5051 = vmatprep.subr.mxu0 0.0
    %5052 = vmatpush2.msra.mxu0 0.0
    %5053 = vmatprep.subr.mxu0 0.0
    %5054 = vmatpush2.msra.mxu0 0.0
    %5055 = vmatprep.subr.mxu0 0.0
    %5056 = vmatpush2.msra.mxu0 0.0
    %5057 = vmatprep.subr.mxu0 0.0
    %5058 = vmatpush2.msra.mxu0 0.0
    %5059 = vmatprep.mubr.f32.mxu0 0.0
    %v5060 = vand.u32 %v4739, 4294901760
    %v5061 = vsub.f32 %v4739, %v5060
    %v5062 = vand.u32 %v5061, 4294901760
    %5063 = vmatmul.mubr.f32.gmra.mxu0 %v5062
    %v5064 = vpop.f32.mrf.mxu0
    %v5065 = vadd.f32 %v4988, %v5064
    %v5066 = vpop.f32.mrf.mxu0
    %5067 = vdwg.mxu0
    %5068 = vmatprep.subr.mxu0 0.0
    %5069 = vmatpush1.msra.mxu0 0.0
    %5070 = vmatprep.subr.mxu0 0.0
    %5071 = vmatpush1.msra.mxu0 0.0
    %5072 = vmatprep.subr.mxu0 0.0
    %5073 = vmatpush1.msra.mxu0 0.0
    %5074 = vmatprep.subr.mxu0 0.0
    %5075 = vmatpush1.msra.mxu0 0.0
    %5076 = vmatprep.subr.mxu0 0.0
    %5077 = vmatpush1.msra.mxu0 0.0
    %5078 = vmatprep.subr.mxu0 0.0
    %5079 = vmatpush1.msra.mxu0 0.0
    %5080 = vmatprep.subr.mxu0 0.0
    %5081 = vmatpush1.msra.mxu0 0.0
    %5082 = vmatprep.subr.mxu0 0.0
    %5083 = vmatpush1.msra.mxu0 0.0
    %5084 = vmatprep.subr.mxu0 0.0
    %5085 = vmatpush1.msra.mxu0 0.0
    %5086 = vmatprep.subr.mxu0 0.0
    %5087 = vmatpush1.msra.mxu0 0.0
    %5088 = vmatprep.subr.mxu0 0.0
    %5089 = vmatpush1.msra.mxu0 0.0
    %5090 = vmatprep.subr.mxu0 0.0
    %5091 = vmatpush1.msra.mxu0 0.0
    %5092 = vmatprep.subr.mxu0 0.0
    %v5093 = vand.u32 %v4730, 4294901760
    %v5094 = vsub.f32 %v4730, %v5093
    %v5095 = vand.u32 %v5094, 4294901760
    %5096 = vmatpush1.msra.mxu0 %v5095
    %5097 = vmatprep.subr.mxu0 0.0
    %v5098 = vand.u32 %v4729, 4294901760
    %v5099 = vsub.f32 %v4729, %v5098
    %v5100 = vand.u32 %v5099, 4294901760
    %5101 = vmatpush1.msra.mxu0 %v5100
    %5102 = vmatprep.subr.mxu0 0.0
    %v5103 = vand.u32 %v4728, 4294901760
    %v5104 = vsub.f32 %v4728, %v5103
    %v5105 = vand.u32 %v5104, 4294901760
    %5106 = vmatpush1.msra.mxu0 %v5105
    %5107 = vmatprep.subr.mxu0 0.0
    %v5108 = vand.u32 %v4727, 4294901760
    %v5109 = vsub.f32 %v4727, %v5108
    %v5110 = vand.u32 %v5109, 4294901760
    %5111 = vmatpush1.msra.mxu0 %v5110
    %5112 = vmatprep.subr.mxu0 0.0
    %5113 = vmatpush2.msra.mxu0 0.0
    %5114 = vmatprep.subr.mxu0 0.0
    %5115 = vmatpush2.msra.mxu0 0.0
    %5116 = vmatprep.subr.mxu0 0.0
    %5117 = vmatpush2.msra.mxu0 0.0
    %5118 = vmatprep.subr.mxu0 0.0
    %5119 = vmatpush2.msra.mxu0 0.0
    %5120 = vmatprep.subr.mxu0 0.0
    %5121 = vmatpush2.msra.mxu0 0.0
    %5122 = vmatprep.subr.mxu0 0.0
    %5123 = vmatpush2.msra.mxu0 0.0
    %5124 = vmatprep.subr.mxu0 0.0
    %5125 = vmatpush2.msra.mxu0 0.0
    %5126 = vmatprep.subr.mxu0 0.0
    %5127 = vmatpush2.msra.mxu0 0.0
    %5128 = vmatprep.subr.mxu0 0.0
    %5129 = vmatpush2.msra.mxu0 0.0
    %5130 = vmatprep.subr.mxu0 0.0
    %5131 = vmatpush2.msra.mxu0 0.0
    %5132 = vmatprep.subr.mxu0 0.0
    %5133 = vmatpush2.msra.mxu0 0.0
    %5134 = vmatprep.subr.mxu0 0.0
    %5135 = vmatpush2.msra.mxu0 0.0
    %5136 = vmatprep.subr.mxu0 0.0
    %5137 = vmatpush2.msra.mxu0 0.0
    %5138 = vmatprep.subr.mxu0 0.0
    %5139 = vmatpush2.msra.mxu0 0.0
    %5140 = vmatprep.subr.mxu0 0.0
    %5141 = vmatpush2.msra.mxu0 0.0
    %5142 = vmatprep.subr.mxu0 0.0
    %5143 = vmatpush2.msra.mxu0 0.0
    %5144 = vmatprep.mubr.f32.mxu0 0.0
    %v5145 = vand.u32 %v4739, 4294901760
    %5146 = vmatmul.mubr.f32.gmra.mxu0 %v5145
    %v5147 = vpop.f32.mrf.mxu0
    %v5148 = vadd.f32 %v5065, %v5147
    %v5149 = vpop.f32.mrf.mxu0
    %5150 = vdwg.mxu0
    %5151 = vmatprep.subr.mxu0 0.0
    %5152 = vmatpush1.msra.mxu0 0.0
    %5153 = vmatprep.subr.mxu0 0.0
    %5154 = vmatpush1.msra.mxu0 0.0
    %5155 = vmatprep.subr.mxu0 0.0
    %5156 = vmatpush1.msra.mxu0 0.0
    %5157 = vmatprep.subr.mxu0 0.0
    %5158 = vmatpush1.msra.mxu0 0.0
    %5159 = vmatprep.subr.mxu0 0.0
    %5160 = vmatpush1.msra.mxu0 0.0
    %5161 = vmatprep.subr.mxu0 0.0
    %5162 = vmatpush1.msra.mxu0 0.0
    %5163 = vmatprep.subr.mxu0 0.0
    %5164 = vmatpush1.msra.mxu0 0.0
    %5165 = vmatprep.subr.mxu0 0.0
    %5166 = vmatpush1.msra.mxu0 0.0
    %5167 = vmatprep.subr.mxu0 0.0
    %5168 = vmatpush1.msra.mxu0 0.0
    %5169 = vmatprep.subr.mxu0 0.0
    %5170 = vmatpush1.msra.mxu0 0.0
    %5171 = vmatprep.subr.mxu0 0.0
    %5172 = vmatpush1.msra.mxu0 0.0
    %5173 = vmatprep.subr.mxu0 0.0
    %5174 = vmatpush1.msra.mxu0 0.0
    %5175 = vmatprep.subr.mxu0 0.0
    %v5176 = vand.u32 %v4730, 4294901760
    %5177 = vmatpush1.msra.mxu0 %v5176
    %5178 = vmatprep.subr.mxu0 0.0
    %v5179 = vand.u32 %v4729, 4294901760
    %5180 = vmatpush1.msra.mxu0 %v5179
    %5181 = vmatprep.subr.mxu0 0.0
    %v5182 = vand.u32 %v4728, 4294901760
    %5183 = vmatpush1.msra.mxu0 %v5182
    %5184 = vmatprep.subr.mxu0 0.0
    %v5185 = vand.u32 %v4727, 4294901760
    %5186 = vmatpush1.msra.mxu0 %v5185
    %5187 = vmatprep.subr.mxu0 0.0
    %5188 = vmatpush2.msra.mxu0 0.0
    %5189 = vmatprep.subr.mxu0 0.0
    %5190 = vmatpush2.msra.mxu0 0.0
    %5191 = vmatprep.subr.mxu0 0.0
    %5192 = vmatpush2.msra.mxu0 0.0
    %5193 = vmatprep.subr.mxu0 0.0
    %5194 = vmatpush2.msra.mxu0 0.0
    %5195 = vmatprep.subr.mxu0 0.0
    %5196 = vmatpush2.msra.mxu0 0.0
    %5197 = vmatprep.subr.mxu0 0.0
    %5198 = vmatpush2.msra.mxu0 0.0
    %5199 = vmatprep.subr.mxu0 0.0
    %5200 = vmatpush2.msra.mxu0 0.0
    %5201 = vmatprep.subr.mxu0 0.0
    %5202 = vmatpush2.msra.mxu0 0.0
    %5203 = vmatprep.subr.mxu0 0.0
    %5204 = vmatpush2.msra.mxu0 0.0
    %5205 = vmatprep.subr.mxu0 0.0
    %5206 = vmatpush2.msra.mxu0 0.0
    %5207 = vmatprep.subr.mxu0 0.0
    %5208 = vmatpush2.msra.mxu0 0.0
    %5209 = vmatprep.subr.mxu0 0.0
    %5210 = vmatpush2.msra.mxu0 0.0
    %5211 = vmatprep.subr.mxu0 0.0
    %5212 = vmatpush2.msra.mxu0 0.0
    %5213 = vmatprep.subr.mxu0 0.0
    %5214 = vmatpush2.msra.mxu0 0.0
    %5215 = vmatprep.subr.mxu0 0.0
    %5216 = vmatpush2.msra.mxu0 0.0
    %5217 = vmatprep.subr.mxu0 0.0
    %5218 = vmatpush2.msra.mxu0 0.0
    %5219 = vmatprep.mubr.f32.mxu0 0.0
    %v5220 = vand.u32 %v4739, 4294901760
    %5221 = vmatmul.mubr.f32.gmra.mxu0 %v5220
    %v5222 = vpop.f32.mrf.mxu0
    %v5223 = vadd.f32 %v5148, %v5222
    %v5224 = vpop.f32.mrf.mxu0
    %5225 = vdwg.mxu0
    %v5226 = vmax.f32 %v4724, %v5223
    %v5227 = vsub.f32 %v4724, %v5226
    %v5228 = vmul.f32 %v5227, 1.442695
    %v5229 = vpow.pop %v5228
    %v5230 = vsub.f32 %v5223, %v5226
    %v5231 = vmul.f32 %v5230, 1.442695
    %v5232 = vpow.pop %v5231
    %5234 = vrot.lane.b32.xlu0 %v5229, 96
    %v5235 = vpop.permute.xlu0 %5234
    %v5237 = vmul.f32 %v4724, %v5235
    %5239 = vrot.lane.b32.xlu0 %v5232, 96
    %v5240 = vpop.permute.xlu0 %5239
    %v5242 = vmul.f32 %v5223, %v5240
    %v5243 = vadd.f32 %v5237, %v5242
    %v5244 = vadd.f32 %v5229, %v5232
    %5246 = vrot.lane.b32.xlu0 %v5244, 96
    %v5247 = vpop.permute.xlu0 %5246
    %v5249 = vrcp.pop %v5247
    %v5250 = vmul.f32 %v5243, %v5249
    %vm5251 = vcmask 254976
    %5252 = vst.msk [vmem:[#allocation13] sm:$0x3] %vm5251, %v5250
    // Predicated region
    $region66: #{tpu_custom_call.1} parent=1 // pred_check
      _
    $region67: #{tpu_custom_call.1} parent=1 // pred_check_branch
      %5254 = sbr.rel (0) target = $region69
    $region68: #{tpu_custom_call.1} parent=1 // pred_region
      %s5256 = ssub.s32 32, 32
      %5257 = vsyncadd [#allocation4], %s5256
      %s5259 = sshll.u32 [#allocation13], 4
      %s5260 = int_to_ptr.vmem [resolvable:$true] %s5259
      %5262 = dma.vmem_to_hbm [thread:$0]  %s5260, 32, %s10, [#allocation4]
    $region69: #{tpu_custom_call.1} parent=1 // pred_fallthru
      _
    // Predicated region
    $region70: #{tpu_custom_call.1} parent=1 // pred_check
      _
    $region71: #{tpu_custom_call.1} parent=1 // pred_check_branch
      %5264 = sbr.rel (0) target = $region73
    $region72: #{tpu_custom_call.1} parent=1 // pred_region
      %5265 = dma.done [#allocation4], 32
    $region73: #{tpu_custom_call.1} parent=1 // pred_fallthru
      _
    %5266 = vsyncpa [#allocation3], 1
    %5267 = vsyncpa [#allocation6], 1
    %5268 = vsyncpa [#allocation9], 1
    %5269 = vsyncpa [#allocation12], 1
    %5270 = vsyncpa [#allocation4], 1

</llo_original>
